<compile_context>
chip_gen: v5e
topology: v5e:2x2
jax: 0.10.0
libtpu: 0.0.40
codegen_flags: <defaults>
</compile_context>

<pallas_src>
import jax
import jax.numpy as jnp
from jax.experimental import pallas as pl
from jax.experimental.pallas import tpu as pltpu

NUM_LAYERS = 5  # layers per MLPBlock in BackBone


def backbone_kernel(x_ref, w1_ref, b1_ref, wt_ref, bt_ref, w2_ref, b2_ref, o_ref):
    # Entire BackBone forward for one batch tile; all weights resident in VMEM.
    # Cast x to bf16 in-kernel (cheap VPU work, hidden under the MXU) so the
    # HBM read stays at the caller's dtype with no wrapper-side cast pass.
    h = x_ref[...].astype(jnp.bfloat16)  # (batch_tile, D)

    # block1: 5 x (Linear(D, D) -> ReLU), bf16 matmul, f32 accumulate/bias/ReLU
    for i in range(NUM_LAYERS):
        acc = jnp.dot(h, w1_ref[i], preferred_element_type=jnp.float32) + b1_ref[i]
        h = jnp.maximum(acc, 0.0).astype(jnp.bfloat16)

    # transition: Linear(D, D//2), no activation
    acc = jnp.dot(h, wt_ref[...], preferred_element_type=jnp.float32) + bt_ref[...]
    h = acc.astype(jnp.bfloat16)

    # block2: 5 x (Linear(D//2, D//2) -> ReLU)
    act = None
    for i in range(NUM_LAYERS):
        acc = jnp.dot(h, w2_ref[i], preferred_element_type=jnp.float32) + b2_ref[i]
        act = jnp.maximum(acc, 0.0)            # keep f32 for the output path
        h = act.astype(jnp.bfloat16)           # bf16 feed for the next matmul

    o_ref[...] = act.astype(o_ref.dtype)       # store from the f32 accumulate path


def _num_tensorcores():
    """Best-effort TensorCore count per chip (v7x megacore => 2)."""
    try:
        kind = jax.devices()[0].device_kind.lower()
    except Exception:
        return 1
    return 2 if "v7" in kind else 1


def _vmem_capacity_bytes():
    """Physical per-core VMEM; conservative 64 MiB fallback (v7x per-TC)."""
    try:
        info = pltpu.get_tpu_info()
        cap = getattr(info, "vmem_capacity_bytes", None)
        if cap:
            return int(cap)
    except Exception:
        pass
    return 64 << 20


def _default_batch_tile(B, min_steps):
    """Largest bf16-friendly tile with >= min_steps grid steps (>=2/TC)."""
    candidates = (512, 256, 128, 64, 32, 16)
    # First pass: prefer big tiles (>=256) that still give enough grid steps.
    for t in (512, 256):
        if B % t == 0 and B // t >= min_steps:
            return t
    # Second pass: any tile with enough steps.
    for t in candidates:
        if B % t == 0 and B // t >= min_steps:
            return t
    # Relax to >= 2 steps, then give up and take the whole batch.
    for t in candidates:
        if B % t == 0 and B // t >= 2:
            return t
    return B


def backbone_forward(x, params, *, batch_tile=None, out_dtype=jnp.float32):
    """Run the fused BackBone kernel. x: (B, D); cast to bf16 inside the kernel."""
    w1, b1, wt, bt, w2, b2 = params
    B, D = x.shape
    D_out = wt.shape[1]

    # Lane-dense layout requirements for the BlockSpecs.
    assert D % 128 == 0, "input_dim must be a multiple of 128 for lane-dense tiles"
    assert D_out % 128 == 0, "input_dim//2 must be a multiple of 128 for lane-dense output"

    num_tc = _num_tensorcores()
    if batch_tile is None:
        batch_tile = _default_batch_tile(B, min_steps=2 * num_tc)
    assert B % batch_tile == 0, "batch must be divisible by batch_tile"
    # bf16 packs two rows per sublane: require multiples of 16 (or the whole batch).
    assert batch_tile % 16 == 0 or batch_tile == B, \
        "batch_tile must be a multiple of 16 (bf16 sublane packing) or equal B"

    grid = (B // batch_tile,)
    out_itemsize = jnp.dtype(out_dtype).itemsize
    x_itemsize = jnp.dtype(x.dtype).itemsize

    # VMEM budget:
    #   params are single-buffered (pl.Buffered(1), constant index maps),
    #   x/out tiles are double-buffered by the pipeline,
    #   ~3 live (batch_tile, D) f32 temporaries from the unrolled layer chain.
    param_bytes = sum(int(p.size) * p.dtype.itemsize for p in (w1, b1, wt, bt, w2, b2))
    tile_bytes = batch_tile * D * x_itemsize + batch_tile * D_out * out_itemsize
    scratch_bytes = 3 * batch_tile * D * 4
    vmem_budget = param_bytes + 2 * tile_bytes + scratch_bytes + (4 << 20)

    # Generation-aware cap: leave ~12 MiB of headroom below physical VMEM
    # (=> ~52 MiB on v7x, ~116 MiB on v5e/v6e) and keep a 32 MiB floor so the
    # v5e 16 MiB scoped default never throttles the tile double-buffering.
    vmem_cap = _vmem_capacity_bytes() - (12 << 20)
    vmem_limit = int(min(max(vmem_budget, 32 << 20), vmem_cap))

    flops = 2 * B * (NUM_LAYERS * D * D + D * D_out + NUM_LAYERS * D_out * D_out)
    bytes_accessed = B * D * x_itemsize + param_bytes + B * D_out * out_itemsize
    cost = pl.CostEstimate(flops=flops, transcendentals=0, bytes_accessed=bytes_accessed)

    resident = pl.Buffered(1)  # constant index maps: second buffer buys nothing

    return pl.pallas_call(
        backbone_kernel,
        out_shape=jax.ShapeDtypeStruct((B, D_out), out_dtype),
        grid_spec=pltpu.PrefetchScalarGridSpec(
            num_scalar_prefetch=0,
            grid=grid,
            in_specs=[
                pl.BlockSpec((batch_tile, D), lambda i: (i, 0)),                 # x tile (caller dtype)
                pl.BlockSpec((NUM_LAYERS, D, D), lambda i: (0, 0, 0),
                             pipeline_mode=resident),                            # w1 (resident)
                pl.BlockSpec((NUM_LAYERS, 1, D), lambda i: (0, 0, 0),
                             pipeline_mode=resident),                            # b1
                pl.BlockSpec((D, D_out), lambda i: (0, 0),
                             pipeline_mode=resident),                            # wt
                pl.BlockSpec((1, D_out), lambda i: (0, 0),
                             pipeline_mode=resident),                            # bt
                pl.BlockSpec((NUM_LAYERS, D_out, D_out), lambda i: (0, 0, 0),
                             pipeline_mode=resident),                            # w2
                pl.BlockSpec((NUM_LAYERS, 1, D_out), lambda i: (0, 0, 0),
                             pipeline_mode=resident),                            # b2
            ],
            out_specs=pl.BlockSpec((batch_tile, D_out), lambda i: (i, 0)),
        ),
        compiler_params=pltpu.CompilerParams(
            dimension_semantics=("parallel",),
            vmem_limit_bytes=vmem_limit,
        ),
        cost_estimate=cost,
    )(x, w1, b1, wt, bt, w2, b2)


def init_params(key, input_dim):
    """Deterministic parameter init (shapes match BackBone(input_dim)).

    Weights are stored in bf16 (MXU-native, half the HBM/VMEM traffic);
    biases stay f32 to preserve the f32 accumulate path.
    """
    D = input_dim
    D_out = input_dim // 2
    keys = jax.random.split(key, 6)

    def scaled(k, shape, fan_in, dtype):
        w = jax.random.normal(k, shape, jnp.float32) / jnp.sqrt(fan_in)
        return w.astype(dtype)

    w1 = scaled(keys[0], (NUM_LAYERS, D, D), D, jnp.bfloat16)
    b1 = scaled(keys[1], (NUM_LAYERS, 1, D), D, jnp.float32)
    wt = scaled(keys[2], (D, D_out), D, jnp.bfloat16)
    bt = scaled(keys[3], (1, D_out), D, jnp.float32)
    w2 = scaled(keys[4], (NUM_LAYERS, D_out, D_out), D_out, jnp.bfloat16)
    b2 = scaled(keys[5], (NUM_LAYERS, 1, D_out), D_out, jnp.float32)
    return w1, b1, wt, bt, w2, b2


def backbone_reference_mixed(x, params):
    """Pure-JAX reference with the exact mixed-precision recipe of the kernel."""
    w1, b1, wt, bt, w2, b2 = params
    h = x.astype(jnp.bfloat16)
    for i in range(NUM_LAYERS):
        acc = jnp.dot(h, w1[i], preferred_element_type=jnp.float32) + b1[i]
        h = jnp.maximum(acc, 0.0).astype(jnp.bfloat16)
    acc = jnp.dot(h, wt, preferred_element_type=jnp.float32) + bt
    h = acc.astype(jnp.bfloat16)
    act = None
    for i in range(NUM_LAYERS):
        acc = jnp.dot(h, w2[i], preferred_element_type=jnp.float32) + b2[i]
        act = jnp.maximum(acc, 0.0)
        h = act.astype(jnp.bfloat16)
    return act


def backbone_reference_f32(x, params):
    """Full-f32 reference (same module semantics); informational only."""
    w1, b1, wt, bt, w2, b2 = params
    h = x.astype(jnp.float32)
    for i in range(NUM_LAYERS):
        h = jnp.maximum(h @ w1[i].astype(jnp.float32) + b1[i], 0.0)
    h = h @ wt.astype(jnp.float32) + bt
    for i in range(NUM_LAYERS):
        h = jnp.maximum(h @ w2[i].astype(jnp.float32) + b2[i], 0.0)
    return h


if __name__ == "__main__":
    key = jax.random.PRNGKey(0)
    k_x, k_p = jax.random.split(key)

    # Small but MXU-friendly shapes: D=256 (D//2=128 keeps lanes dense),
    # B=256 -> >=2 grid steps per TensorCore on the "parallel" batch axis.
    B, D = 256, 256
    x = jax.random.normal(k_x, (B, D), jnp.float32)
    params = init_params(k_p, D)

    out = backbone_forward(x, params)
    out = jax.block_until_ready(out)

    assert out.shape == (B, D // 2)

    # Exact-recipe check (bf16 matmuls, f32 accumulate) -- tight tolerance.
    ref_mixed = backbone_reference_mixed(x, params)
    assert jnp.allclose(out, ref_mixed, atol=1e-3, rtol=1e-3), \
        "mismatch vs mixed-precision reference"

    # Informational sanity bound vs the full-f32 module semantics (bf16 rounding only).
    ref_f32 = backbone_reference_f32(x, params)
    max_dev = float(jnp.max(jnp.abs(out - ref_f32)))
    assert max_dev < 0.25, f"kernel deviates too far from f32 reference: {max_dev}"

    print("KERNEL_OK")
</pallas_src>

<mosaic_0001>
module attributes {stable_mosaic.version = 11 : i64} {
  func.func @backbone_kernel(%arg0: i32, %arg1: memref<128x256xf32, #tpu.memory_space<vmem>>, %arg2: memref<5x256x256xbf16, #tpu.memory_space<vmem>>, %arg3: memref<5x1x256xf32, #tpu.memory_space<vmem>>, %arg4: memref<256x128xbf16, #tpu.memory_space<vmem>>, %arg5: memref<1x128xf32, #tpu.memory_space<vmem>>, %arg6: memref<5x128x128xbf16, #tpu.memory_space<vmem>>, %arg7: memref<5x1x128xf32, #tpu.memory_space<vmem>>, %arg8: memref<128x128xf32, #tpu.memory_space<vmem>>) attributes {dimension_semantics = [#tpu.dimension_semantics<parallel>], iteration_bounds = array<i64: 2>, scalar_prefetch = 0 : i64, scratch_operands = 0 : i64, tpu.core_type = #tpu.core_type<tc>, window_params = [{transform_indices = @transform_0, window_bounds = array<i64: 128, 256>}, {pipeline_mode = #tpu.pipeline_mode<synchronous>, transform_indices = @transform_1, window_bounds = array<i64: 5, 256, 256>}, {pipeline_mode = #tpu.pipeline_mode<synchronous>, transform_indices = @transform_2, window_bounds = array<i64: 5, 1, 256>}, {pipeline_mode = #tpu.pipeline_mode<synchronous>, transform_indices = @transform_3, window_bounds = array<i64: 256, 128>}, {pipeline_mode = #tpu.pipeline_mode<synchronous>, transform_indices = @transform_4, window_bounds = array<i64: 1, 128>}, {pipeline_mode = #tpu.pipeline_mode<synchronous>, transform_indices = @transform_5, window_bounds = array<i64: 5, 128, 128>}, {pipeline_mode = #tpu.pipeline_mode<synchronous>, transform_indices = @transform_6, window_bounds = array<i64: 5, 1, 128>}, {transform_indices = @transform_7, window_bounds = array<i64: 128, 128>}]} {
    %c0 = arith.constant 0 : index
    %c0_0 = arith.constant 0 : index
    %0 = vector.load %arg1[%c0, %c0_0] : memref<128x256xf32, #tpu.memory_space<vmem>>, vector<128x256xf32>
    %1 = arith.truncf %0 : vector<128x256xf32> to vector<128x256xbf16>
    %c0_1 = arith.constant 0 : index
    %c0_2 = arith.constant 0 : index
    %c0_3 = arith.constant 0 : index
    %2 = vector.load %arg2[%c0_1, %c0_2, %c0_3] : memref<5x256x256xbf16, #tpu.memory_space<vmem>>, vector<1x256x256xbf16>
    %3 = vector.shape_cast %2 : vector<1x256x256xbf16> to vector<256x256xbf16>
    %cst = arith.constant dense<0.000000e+00> : vector<128x256xf32>
    %4 = tpu.matmul %1, %3, %cst {dimension_numbers = #tpu.dot_dimension_numbers<[1], [0], [0], [1], [0, 0, 1, 1], [], []>} : vector<128x256xbf16>, vector<256x256xbf16>, vector<128x256xf32> -> vector<128x256xf32>
    %c0_4 = arith.constant 0 : index
    %c0_5 = arith.constant 0 : index
    %c0_6 = arith.constant 0 : index
    %5 = vector.load %arg3[%c0_4, %c0_5, %c0_6] : memref<5x1x256xf32, #tpu.memory_space<vmem>>, vector<1x1x256xf32>
    %6 = vector.shape_cast %5 : vector<1x1x256xf32> to vector<1x256xf32>
    %7 = vector.broadcast %6 : vector<1x256xf32> to vector<128x256xf32>
    %8 = arith.addf %4, %7 : vector<128x256xf32>
    %cst_7 = arith.constant 0.000000e+00 : f32
    %9 = vector.broadcast %cst_7 : f32 to vector<128x256xf32>
    %10 = arith.maximumf %8, %9 : vector<128x256xf32>
    %11 = arith.truncf %10 : vector<128x256xf32> to vector<128x256xbf16>
    %c1 = arith.constant 1 : index
    %c0_8 = arith.constant 0 : index
    %c0_9 = arith.constant 0 : index
    %12 = vector.load %arg2[%c1, %c0_8, %c0_9] : memref<5x256x256xbf16, #tpu.memory_space<vmem>>, vector<1x256x256xbf16>
    %13 = vector.shape_cast %12 : vector<1x256x256xbf16> to vector<256x256xbf16>
    %cst_10 = arith.constant dense<0.000000e+00> : vector<128x256xf32>
    %14 = tpu.matmul %11, %13, %cst_10 {dimension_numbers = #tpu.dot_dimension_numbers<[1], [0], [0], [1], [0, 0, 1, 1], [], []>} : vector<128x256xbf16>, vector<256x256xbf16>, vector<128x256xf32> -> vector<128x256xf32>
    %c1_11 = arith.constant 1 : index
    %c0_12 = arith.constant 0 : index
    %c0_13 = arith.constant 0 : index
    %15 = vector.load %arg3[%c1_11, %c0_12, %c0_13] : memref<5x1x256xf32, #tpu.memory_space<vmem>>, vector<1x1x256xf32>
    %16 = vector.shape_cast %15 : vector<1x1x256xf32> to vector<1x256xf32>
    %17 = vector.broadcast %16 : vector<1x256xf32> to vector<128x256xf32>
    %18 = arith.addf %14, %17 : vector<128x256xf32>
    %cst_14 = arith.constant 0.000000e+00 : f32
    %19 = vector.broadcast %cst_14 : f32 to vector<128x256xf32>
    %20 = arith.maximumf %18, %19 : vector<128x256xf32>
    %21 = arith.truncf %20 : vector<128x256xf32> to vector<128x256xbf16>
    %c2 = arith.constant 2 : index
    %c0_15 = arith.constant 0 : index
    %c0_16 = arith.constant 0 : index
    %22 = vector.load %arg2[%c2, %c0_15, %c0_16] : memref<5x256x256xbf16, #tpu.memory_space<vmem>>, vector<1x256x256xbf16>
    %23 = vector.shape_cast %22 : vector<1x256x256xbf16> to vector<256x256xbf16>
    %cst_17 = arith.constant dense<0.000000e+00> : vector<128x256xf32>
    %24 = tpu.matmul %21, %23, %cst_17 {dimension_numbers = #tpu.dot_dimension_numbers<[1], [0], [0], [1], [0, 0, 1, 1], [], []>} : vector<128x256xbf16>, vector<256x256xbf16>, vector<128x256xf32> -> vector<128x256xf32>
    %c2_18 = arith.constant 2 : index
    %c0_19 = arith.constant 0 : index
    %c0_20 = arith.constant 0 : index
    %25 = vector.load %arg3[%c2_18, %c0_19, %c0_20] : memref<5x1x256xf32, #tpu.memory_space<vmem>>, vector<1x1x256xf32>
    %26 = vector.shape_cast %25 : vector<1x1x256xf32> to vector<1x256xf32>
    %27 = vector.broadcast %26 : vector<1x256xf32> to vector<128x256xf32>
    %28 = arith.addf %24, %27 : vector<128x256xf32>
    %cst_21 = arith.constant 0.000000e+00 : f32
    %29 = vector.broadcast %cst_21 : f32 to vector<128x256xf32>
    %30 = arith.maximumf %28, %29 : vector<128x256xf32>
    %31 = arith.truncf %30 : vector<128x256xf32> to vector<128x256xbf16>
    %c3 = arith.constant 3 : index
    %c0_22 = arith.constant 0 : index
    %c0_23 = arith.constant 0 : index
    %32 = vector.load %arg2[%c3, %c0_22, %c0_23] : memref<5x256x256xbf16, #tpu.memory_space<vmem>>, vector<1x256x256xbf16>
    %33 = vector.shape_cast %32 : vector<1x256x256xbf16> to vector<256x256xbf16>
    %cst_24 = arith.constant dense<0.000000e+00> : vector<128x256xf32>
    %34 = tpu.matmul %31, %33, %cst_24 {dimension_numbers = #tpu.dot_dimension_numbers<[1], [0], [0], [1], [0, 0, 1, 1], [], []>} : vector<128x256xbf16>, vector<256x256xbf16>, vector<128x256xf32> -> vector<128x256xf32>
    %c3_25 = arith.constant 3 : index
    %c0_26 = arith.constant 0 : index
    %c0_27 = arith.constant 0 : index
    %35 = vector.load %arg3[%c3_25, %c0_26, %c0_27] : memref<5x1x256xf32, #tpu.memory_space<vmem>>, vector<1x1x256xf32>
    %36 = vector.shape_cast %35 : vector<1x1x256xf32> to vector<1x256xf32>
    %37 = vector.broadcast %36 : vector<1x256xf32> to vector<128x256xf32>
    %38 = arith.addf %34, %37 : vector<128x256xf32>
    %cst_28 = arith.constant 0.000000e+00 : f32
    %39 = vector.broadcast %cst_28 : f32 to vector<128x256xf32>
    %40 = arith.maximumf %38, %39 : vector<128x256xf32>
    %41 = arith.truncf %40 : vector<128x256xf32> to vector<128x256xbf16>
    %c4 = arith.constant 4 : index
    %c0_29 = arith.constant 0 : index
    %c0_30 = arith.constant 0 : index
    %42 = vector.load %arg2[%c4, %c0_29, %c0_30] : memref<5x256x256xbf16, #tpu.memory_space<vmem>>, vector<1x256x256xbf16>
    %43 = vector.shape_cast %42 : vector<1x256x256xbf16> to vector<256x256xbf16>
    %cst_31 = arith.constant dense<0.000000e+00> : vector<128x256xf32>
    %44 = tpu.matmul %41, %43, %cst_31 {dimension_numbers = #tpu.dot_dimension_numbers<[1], [0], [0], [1], [0, 0, 1, 1], [], []>} : vector<128x256xbf16>, vector<256x256xbf16>, vector<128x256xf32> -> vector<128x256xf32>
    %c4_32 = arith.constant 4 : index
    %c0_33 = arith.constant 0 : index
    %c0_34 = arith.constant 0 : index
    %45 = vector.load %arg3[%c4_32, %c0_33, %c0_34] : memref<5x1x256xf32, #tpu.memory_space<vmem>>, vector<1x1x256xf32>
    %46 = vector.shape_cast %45 : vector<1x1x256xf32> to vector<1x256xf32>
    %47 = vector.broadcast %46 : vector<1x256xf32> to vector<128x256xf32>
    %48 = arith.addf %44, %47 : vector<128x256xf32>
    %cst_35 = arith.constant 0.000000e+00 : f32
    %49 = vector.broadcast %cst_35 : f32 to vector<128x256xf32>
    %50 = arith.maximumf %48, %49 : vector<128x256xf32>
    %51 = arith.truncf %50 : vector<128x256xf32> to vector<128x256xbf16>
    %c0_36 = arith.constant 0 : index
    %c0_37 = arith.constant 0 : index
    %52 = vector.load %arg4[%c0_36, %c0_37] : memref<256x128xbf16, #tpu.memory_space<vmem>>, vector<256x128xbf16>
    %cst_38 = arith.constant dense<0.000000e+00> : vector<128x128xf32>
    %53 = tpu.matmul %51, %52, %cst_38 {dimension_numbers = #tpu.dot_dimension_numbers<[1], [0], [0], [1], [0, 0, 1, 1], [], []>} : vector<128x256xbf16>, vector<256x128xbf16>, vector<128x128xf32> -> vector<128x128xf32>
    %c0_39 = arith.constant 0 : index
    %c0_40 = arith.constant 0 : index
    %54 = vector.load %arg5[%c0_39, %c0_40] : memref<1x128xf32, #tpu.memory_space<vmem>>, vector<1x128xf32>
    %55 = vector.broadcast %54 : vector<1x128xf32> to vector<128x128xf32>
    %56 = arith.addf %53, %55 : vector<128x128xf32>
    %57 = arith.truncf %56 : vector<128x128xf32> to vector<128x128xbf16>
    %c0_41 = arith.constant 0 : index
    %c0_42 = arith.constant 0 : index
    %c0_43 = arith.constant 0 : index
    %58 = vector.load %arg6[%c0_41, %c0_42, %c0_43] : memref<5x128x128xbf16, #tpu.memory_space<vmem>>, vector<1x128x128xbf16>
    %59 = vector.shape_cast %58 : vector<1x128x128xbf16> to vector<128x128xbf16>
    %cst_44 = arith.constant dense<0.000000e+00> : vector<128x128xf32>
    %60 = tpu.matmul %57, %59, %cst_44 {dimension_numbers = #tpu.dot_dimension_numbers<[1], [0], [0], [1], [0, 0, 1, 1], [], []>} : vector<128x128xbf16>, vector<128x128xbf16>, vector<128x128xf32> -> vector<128x128xf32>
    %c0_45 = arith.constant 0 : index
    %c0_46 = arith.constant 0 : index
    %c0_47 = arith.constant 0 : index
    %61 = vector.load %arg7[%c0_45, %c0_46, %c0_47] : memref<5x1x128xf32, #tpu.memory_space<vmem>>, vector<1x1x128xf32>
    %62 = vector.shape_cast %61 : vector<1x1x128xf32> to vector<1x128xf32>
    %63 = vector.broadcast %62 : vector<1x128xf32> to vector<128x128xf32>
    %64 = arith.addf %60, %63 : vector<128x128xf32>
    %cst_48 = arith.constant 0.000000e+00 : f32
    %65 = vector.broadcast %cst_48 : f32 to vector<128x128xf32>
    %66 = arith.maximumf %64, %65 : vector<128x128xf32>
    %67 = arith.truncf %66 : vector<128x128xf32> to vector<128x128xbf16>
    %c1_49 = arith.constant 1 : index
    %c0_50 = arith.constant 0 : index
    %c0_51 = arith.constant 0 : index
    %68 = vector.load %arg6[%c1_49, %c0_50, %c0_51] : memref<5x128x128xbf16, #tpu.memory_space<vmem>>, vector<1x128x128xbf16>
    %69 = vector.shape_cast %68 : vector<1x128x128xbf16> to vector<128x128xbf16>
    %cst_52 = arith.constant dense<0.000000e+00> : vector<128x128xf32>
    %70 = tpu.matmul %67, %69, %cst_52 {dimension_numbers = #tpu.dot_dimension_numbers<[1], [0], [0], [1], [0, 0, 1, 1], [], []>} : vector<128x128xbf16>, vector<128x128xbf16>, vector<128x128xf32> -> vector<128x128xf32>
    %c1_53 = arith.constant 1 : index
    %c0_54 = arith.constant 0 : index
    %c0_55 = arith.constant 0 : index
    %71 = vector.load %arg7[%c1_53, %c0_54, %c0_55] : memref<5x1x128xf32, #tpu.memory_space<vmem>>, vector<1x1x128xf32>
    %72 = vector.shape_cast %71 : vector<1x1x128xf32> to vector<1x128xf32>
    %73 = vector.broadcast %72 : vector<1x128xf32> to vector<128x128xf32>
    %74 = arith.addf %70, %73 : vector<128x128xf32>
    %cst_56 = arith.constant 0.000000e+00 : f32
    %75 = vector.broadcast %cst_56 : f32 to vector<128x128xf32>
    %76 = arith.maximumf %74, %75 : vector<128x128xf32>
    %77 = arith.truncf %76 : vector<128x128xf32> to vector<128x128xbf16>
    %c2_57 = arith.constant 2 : index
    %c0_58 = arith.constant 0 : index
    %c0_59 = arith.constant 0 : index
    %78 = vector.load %arg6[%c2_57, %c0_58, %c0_59] : memref<5x128x128xbf16, #tpu.memory_space<vmem>>, vector<1x128x128xbf16>
    %79 = vector.shape_cast %78 : vector<1x128x128xbf16> to vector<128x128xbf16>
    %cst_60 = arith.constant dense<0.000000e+00> : vector<128x128xf32>
    %80 = tpu.matmul %77, %79, %cst_60 {dimension_numbers = #tpu.dot_dimension_numbers<[1], [0], [0], [1], [0, 0, 1, 1], [], []>} : vector<128x128xbf16>, vector<128x128xbf16>, vector<128x128xf32> -> vector<128x128xf32>
    %c2_61 = arith.constant 2 : index
    %c0_62 = arith.constant 0 : index
    %c0_63 = arith.constant 0 : index
    %81 = vector.load %arg7[%c2_61, %c0_62, %c0_63] : memref<5x1x128xf32, #tpu.memory_space<vmem>>, vector<1x1x128xf32>
    %82 = vector.shape_cast %81 : vector<1x1x128xf32> to vector<1x128xf32>
    %83 = vector.broadcast %82 : vector<1x128xf32> to vector<128x128xf32>
    %84 = arith.addf %80, %83 : vector<128x128xf32>
    %cst_64 = arith.constant 0.000000e+00 : f32
    %85 = vector.broadcast %cst_64 : f32 to vector<128x128xf32>
    %86 = arith.maximumf %84, %85 : vector<128x128xf32>
    %87 = arith.truncf %86 : vector<128x128xf32> to vector<128x128xbf16>
    %c3_65 = arith.constant 3 : index
    %c0_66 = arith.constant 0 : index
    %c0_67 = arith.constant 0 : index
    %88 = vector.load %arg6[%c3_65, %c0_66, %c0_67] : memref<5x128x128xbf16, #tpu.memory_space<vmem>>, vector<1x128x128xbf16>
    %89 = vector.shape_cast %88 : vector<1x128x128xbf16> to vector<128x128xbf16>
    %cst_68 = arith.constant dense<0.000000e+00> : vector<128x128xf32>
    %90 = tpu.matmul %87, %89, %cst_68 {dimension_numbers = #tpu.dot_dimension_numbers<[1], [0], [0], [1], [0, 0, 1, 1], [], []>} : vector<128x128xbf16>, vector<128x128xbf16>, vector<128x128xf32> -> vector<128x128xf32>
    %c3_69 = arith.constant 3 : index
    %c0_70 = arith.constant 0 : index
    %c0_71 = arith.constant 0 : index
    %91 = vector.load %arg7[%c3_69, %c0_70, %c0_71] : memref<5x1x128xf32, #tpu.memory_space<vmem>>, vector<1x1x128xf32>
    %92 = vector.shape_cast %91 : vector<1x1x128xf32> to vector<1x128xf32>
    %93 = vector.broadcast %92 : vector<1x128xf32> to vector<128x128xf32>
    %94 = arith.addf %90, %93 : vector<128x128xf32>
    %cst_72 = arith.constant 0.000000e+00 : f32
    %95 = vector.broadcast %cst_72 : f32 to vector<128x128xf32>
    %96 = arith.maximumf %94, %95 : vector<128x128xf32>
    %97 = arith.truncf %96 : vector<128x128xf32> to vector<128x128xbf16>
    %c4_73 = arith.constant 4 : index
    %c0_74 = arith.constant 0 : index
    %c0_75 = arith.constant 0 : index
    %98 = vector.load %arg6[%c4_73, %c0_74, %c0_75] : memref<5x128x128xbf16, #tpu.memory_space<vmem>>, vector<1x128x128xbf16>
    %99 = vector.shape_cast %98 : vector<1x128x128xbf16> to vector<128x128xbf16>
    %cst_76 = arith.constant dense<0.000000e+00> : vector<128x128xf32>
    %100 = tpu.matmul %97, %99, %cst_76 {dimension_numbers = #tpu.dot_dimension_numbers<[1], [0], [0], [1], [0, 0, 1, 1], [], []>} : vector<128x128xbf16>, vector<128x128xbf16>, vector<128x128xf32> -> vector<128x128xf32>
    %c4_77 = arith.constant 4 : index
    %c0_78 = arith.constant 0 : index
    %c0_79 = arith.constant 0 : index
    %101 = vector.load %arg7[%c4_77, %c0_78, %c0_79] : memref<5x1x128xf32, #tpu.memory_space<vmem>>, vector<1x1x128xf32>
    %102 = vector.shape_cast %101 : vector<1x1x128xf32> to vector<1x128xf32>
    %103 = vector.broadcast %102 : vector<1x128xf32> to vector<128x128xf32>
    %104 = arith.addf %100, %103 : vector<128x128xf32>
    %cst_80 = arith.constant 0.000000e+00 : f32
    %105 = vector.broadcast %cst_80 : f32 to vector<128x128xf32>
    %106 = arith.maximumf %104, %105 : vector<128x128xf32>
    %c0_81 = arith.constant 0 : index
    %c0_82 = arith.constant 0 : index
    %107 = vector.load %arg8[%c0_81, %c0_82] : memref<128x128xf32, #tpu.memory_space<vmem>>, vector<128x128xf32>
    tpu.vector_store %arg8[%c0_81, %c0_82], %106 {strides = array<i32>} : memref<128x128xf32, #tpu.memory_space<vmem>>, vector<128x128xf32>,
    return
  }
  func.func @transform_0(%arg0: i32) -> (i32, i32) {
    %c0_i32 = arith.constant 0 : i32
    %c0_i32_0 = arith.constant 0 : i32
    return %arg0, %c0_i32 : i32, i32
  }
  func.func @transform_1(%arg0: i32) -> (i32, i32, i32) {
    %c0_i32 = arith.constant 0 : i32
    %c0_i32_0 = arith.constant 0 : i32
    %c0_i32_1 = arith.constant 0 : i32
    %c0_i32_2 = arith.constant 0 : i32
    return %c0_i32, %c0_i32_0, %c0_i32_1 : i32, i32, i32
  }
  func.func @transform_2(%arg0: i32) -> (i32, i32, i32) {
    %c0_i32 = arith.constant 0 : i32
    %c0_i32_0 = arith.constant 0 : i32
    %c0_i32_1 = arith.constant 0 : i32
    %c0_i32_2 = arith.constant 0 : i32
    return %c0_i32, %c0_i32_0, %c0_i32_1 : i32, i32, i32
  }
  func.func @transform_3(%arg0: i32) -> (i32, i32) {
    %c0_i32 = arith.constant 0 : i32
    %c0_i32_0 = arith.constant 0 : i32
    %c0_i32_1 = arith.constant 0 : i32
    return %c0_i32, %c0_i32_0 : i32, i32
  }
  func.func @transform_4(%arg0: i32) -> (i32, i32) {
    %c0_i32 = arith.constant 0 : i32
    %c0_i32_0 = arith.constant 0 : i32
    %c0_i32_1 = arith.constant 0 : i32
    return %c0_i32, %c0_i32_0 : i32, i32
  }
  func.func @transform_5(%arg0: i32) -> (i32, i32, i32) {
    %c0_i32 = arith.constant 0 : i32
    %c0_i32_0 = arith.constant 0 : i32
    %c0_i32_1 = arith.constant 0 : i32
    %c0_i32_2 = arith.constant 0 : i32
    return %c0_i32, %c0_i32_0, %c0_i32_1 : i32, i32, i32
  }
  func.func @transform_6(%arg0: i32) -> (i32, i32, i32) {
    %c0_i32 = arith.constant 0 : i32
    %c0_i32_0 = arith.constant 0 : i32
    %c0_i32_1 = arith.constant 0 : i32
    %c0_i32_2 = arith.constant 0 : i32
    return %c0_i32, %c0_i32_0, %c0_i32_1 : i32, i32, i32
  }
  func.func @transform_7(%arg0: i32) -> (i32, i32) {
    %c0_i32 = arith.constant 0 : i32
    %c0_i32_0 = arith.constant 0 : i32
    return %arg0, %c0_i32 : i32, i32
  }
}

</mosaic_0001>

<llo_original>
// kernel: tpu_custom_call.1
$region0: #{tpu_custom_call.1}
  #allocation0 [shape = 'u32[]', space=smem, size = 0x4, offset = 0x4, fixed_abs, tag = 'smem constant byte address 0x4 - core index']
  #allocation1 [shape = 'u32[72,128]{1,0:T(1,128)}', space=vmem, size = 0x9000, scoped, tag = 'internal scratch']
  %s0 = inlined_call_operand.hbm [shape: f32[256,256], index: 0, kind: input, shape index: {}]
  %s1 = inlined_call_operand.hbm [shape: bf16[5,256,256], index: 1, kind: input, shape index: {}]
  %s2 = inlined_call_operand.hbm [shape: f32[5,1,256], index: 2, kind: input, shape index: {}]
  %s3 = inlined_call_operand.hbm [shape: bf16[256,128], index: 3, kind: input, shape index: {}]
  %s4 = inlined_call_operand.hbm [shape: f32[1,128], index: 4, kind: input, shape index: {}]
  %s5 = inlined_call_operand.hbm [shape: bf16[5,128,128], index: 5, kind: input, shape index: {}]
  %s6 = inlined_call_operand.vmem [shape: f32[5,1,128], index: 6, kind: input, shape index: {}]
  %s7 = inlined_call_operand.hbm [shape: f32[256,128], index: 7, kind: output, shape index: {}]
  %s8 = sld [smem:[#allocation0]]
  $region85: #{tpu_custom_call.1} parent=0
    _
  %s10 = ssub.s32 1, %s8
  %s11 = scalar_select 0, %s10, %s8
  $region1: #{tpu_custom_call.1} parent=0
    #allocation2 [shape = 'u8[262144]{0}', space=vmem, size = 0x40000, scoped, tag = 'input window, operand 0']
    #allocation3 [shape = 's32[2]{0}', space=sflag, size = 0x8, scoped, tag = 'scoped memory for tpu_custom_call.1']
    #allocation4 [shape = 's32[2]{0}', space=sflag, size = 0x8, scoped, tag = 'scoped memory for tpu_custom_call.1']
    #allocation5 [shape = 'u8[655360]{0}', space=vmem, size = 0xa0000, scoped, tag = 'input window, operand 1, single buffered']
    #allocation6 [shape = 's32[1]{0}', space=sflag, size = 0x4, scoped, tag = 'scoped memory for tpu_custom_call.1']
    #allocation7 [shape = 'u8[5120]{0}', space=vmem, size = 0x1400, scoped, tag = 'input window, operand 2, single buffered']
    #allocation8 [shape = 'u8[65536]{0}', space=vmem, size = 0x10000, scoped, tag = 'input window, operand 3, single buffered']
    #allocation9 [shape = 's32[1]{0}', space=sflag, size = 0x4, scoped, tag = 'scoped memory for tpu_custom_call.1']
    #allocation10 [shape = 'u8[512]{0}', space=vmem, size = 0x400, scoped, tag = 'input window, operand 4, single buffered']
    #allocation11 [shape = 'u8[163840]{0}', space=vmem, size = 0x28000, scoped, tag = 'input window, operand 5, single buffered']
    #allocation12 [shape = 's32[1]{0}', space=sflag, size = 0x4, scoped, tag = 'scoped memory for tpu_custom_call.1']
    #allocation13 [shape = 'u8[131072]{0}', space=vmem, size = 0x20000, scoped, tag = 'output window, operand 0']
    %12 = vsyncpa [#allocation3], 0
    %s13 = scalar_lea.sflag [#allocation3], 1
    %14 = vsyncpa %s13, 0
    %15 = vsyncpa [#allocation6], 0
    %16 = vsyncpa [#allocation9], 0
    %17 = vsyncpa [#allocation12], 0
    %18 = vsyncpa [#allocation4], 0
    %s19 = scalar_lea.sflag [#allocation4], 1
    %20 = vsyncpa %s19, 0
    loop: start=0, step=1, limit=4
    $region2: #{tpu_custom_call.1} parent=1 // loop_pre_header
      _
    $region3: #{tpu_custom_call.1} parent=1 // loop_header
      %s22 = sphi 0, %s26
      %p23 = scmp.ge.s32.totalorder %s22, 4
      %s32 = sphi 0, %s34
      %s35 = sphi 0, %s32
      %s36 = sphi 0, %s35
      %s52 = sphi 0, %s36
      %s56 = sphi 0, %s56
      %s58 = sphi 0, %s56
      %s59 = sphi 0, %s58
      %s73 = sphi 0, %s59
      %s77 = sphi 0, %s77
      %s79 = sphi 0, %s77
      %s80 = sphi 0, %s79
      %s94 = sphi 0, %s80
      %s98 = sphi 0, %s98
      %s100 = sphi 0, %s98
      %s101 = sphi 0, %s100
      %s115 = sphi 0, %s101
      %s119 = sphi 0, %s119
      %s121 = sphi 0, %s119
      %s122 = sphi 0, %s121
      %s136 = sphi 0, %s122
      %s140 = sphi 0, %s140
      %s142 = sphi 0, %s140
      %s143 = sphi 0, %s142
      %s157 = sphi 0, %s143
      %s161 = sphi 0, %s161
      %s163 = sphi 0, %s161
      %s164 = sphi 0, %s163
      %s178 = sphi 0, %s164
      %s184 = sphi 0, %s186
      %s187 = sphi 0, %s184
      %s188 = sphi 0, %s187
      %s204 = sphi 0, %s188
    $region4: #{tpu_custom_call.1} parent=1 // loop_header_branch
      %25 = sbr.rel (%p23) target = $region8
    $region5: #{tpu_custom_call.1} parent=1 // loop_body
      %s27 = ssub.s32 %s22, 1
      %s28 = ssub.s32 %s22, 2
      %s29 = sadd.s32 %s22, 1
      %s30 = ssub.s32 %s22, %s29
      %p31 = scmp.eq.s32.totalorder %s30, 0
      %s33 = sadd.s32 %s32, 1
      %s34 = scalar_select %p31, %s32, %s33
      %p37 = pneg %p31
      %p38 = scmp.eq.s32.totalorder %s22, 1
      %p39 = por %p37, %p38
      %p40 = scmp.ne.s32.totalorder %s32, %s35
      %p41 = scmp.eq.s32.totalorder %s22, 0
      %p42 = por %p40, %p41
      %p43 = scmp.ne.s32.totalorder %s32, %s35
      %p44 = scmp.eq.s32.totalorder %s27, 1
      %p45 = por %p43, %p44
      %p46 = scmp.ne.s32.totalorder %s35, %s36
      %p47 = scmp.eq.s32.totalorder %s27, 0
      %p48 = por %p46, %p47
      %p49 = scmp.ne.s32.totalorder %s35, %s36
      %p50 = scmp.eq.s32.totalorder %s28, 1
      %p51 = por %p49, %p50
      %p53 = scmp.ne.s32.totalorder %s36, %s52
      %p54 = scmp.eq.s32.totalorder %s28, 0
      %p55 = por %p53, %p54
      %s57 = sadd.s32 %s56, 1
      %p60 = scmp.eq.s32.totalorder %s22, 1
      %p61 = scmp.ne.s32.totalorder %s56, %s58
      %p62 = scmp.eq.s32.totalorder %s22, 0
      %p63 = por %p61, %p62
      %p64 = scmp.ne.s32.totalorder %s56, %s58
      %p65 = scmp.eq.s32.totalorder %s27, 1
      %p66 = por %p64, %p65
      %p67 = scmp.ne.s32.totalorder %s58, %s59
      %p68 = scmp.eq.s32.totalorder %s27, 0
      %p69 = por %p67, %p68
      %p70 = scmp.ne.s32.totalorder %s58, %s59
      %p71 = scmp.eq.s32.totalorder %s28, 1
      %p72 = por %p70, %p71
      %p74 = scmp.ne.s32.totalorder %s59, %s73
      %p75 = scmp.eq.s32.totalorder %s28, 0
      %p76 = por %p74, %p75
      %s78 = sadd.s32 %s77, 1
      %p81 = scmp.eq.s32.totalorder %s22, 1
      %p82 = scmp.ne.s32.totalorder %s77, %s79
      %p83 = scmp.eq.s32.totalorder %s22, 0
      %p84 = por %p82, %p83
      %p85 = scmp.ne.s32.totalorder %s77, %s79
      %p86 = scmp.eq.s32.totalorder %s27, 1
      %p87 = por %p85, %p86
      %p88 = scmp.ne.s32.totalorder %s79, %s80
      %p89 = scmp.eq.s32.totalorder %s27, 0
      %p90 = por %p88, %p89
      %p91 = scmp.ne.s32.totalorder %s79, %s80
      %p92 = scmp.eq.s32.totalorder %s28, 1
      %p93 = por %p91, %p92
      %p95 = scmp.ne.s32.totalorder %s80, %s94
      %p96 = scmp.eq.s32.totalorder %s28, 0
      %p97 = por %p95, %p96
      %s99 = sadd.s32 %s98, 1
      %p102 = scmp.eq.s32.totalorder %s22, 1
      %p103 = scmp.ne.s32.totalorder %s98, %s100
      %p104 = scmp.eq.s32.totalorder %s22, 0
      %p105 = por %p103, %p104
      %p106 = scmp.ne.s32.totalorder %s98, %s100
      %p107 = scmp.eq.s32.totalorder %s27, 1
      %p108 = por %p106, %p107
      %p109 = scmp.ne.s32.totalorder %s100, %s101
      %p110 = scmp.eq.s32.totalorder %s27, 0
      %p111 = por %p109, %p110
      %p112 = scmp.ne.s32.totalorder %s100, %s101
      %p113 = scmp.eq.s32.totalorder %s28, 1
      %p114 = por %p112, %p113
      %p116 = scmp.ne.s32.totalorder %s101, %s115
      %p117 = scmp.eq.s32.totalorder %s28, 0
      %p118 = por %p116, %p117
      %s120 = sadd.s32 %s119, 1
      %p123 = scmp.eq.s32.totalorder %s22, 1
      %p124 = scmp.ne.s32.totalorder %s119, %s121
      %p125 = scmp.eq.s32.totalorder %s22, 0
      %p126 = por %p124, %p125
      %p127 = scmp.ne.s32.totalorder %s119, %s121
      %p128 = scmp.eq.s32.totalorder %s27, 1
      %p129 = por %p127, %p128
      %p130 = scmp.ne.s32.totalorder %s121, %s122
      %p131 = scmp.eq.s32.totalorder %s27, 0
      %p132 = por %p130, %p131
      %p133 = scmp.ne.s32.totalorder %s121, %s122
      %p134 = scmp.eq.s32.totalorder %s28, 1
      %p135 = por %p133, %p134
      %p137 = scmp.ne.s32.totalorder %s122, %s136
      %p138 = scmp.eq.s32.totalorder %s28, 0
      %p139 = por %p137, %p138
      %s141 = sadd.s32 %s140, 1
      %p144 = scmp.eq.s32.totalorder %s22, 1
      %p145 = scmp.ne.s32.totalorder %s140, %s142
      %p146 = scmp.eq.s32.totalorder %s22, 0
      %p147 = por %p145, %p146
      %p148 = scmp.ne.s32.totalorder %s140, %s142
      %p149 = scmp.eq.s32.totalorder %s27, 1
      %p150 = por %p148, %p149
      %p151 = scmp.ne.s32.totalorder %s142, %s143
      %p152 = scmp.eq.s32.totalorder %s27, 0
      %p153 = por %p151, %p152
      %p154 = scmp.ne.s32.totalorder %s142, %s143
      %p155 = scmp.eq.s32.totalorder %s28, 1
      %p156 = por %p154, %p155
      %p158 = scmp.ne.s32.totalorder %s143, %s157
      %p159 = scmp.eq.s32.totalorder %s28, 0
      %p160 = por %p158, %p159
      %s162 = sadd.s32 %s161, 1
      %p165 = scmp.eq.s32.totalorder %s22, 1
      %p166 = scmp.ne.s32.totalorder %s161, %s163
      %p167 = scmp.eq.s32.totalorder %s22, 0
      %p168 = por %p166, %p167
      %p169 = scmp.ne.s32.totalorder %s161, %s163
      %p170 = scmp.eq.s32.totalorder %s27, 1
      %p171 = por %p169, %p170
      %p172 = scmp.ne.s32.totalorder %s163, %s164
      %p173 = scmp.eq.s32.totalorder %s27, 0
      %p174 = por %p172, %p173
      %p175 = scmp.ne.s32.totalorder %s163, %s164
      %p176 = scmp.eq.s32.totalorder %s28, 1
      %p177 = por %p175, %p176
      %p179 = scmp.ne.s32.totalorder %s164, %s178
      %p180 = scmp.eq.s32.totalorder %s28, 0
      %p181 = por %p179, %p180
      %s182 = ssub.s32 %s22, %s29
      %p183 = scmp.eq.s32.totalorder %s182, 0
      %s185 = sadd.s32 %s184, 1
      %s186 = scalar_select %p183, %s184, %s185
      %p189 = pneg %p183
      %p190 = scmp.eq.s32.totalorder %s22, 1
      %p191 = por %p189, %p190
      %p192 = scmp.ne.s32.totalorder %s184, %s187
      %p193 = scmp.eq.s32.totalorder %s22, 0
      %p194 = por %p192, %p193
      %p195 = scmp.ne.s32.totalorder %s184, %s187
      %p196 = scmp.eq.s32.totalorder %s27, 1
      %p197 = por %p195, %p196
      %p198 = scmp.ne.s32.totalorder %s187, %s188
      %p199 = scmp.eq.s32.totalorder %s27, 0
      %p200 = por %p198, %p199
      %p201 = scmp.ne.s32.totalorder %s187, %s188
      %p202 = scmp.eq.s32.totalorder %s28, 1
      %p203 = por %p201, %p202
      %p205 = scmp.ne.s32.totalorder %s188, %s204
      %p206 = scmp.eq.s32.totalorder %s28, 0
      %p207 = por %p205, %p206
      %p208 = scmp.le.s32.totalorder 1, %s22
      %p209 = scmp.lt.s32.totalorder %s22, 3
      %p210 = pnand %p208, %p209
      %p211 = pneg %p210
      // Predicated region
      $region9: #{tpu_custom_call.1} parent=5 // pred_check
        _
      $region10: #{tpu_custom_call.1} parent=5 // pred_check_branch
        %213 = sbr.rel (%p210) target = $region12
      $region11: #{tpu_custom_call.1} parent=5 // pred_region
        %s214 = ssub.s32 %s22, 1
        // Predicated region
        $region13: #{tpu_custom_call.1} parent=11 // pred_check
          %p215 = pneg %p69
        $region14: #{tpu_custom_call.1} parent=11 // pred_check_branch
          %217 = sbr.rel (%p215) target = $region16
        $region15: #{tpu_custom_call.1} parent=11 // pred_region
          %219 = vsyncadd [#allocation6], 0
          %s220 = sshll.u32 %s1, 4
          %s221 = int_to_ptr.hbm [resolvable:$true] %s220
          %s222 = sshll.u32 [#allocation5], 4
          %s223 = int_to_ptr.vmem [resolvable:$true] %s222
          %228 = dma.hbm_to_vmem [thread:$0]  %s221, 20480, %s223, [#allocation6], 128, 128, 8
        $region16: #{tpu_custom_call.1} parent=11 // pred_fallthru
          _
        // Predicated region
        $region17: #{tpu_custom_call.1} parent=11 // pred_check
          %p229 = pneg %p90
        $region18: #{tpu_custom_call.1} parent=11 // pred_check_branch
          %231 = sbr.rel (%p229) target = $region20
        $region19: #{tpu_custom_call.1} parent=11 // pred_region
          %233 = vsyncadd [#allocation6], 0
          %s234 = sshll.u32 %s2, 4
          %s235 = int_to_ptr.hbm [resolvable:$true] %s234
          %s236 = sshll.u32 [#allocation7], 4
          %s237 = int_to_ptr.vmem [resolvable:$true] %s236
          %242 = dma.hbm_to_vmem [thread:$0]  %s235, 160, %s237, [#allocation6], 32, 32, 2
        $region20: #{tpu_custom_call.1} parent=11 // pred_fallthru
          _
        // Predicated region
        $region21: #{tpu_custom_call.1} parent=11 // pred_check
          %p243 = pneg %p111
        $region22: #{tpu_custom_call.1} parent=11 // pred_check_branch
          %245 = sbr.rel (%p243) target = $region24
        $region23: #{tpu_custom_call.1} parent=11 // pred_region
          %247 = vsyncadd [#allocation9], 0
          %s248 = sshll.u32 %s3, 4
          %s249 = int_to_ptr.hbm [resolvable:$true] %s248
          %s250 = sshll.u32 [#allocation8], 4
          %s251 = int_to_ptr.vmem [resolvable:$true] %s250
          %256 = dma.hbm_to_vmem [thread:$0]  %s249, 2048, %s251, [#allocation9], 64, 64, 4
        $region24: #{tpu_custom_call.1} parent=11 // pred_fallthru
          _
        // Predicated region
        $region25: #{tpu_custom_call.1} parent=11 // pred_check
          %p257 = pneg %p132
        $region26: #{tpu_custom_call.1} parent=11 // pred_check_branch
          %259 = sbr.rel (%p257) target = $region28
        $region27: #{tpu_custom_call.1} parent=11 // pred_region
          %261 = vsyncadd [#allocation9], 0
          %s263 = sshll.u32 %s4, 4
          %s264 = int_to_ptr.hbm [resolvable:$true] %s263
          %s265 = sshll.u32 [#allocation10], 4
          %s266 = int_to_ptr.vmem [resolvable:$true] %s265
          %268 = dma.hbm_to_vmem [thread:$0]  %s264, 16, %s266, [#allocation9]
        $region28: #{tpu_custom_call.1} parent=11 // pred_fallthru
          _
        // Predicated region
        $region29: #{tpu_custom_call.1} parent=11 // pred_check
          %p269 = pneg %p153
        $region30: #{tpu_custom_call.1} parent=11 // pred_check_branch
          %271 = sbr.rel (%p269) target = $region32
        $region31: #{tpu_custom_call.1} parent=11 // pred_region
          %273 = vsyncadd [#allocation12], 0
          %s274 = sshll.u32 %s5, 4
          %s275 = int_to_ptr.hbm [resolvable:$true] %s274
          %s276 = sshll.u32 [#allocation11], 4
          %s277 = int_to_ptr.vmem [resolvable:$true] %s276
          %282 = dma.hbm_to_vmem [thread:$0]  %s275, 5120, %s277, [#allocation12], 64, 64, 4
        $region32: #{tpu_custom_call.1} parent=11 // pred_fallthru
          _
        // Predicated region
        $region33: #{tpu_custom_call.1} parent=11 // pred_check
          %p283 = pneg %p174
        $region34: #{tpu_custom_call.1} parent=11 // pred_check_branch
          %285 = sbr.rel (%p283) target = $region36
        $region35: #{tpu_custom_call.1} parent=11 // pred_region
          _
        $region36: #{tpu_custom_call.1} parent=11 // pred_fallthru
          _
      $region12: #{tpu_custom_call.1} parent=5 // pred_fallthru
        _
      %p286 = scmp.lt.s32.totalorder %s22, 2
      // Predicated region
      $region37: #{tpu_custom_call.1} parent=5 // pred_check
        %p287 = pneg %p286
      $region38: #{tpu_custom_call.1} parent=5 // pred_check_branch
        %289 = sbr.rel (%p287) target = $region40
      $region39: #{tpu_custom_call.1} parent=5 // pred_region
        // Predicated region
        $region41: #{tpu_custom_call.1} parent=39 // pred_check
          %p290 = pneg %p42
        $region42: #{tpu_custom_call.1} parent=39 // pred_check_branch
          %292 = sbr.rel (%p290) target = $region44
        $region43: #{tpu_custom_call.1} parent=39 // pred_region
          %s293 = sand.u32 %s32, 1
          %s294 = scalar_lea.sflag [#allocation3], %s293
          %s295 = sand.u32 %s32, 1
          %s296 = smul.addr %s295, 256
          %s297 = scalar_lea.vmem [#allocation2], %s296
          %s298 = smul.u32 16, %s22
          %300 = vsyncadd %s294, 0
          %s301 = smul.addr %s298, 2
          %s302 = smul.addr %s301, 8
          %s303 = scalar_lea.hbm %s0, %s302
          %s304 = sshll.u32 %s303, 4
          %s305 = int_to_ptr.hbm [resolvable:$true] %s304
          %s306 = sshll.u32 %s297, 4
          %s307 = int_to_ptr.vmem [resolvable:$true] %s306
          %312 = dma.hbm_to_vmem [thread:$0]  %s305, 4096, %s307, %s294, 256, 256, 16
        $region44: #{tpu_custom_call.1} parent=39 // pred_fallthru
          _
      $region40: #{tpu_custom_call.1} parent=5 // pred_fallthru
        _
      %p313 = scmp.le.s32.totalorder 1, %s22
      %p314 = scmp.lt.s32.totalorder %s22, 3
      %p315 = pnand %p313, %p314
      %p316 = pneg %p315
      // Predicated region
      $region45: #{tpu_custom_call.1} parent=5 // pred_check
        _
      $region46: #{tpu_custom_call.1} parent=5 // pred_check_branch
        %318 = sbr.rel (%p315) target = $region48
      $region47: #{tpu_custom_call.1} parent=5 // pred_region
        %s319 = ssub.s32 %s22, 1
        %s320 = sand.u32 %s35, 1
        %s321 = scalar_lea.sflag [#allocation3], %s320
        %s322 = sand.u32 %s35, 1
        %s323 = smul.addr %s322, 256
        %s324 = scalar_lea.vmem [#allocation2], %s323
        // Predicated region
        $region49: #{tpu_custom_call.1} parent=47 // pred_check
          %p325 = pneg %p48
        $region50: #{tpu_custom_call.1} parent=47 // pred_check_branch
          %327 = sbr.rel (%p325) target = $region52
        $region51: #{tpu_custom_call.1} parent=47 // pred_region
          %329 = dma.done %s321, 4096
        $region52: #{tpu_custom_call.1} parent=47 // pred_fallthru
          _
        // Predicated region
        $region53: #{tpu_custom_call.1} parent=47 // pred_check
          %p330 = pneg %p69
        $region54: #{tpu_custom_call.1} parent=47 // pred_check_branch
          %332 = sbr.rel (%p330) target = $region56
        $region55: #{tpu_custom_call.1} parent=47 // pred_region
          %334 = dma.done [#allocation6], 20480
        $region56: #{tpu_custom_call.1} parent=47 // pred_fallthru
          _
        // Predicated region
        $region57: #{tpu_custom_call.1} parent=47 // pred_check
          %p335 = pneg %p90
        $region58: #{tpu_custom_call.1} parent=47 // pred_check_branch
          %337 = sbr.rel (%p335) target = $region60
        $region59: #{tpu_custom_call.1} parent=47 // pred_region
          %339 = dma.done [#allocation6], 160
        $region60: #{tpu_custom_call.1} parent=47 // pred_fallthru
          _
        // Predicated region
        $region61: #{tpu_custom_call.1} parent=47 // pred_check
          %p340 = pneg %p111
        $region62: #{tpu_custom_call.1} parent=47 // pred_check_branch
          %342 = sbr.rel (%p340) target = $region64
        $region63: #{tpu_custom_call.1} parent=47 // pred_region
          %344 = dma.done [#allocation9], 2048
        $region64: #{tpu_custom_call.1} parent=47 // pred_fallthru
          _
        // Predicated region
        $region65: #{tpu_custom_call.1} parent=47 // pred_check
          %p345 = pneg %p132
        $region66: #{tpu_custom_call.1} parent=47 // pred_check_branch
          %347 = sbr.rel (%p345) target = $region68
        $region67: #{tpu_custom_call.1} parent=47 // pred_region
          %349 = dma.done [#allocation9], 16
        $region68: #{tpu_custom_call.1} parent=47 // pred_fallthru
          _
        // Predicated region
        $region69: #{tpu_custom_call.1} parent=47 // pred_check
          %p350 = pneg %p153
        $region70: #{tpu_custom_call.1} parent=47 // pred_check_branch
          %352 = sbr.rel (%p350) target = $region72
        $region71: #{tpu_custom_call.1} parent=47 // pred_region
          %354 = dma.done [#allocation12], 5120
        $region72: #{tpu_custom_call.1} parent=47 // pred_fallthru
          _
        %s355 = sand.u32 %s35, 1
        %s356 = scalar_lea.sflag [#allocation3], %s355
        %s357 = sand.u32 %s35, 1
        %s358 = smul.addr %s357, 256
        %s359 = scalar_lea.vmem [#allocation2], %s358
        %p360 = pneg %p48
        %p361 = pneg %p45
        %p362 = pneg %p69
        %p363 = pneg %p66
        %p364 = pneg %p90
        %p365 = pneg %p87
        %p366 = pneg %p111
        %p367 = pneg %p108
        %p368 = pneg %p132
        %p369 = pneg %p129
        %p370 = pneg %p153
        %p371 = pneg %p150
        %p372 = pneg %p174
        %p373 = pneg %p171
        %p374 = pneg %p200
        %p375 = pneg %p197
        %s376 = sand.u32 %s187, 1
        %s377 = scalar_lea.sflag [#allocation4], %s376
        %s378 = sand.u32 %s187, 1
        %s379 = smul.addr %s378, 128
        %s380 = scalar_lea.vmem [#allocation13], %s379
        %s381 = smul.u32 16, %s27
        %s382 = smul.u32 16, %s27
        %v383 = vld [vmem:[%s324] sm:$0xff]
        %v384 = vld [vmem:[%s324 + $0x8] sm:$0xff]
        %v385 = vld [vmem:[%s324 + $0x10] sm:$0xff]
        %v386 = vld [vmem:[%s324 + $0x18] sm:$0xff]
        %v387 = vld [vmem:[%s324 + $0x20] sm:$0xff]
        %v388 = vld [vmem:[%s324 + $0x28] sm:$0xff]
        %v389 = vld [vmem:[%s324 + $0x30] sm:$0xff]
        %v390 = vld [vmem:[%s324 + $0x38] sm:$0xff]
        %v391 = vld [vmem:[%s324 + $0x40] sm:$0xff]
        %v392 = vld [vmem:[%s324 + $0x48] sm:$0xff]
        %v393 = vld [vmem:[%s324 + $0x50] sm:$0xff]
        %v394 = vld [vmem:[%s324 + $0x58] sm:$0xff]
        %v395 = vld [vmem:[%s324 + $0x60] sm:$0xff]
        %v396 = vld [vmem:[%s324 + $0x68] sm:$0xff]
        %v397 = vld [vmem:[%s324 + $0x70] sm:$0xff]
        %v398 = vld [vmem:[%s324 + $0x78] sm:$0xff]
        %v399 = vld [vmem:[%s324 + $0x80] sm:$0xff]
        %v400 = vld [vmem:[%s324 + $0x88] sm:$0xff]
        %v401 = vld [vmem:[%s324 + $0x90] sm:$0xff]
        %v402 = vld [vmem:[%s324 + $0x98] sm:$0xff]
        %v403 = vld [vmem:[%s324 + $0xa0] sm:$0xff]
        %v404 = vld [vmem:[%s324 + $0xa8] sm:$0xff]
        %v405 = vld [vmem:[%s324 + $0xb0] sm:$0xff]
        %v406 = vld [vmem:[%s324 + $0xb8] sm:$0xff]
        %v407 = vld [vmem:[%s324 + $0xc0] sm:$0xff]
        %v408 = vld [vmem:[%s324 + $0xc8] sm:$0xff]
        %v409 = vld [vmem:[%s324 + $0xd0] sm:$0xff]
        %v410 = vld [vmem:[%s324 + $0xd8] sm:$0xff]
        %v411 = vld [vmem:[%s324 + $0xe0] sm:$0xff]
        %v412 = vld [vmem:[%s324 + $0xe8] sm:$0xff]
        %v413 = vld [vmem:[%s324 + $0xf0] sm:$0xff]
        %v414 = vld [vmem:[%s324 + $0xf8] sm:$0xff]
        %v415 = vpack.c.bf16 %v385, %v383
        %v416 = vpack.c.bf16 %v386, %v384
        %v417 = vpack.c.bf16 %v389, %v387
        %v418 = vpack.c.bf16 %v390, %v388
        %v419 = vpack.c.bf16 %v393, %v391
        %v420 = vpack.c.bf16 %v394, %v392
        %v421 = vpack.c.bf16 %v397, %v395
        %v422 = vpack.c.bf16 %v398, %v396
        %v423 = vpack.c.bf16 %v401, %v399
        %v424 = vpack.c.bf16 %v402, %v400
        %v425 = vpack.c.bf16 %v405, %v403
        %v426 = vpack.c.bf16 %v406, %v404
        %v427 = vpack.c.bf16 %v409, %v407
        %v428 = vpack.c.bf16 %v410, %v408
        %v429 = vpack.c.bf16 %v413, %v411
        %v430 = vpack.c.bf16 %v414, %v412
        %v431 = vld [vmem:[#allocation5] sm:$0xff]
        %v432 = vld [vmem:[#allocation5 + $0x8] sm:$0xff]
        %v433 = vld [vmem:[#allocation5 + $0x10] sm:$0xff]
        %v434 = vld [vmem:[#allocation5 + $0x18] sm:$0xff]
        %v435 = vld [vmem:[#allocation5 + $0x20] sm:$0xff]
        %v436 = vld [vmem:[#allocation5 + $0x28] sm:$0xff]
        %v437 = vld [vmem:[#allocation5 + $0x30] sm:$0xff]
        %v438 = vld [vmem:[#allocation5 + $0x38] sm:$0xff]
        %v439 = vld [vmem:[#allocation5 + $0x40] sm:$0xff]
        %v440 = vld [vmem:[#allocation5 + $0x48] sm:$0xff]
        %v441 = vld [vmem:[#allocation5 + $0x50] sm:$0xff]
        %v442 = vld [vmem:[#allocation5 + $0x58] sm:$0xff]
        %v443 = vld [vmem:[#allocation5 + $0x60] sm:$0xff]
        %v444 = vld [vmem:[#allocation5 + $0x68] sm:$0xff]
        %v445 = vld [vmem:[#allocation5 + $0x70] sm:$0xff]
        %v446 = vld [vmem:[#allocation5 + $0x78] sm:$0xff]
        %v447 = vld [vmem:[#allocation5 + $0x80] sm:$0xff]
        %v448 = vld [vmem:[#allocation5 + $0x88] sm:$0xff]
        %v449 = vld [vmem:[#allocation5 + $0x90] sm:$0xff]
        %v450 = vld [vmem:[#allocation5 + $0x98] sm:$0xff]
        %v451 = vld [vmem:[#allocation5 + $0xa0] sm:$0xff]
        %v452 = vld [vmem:[#allocation5 + $0xa8] sm:$0xff]
        %v453 = vld [vmem:[#allocation5 + $0xb0] sm:$0xff]
        %v454 = vld [vmem:[#allocation5 + $0xb8] sm:$0xff]
        %v455 = vld [vmem:[#allocation5 + $0xc0] sm:$0xff]
        %v456 = vld [vmem:[#allocation5 + $0xc8] sm:$0xff]
        %v457 = vld [vmem:[#allocation5 + $0xd0] sm:$0xff]
        %v458 = vld [vmem:[#allocation5 + $0xd8] sm:$0xff]
        %v459 = vld [vmem:[#allocation5 + $0xe0] sm:$0xff]
        %v460 = vld [vmem:[#allocation5 + $0xe8] sm:$0xff]
        %v461 = vld [vmem:[#allocation5 + $0xf0] sm:$0xff]
        %v462 = vld [vmem:[#allocation5 + $0xf8] sm:$0xff]
        %v463 = vld [vmem:[#allocation7] sm:$0x3]
        %v465 = vperm.slane %v463, 0
        %v466 = vperm.slane %v463, 1
        %v501 = vunpack.c.l.b16 %v431
        %v502 = vunpack.c.h.b16 %v431
        %v503 = vunpack.c.l.b16 %v432
        %v504 = vunpack.c.h.b16 %v432
        %v505 = vunpack.c.l.b16 %v433
        %v506 = vunpack.c.h.b16 %v433
        %v507 = vunpack.c.l.b16 %v434
        %v508 = vunpack.c.h.b16 %v434
        %v509 = vunpack.c.l.b16 %v435
        %v510 = vunpack.c.h.b16 %v435
        %v511 = vunpack.c.l.b16 %v436
        %v512 = vunpack.c.h.b16 %v436
        %v513 = vunpack.c.l.b16 %v437
        %v514 = vunpack.c.h.b16 %v437
        %v515 = vunpack.c.l.b16 %v438
        %v516 = vunpack.c.h.b16 %v438
        %v517 = vunpack.c.l.b16 %v439
        %v518 = vunpack.c.h.b16 %v439
        %v519 = vunpack.c.l.b16 %v440
        %v520 = vunpack.c.h.b16 %v440
        %v521 = vunpack.c.l.b16 %v441
        %v522 = vunpack.c.h.b16 %v441
        %v523 = vunpack.c.l.b16 %v442
        %v524 = vunpack.c.h.b16 %v442
        %v525 = vunpack.c.l.b16 %v443
        %v526 = vunpack.c.h.b16 %v443
        %v527 = vunpack.c.l.b16 %v444
        %v528 = vunpack.c.h.b16 %v444
        %v529 = vunpack.c.l.b16 %v445
        %v530 = vunpack.c.h.b16 %v445
        %v531 = vunpack.c.l.b16 %v446
        %v532 = vunpack.c.h.b16 %v446
        %v533 = vunpack.c.l.b16 %v447
        %v534 = vunpack.c.h.b16 %v447
        %v535 = vunpack.c.l.b16 %v448
        %v536 = vunpack.c.h.b16 %v448
        %v537 = vunpack.c.l.b16 %v449
        %v538 = vunpack.c.h.b16 %v449
        %v539 = vunpack.c.l.b16 %v450
        %v540 = vunpack.c.h.b16 %v450
        %v541 = vunpack.c.l.b16 %v451
        %v542 = vunpack.c.h.b16 %v451
        %v543 = vunpack.c.l.b16 %v452
        %v544 = vunpack.c.h.b16 %v452
        %v545 = vunpack.c.l.b16 %v453
        %v546 = vunpack.c.h.b16 %v453
        %v547 = vunpack.c.l.b16 %v454
        %v548 = vunpack.c.h.b16 %v454
        %v549 = vunpack.c.l.b16 %v455
        %v550 = vunpack.c.h.b16 %v455
        %v551 = vunpack.c.l.b16 %v456
        %v552 = vunpack.c.h.b16 %v456
        %v553 = vunpack.c.l.b16 %v457
        %v554 = vunpack.c.h.b16 %v457
        %v555 = vunpack.c.l.b16 %v458
        %v556 = vunpack.c.h.b16 %v458
        %v557 = vunpack.c.l.b16 %v459
        %v558 = vunpack.c.h.b16 %v459
        %v559 = vunpack.c.l.b16 %v460
        %v560 = vunpack.c.h.b16 %v460
        %v561 = vunpack.c.l.b16 %v461
        %v562 = vunpack.c.h.b16 %v461
        %v563 = vunpack.c.l.b16 %v462
        %v564 = vunpack.c.h.b16 %v462
        %v565 = vpack.c.b16 %v503, %v501
        %v566 = vpack.c.b16 %v504, %v502
        %v567 = vpack.c.b16 %v507, %v505
        %v568 = vpack.c.b16 %v508, %v506
        %v569 = vpack.c.b16 %v511, %v509
        %v570 = vpack.c.b16 %v512, %v510
        %v571 = vpack.c.b16 %v515, %v513
        %v572 = vpack.c.b16 %v516, %v514
        %v573 = vpack.c.b16 %v519, %v517
        %v574 = vpack.c.b16 %v520, %v518
        %v575 = vpack.c.b16 %v523, %v521
        %v576 = vpack.c.b16 %v524, %v522
        %v577 = vpack.c.b16 %v527, %v525
        %v578 = vpack.c.b16 %v528, %v526
        %v579 = vpack.c.b16 %v531, %v529
        %v580 = vpack.c.b16 %v532, %v530
        %v581 = vpack.c.b16 %v535, %v533
        %v582 = vpack.c.b16 %v536, %v534
        %v583 = vpack.c.b16 %v539, %v537
        %v584 = vpack.c.b16 %v540, %v538
        %v585 = vpack.c.b16 %v543, %v541
        %v586 = vpack.c.b16 %v544, %v542
        %v587 = vpack.c.b16 %v547, %v545
        %v588 = vpack.c.b16 %v548, %v546
        %v589 = vpack.c.b16 %v551, %v549
        %v590 = vpack.c.b16 %v552, %v550
        %v591 = vpack.c.b16 %v555, %v553
        %v592 = vpack.c.b16 %v556, %v554
        %v593 = vpack.c.b16 %v559, %v557
        %v594 = vpack.c.b16 %v560, %v558
        %v595 = vpack.c.b16 %v563, %v561
        %v596 = vpack.c.b16 %v564, %v562
        %629 = vmatpush.bf16.msra.mxu0 %v579
        %630 = vmatpush.bf16.msra.mxu0 %v577
        %631 = vmatpush.bf16.msra.mxu0 %v575
        %632 = vmatpush.bf16.msra.mxu0 %v573
        %633 = vmatpush.bf16.msra.mxu0 %v571
        %634 = vmatpush.bf16.msra.mxu0 %v569
        %635 = vmatpush.bf16.msra.mxu0 %v567
        %636 = vmatpush.bf16.msra.mxu0 %v565
        %637 = vmatmul.bf16.gmra.mxu0 %v415
        %v638 = vpop.f32.mrf.mxu0
        %v639 = vadd.f32 %v465, %v638
        %v640 = vpop.f32.mrf.mxu0
        %v641 = vadd.f32 %v465, %v640
        %642 = vmatmul.bf16.gmra.mxu0 %v417
        %v643 = vpop.f32.mrf.mxu0
        %v644 = vadd.f32 %v465, %v643
        %v645 = vpop.f32.mrf.mxu0
        %v646 = vadd.f32 %v465, %v645
        %647 = vmatmul.bf16.gmra.mxu0 %v419
        %v648 = vpop.f32.mrf.mxu0
        %v649 = vadd.f32 %v465, %v648
        %v650 = vpop.f32.mrf.mxu0
        %v651 = vadd.f32 %v465, %v650
        %652 = vmatmul.bf16.gmra.mxu0 %v421
        %v653 = vpop.f32.mrf.mxu0
        %v654 = vadd.f32 %v465, %v653
        %v655 = vpop.f32.mrf.mxu0
        %v656 = vadd.f32 %v465, %v655
        %657 = vmatmul.bf16.gmra.mxu0 %v423
        %v658 = vpop.f32.mrf.mxu0
        %v659 = vadd.f32 %v465, %v658
        %v660 = vpop.f32.mrf.mxu0
        %v661 = vadd.f32 %v465, %v660
        %662 = vmatmul.bf16.gmra.mxu0 %v425
        %v663 = vpop.f32.mrf.mxu0
        %v664 = vadd.f32 %v465, %v663
        %v665 = vpop.f32.mrf.mxu0
        %v666 = vadd.f32 %v465, %v665
        %667 = vmatmul.bf16.gmra.mxu0 %v427
        %v668 = vpop.f32.mrf.mxu0
        %v669 = vadd.f32 %v465, %v668
        %v670 = vpop.f32.mrf.mxu0
        %v671 = vadd.f32 %v465, %v670
        %672 = vmatmul.bf16.gmra.mxu0 %v429
        %v673 = vpop.f32.mrf.mxu0
        %v674 = vadd.f32 %v465, %v673
        %v675 = vpop.f32.mrf.mxu0
        %v676 = vadd.f32 %v465, %v675
        %677 = vdwg.mxu0
        %678 = vmatpush.bf16.msra.mxu0 %v595
        %679 = vmatpush.bf16.msra.mxu0 %v593
        %680 = vmatpush.bf16.msra.mxu0 %v591
        %681 = vmatpush.bf16.msra.mxu0 %v589
        %682 = vmatpush.bf16.msra.mxu0 %v587
        %683 = vmatpush.bf16.msra.mxu0 %v585
        %684 = vmatpush.bf16.msra.mxu0 %v583
        %685 = vmatpush.bf16.msra.mxu0 %v581
        %686 = vmatmul.bf16.gmra.mxu0 %v416
        %v687 = vpop.f32.mrf.mxu0
        %v688 = vadd.f32 %v639, %v687
        %v689 = vpop.f32.mrf.mxu0
        %v690 = vadd.f32 %v641, %v689
        %691 = vmatmul.bf16.gmra.mxu0 %v418
        %v692 = vpop.f32.mrf.mxu0
        %v693 = vadd.f32 %v644, %v692
        %v694 = vpop.f32.mrf.mxu0
        %v695 = vadd.f32 %v646, %v694
        %696 = vmatmul.bf16.gmra.mxu0 %v420
        %v697 = vpop.f32.mrf.mxu0
        %v698 = vadd.f32 %v649, %v697
        %v699 = vpop.f32.mrf.mxu0
        %v700 = vadd.f32 %v651, %v699
        %701 = vmatmul.bf16.gmra.mxu0 %v422
        %v702 = vpop.f32.mrf.mxu0
        %v703 = vadd.f32 %v654, %v702
        %v704 = vpop.f32.mrf.mxu0
        %v705 = vadd.f32 %v656, %v704
        %706 = vmatmul.bf16.gmra.mxu0 %v424
        %v707 = vpop.f32.mrf.mxu0
        %v708 = vadd.f32 %v659, %v707
        %v709 = vpop.f32.mrf.mxu0
        %v710 = vadd.f32 %v661, %v709
        %711 = vmatmul.bf16.gmra.mxu0 %v426
        %v712 = vpop.f32.mrf.mxu0
        %v713 = vadd.f32 %v664, %v712
        %v714 = vpop.f32.mrf.mxu0
        %v715 = vadd.f32 %v666, %v714
        %716 = vmatmul.bf16.gmra.mxu0 %v428
        %v717 = vpop.f32.mrf.mxu0
        %v718 = vadd.f32 %v669, %v717
        %v719 = vpop.f32.mrf.mxu0
        %v720 = vadd.f32 %v671, %v719
        %721 = vmatmul.bf16.gmra.mxu0 %v430
        %v722 = vpop.f32.mrf.mxu0
        %v723 = vadd.f32 %v674, %v722
        %v724 = vpop.f32.mrf.mxu0
        %v725 = vadd.f32 %v676, %v724
        %726 = vdwg.mxu0
        %727 = vmatpush.bf16.msra.mxu0 %v580
        %728 = vmatpush.bf16.msra.mxu0 %v578
        %729 = vmatpush.bf16.msra.mxu0 %v576
        %730 = vmatpush.bf16.msra.mxu0 %v574
        %731 = vmatpush.bf16.msra.mxu0 %v572
        %732 = vmatpush.bf16.msra.mxu0 %v570
        %733 = vmatpush.bf16.msra.mxu0 %v568
        %734 = vmatpush.bf16.msra.mxu0 %v566
        %735 = vmatmul.bf16.gmra.mxu0 %v415
        %v736 = vpop.f32.mrf.mxu0
        %v737 = vadd.f32 %v466, %v736
        %v738 = vpop.f32.mrf.mxu0
        %v739 = vadd.f32 %v466, %v738
        %740 = vmatmul.bf16.gmra.mxu0 %v417
        %v741 = vpop.f32.mrf.mxu0
        %v742 = vadd.f32 %v466, %v741
        %v743 = vpop.f32.mrf.mxu0
        %v744 = vadd.f32 %v466, %v743
        %745 = vmatmul.bf16.gmra.mxu0 %v419
        %v746 = vpop.f32.mrf.mxu0
        %v747 = vadd.f32 %v466, %v746
        %v748 = vpop.f32.mrf.mxu0
        %v749 = vadd.f32 %v466, %v748
        %750 = vmatmul.bf16.gmra.mxu0 %v421
        %v751 = vpop.f32.mrf.mxu0
        %v752 = vadd.f32 %v466, %v751
        %v753 = vpop.f32.mrf.mxu0
        %v754 = vadd.f32 %v466, %v753
        %755 = vmatmul.bf16.gmra.mxu0 %v423
        %v756 = vpop.f32.mrf.mxu0
        %v757 = vadd.f32 %v466, %v756
        %v758 = vpop.f32.mrf.mxu0
        %v759 = vadd.f32 %v466, %v758
        %760 = vmatmul.bf16.gmra.mxu0 %v425
        %v761 = vpop.f32.mrf.mxu0
        %v762 = vadd.f32 %v466, %v761
        %v763 = vpop.f32.mrf.mxu0
        %v764 = vadd.f32 %v466, %v763
        %765 = vmatmul.bf16.gmra.mxu0 %v427
        %v766 = vpop.f32.mrf.mxu0
        %v767 = vadd.f32 %v466, %v766
        %v768 = vpop.f32.mrf.mxu0
        %v769 = vadd.f32 %v466, %v768
        %770 = vmatmul.bf16.gmra.mxu0 %v429
        %v771 = vpop.f32.mrf.mxu0
        %v772 = vadd.f32 %v466, %v771
        %v773 = vpop.f32.mrf.mxu0
        %v774 = vadd.f32 %v466, %v773
        %775 = vdwg.mxu0
        %776 = vmatpush.bf16.msra.mxu0 %v596
        %777 = vmatpush.bf16.msra.mxu0 %v594
        %778 = vmatpush.bf16.msra.mxu0 %v592
        %779 = vmatpush.bf16.msra.mxu0 %v590
        %780 = vmatpush.bf16.msra.mxu0 %v588
        %781 = vmatpush.bf16.msra.mxu0 %v586
        %782 = vmatpush.bf16.msra.mxu0 %v584
        %783 = vmatpush.bf16.msra.mxu0 %v582
        %784 = vmatmul.bf16.gmra.mxu0 %v416
        %v785 = vpop.f32.mrf.mxu0
        %v786 = vadd.f32 %v737, %v785
        %v787 = vpop.f32.mrf.mxu0
        %v788 = vadd.f32 %v739, %v787
        %789 = vmatmul.bf16.gmra.mxu0 %v418
        %v790 = vpop.f32.mrf.mxu0
        %v791 = vadd.f32 %v742, %v790
        %v792 = vpop.f32.mrf.mxu0
        %v793 = vadd.f32 %v744, %v792
        %794 = vmatmul.bf16.gmra.mxu0 %v420
        %v795 = vpop.f32.mrf.mxu0
        %v796 = vadd.f32 %v747, %v795
        %v797 = vpop.f32.mrf.mxu0
        %v798 = vadd.f32 %v749, %v797
        %799 = vmatmul.bf16.gmra.mxu0 %v422
        %v800 = vpop.f32.mrf.mxu0
        %v801 = vadd.f32 %v752, %v800
        %v802 = vpop.f32.mrf.mxu0
        %v803 = vadd.f32 %v754, %v802
        %804 = vmatmul.bf16.gmra.mxu0 %v424
        %v805 = vpop.f32.mrf.mxu0
        %v806 = vadd.f32 %v757, %v805
        %v807 = vpop.f32.mrf.mxu0
        %v808 = vadd.f32 %v759, %v807
        %809 = vmatmul.bf16.gmra.mxu0 %v426
        %v810 = vpop.f32.mrf.mxu0
        %v811 = vadd.f32 %v762, %v810
        %v812 = vpop.f32.mrf.mxu0
        %v813 = vadd.f32 %v764, %v812
        %814 = vmatmul.bf16.gmra.mxu0 %v428
        %v815 = vpop.f32.mrf.mxu0
        %v816 = vadd.f32 %v767, %v815
        %v817 = vpop.f32.mrf.mxu0
        %v818 = vadd.f32 %v769, %v817
        %819 = vmatmul.bf16.gmra.mxu0 %v430
        %v820 = vpop.f32.mrf.mxu0
        %v821 = vadd.f32 %v772, %v820
        %v822 = vpop.f32.mrf.mxu0
        %v823 = vadd.f32 %v774, %v822
        %824 = vdwg.mxu0
        %v825 = vmax.f32 %v688, 0.0
        %v826 = vmax.f32 %v786, 0.0
        %v827 = vmax.f32 %v690, 0.0
        %v828 = vmax.f32 %v788, 0.0
        %v829 = vmax.f32 %v693, 0.0
        %v830 = vmax.f32 %v791, 0.0
        %v831 = vmax.f32 %v695, 0.0
        %v832 = vmax.f32 %v793, 0.0
        %v833 = vmax.f32 %v698, 0.0
        %v834 = vmax.f32 %v796, 0.0
        %v835 = vmax.f32 %v700, 0.0
        %v836 = vmax.f32 %v798, 0.0
        %v837 = vmax.f32 %v703, 0.0
        %v838 = vmax.f32 %v801, 0.0
        %v839 = vmax.f32 %v705, 0.0
        %v840 = vmax.f32 %v803, 0.0
        %v841 = vmax.f32 %v708, 0.0
        %v842 = vmax.f32 %v806, 0.0
        %v843 = vmax.f32 %v710, 0.0
        %v844 = vmax.f32 %v808, 0.0
        %v845 = vmax.f32 %v713, 0.0
        %v846 = vmax.f32 %v811, 0.0
        %v847 = vmax.f32 %v715, 0.0
        %v848 = vmax.f32 %v813, 0.0
        %v849 = vmax.f32 %v718, 0.0
        %v850 = vmax.f32 %v816, 0.0
        %v851 = vmax.f32 %v720, 0.0
        %v852 = vmax.f32 %v818, 0.0
        %v853 = vmax.f32 %v723, 0.0
        %v854 = vmax.f32 %v821, 0.0
        %v855 = vmax.f32 %v725, 0.0
        %v856 = vmax.f32 %v823, 0.0
        %v857 = vpack.c.bf16 %v827, %v825
        %v858 = vpack.c.bf16 %v828, %v826
        %v859 = vpack.c.bf16 %v831, %v829
        %v860 = vpack.c.bf16 %v832, %v830
        %v861 = vpack.c.bf16 %v835, %v833
        %v862 = vpack.c.bf16 %v836, %v834
        %v863 = vpack.c.bf16 %v839, %v837
        %v864 = vpack.c.bf16 %v840, %v838
        %v865 = vpack.c.bf16 %v843, %v841
        %v866 = vpack.c.bf16 %v844, %v842
        %v867 = vpack.c.bf16 %v847, %v845
        %v868 = vpack.c.bf16 %v848, %v846
        %v869 = vpack.c.bf16 %v851, %v849
        %v870 = vpack.c.bf16 %v852, %v850
        %v871 = vpack.c.bf16 %v855, %v853
        %v872 = vpack.c.bf16 %v856, %v854
        %s873 = scalar_lea.vmem [#allocation5], 256
        %v874 = vld [vmem:[%s873] sm:$0xff]
        %v875 = vld [vmem:[%s873 + $0x8] sm:$0xff]
        %v876 = vld [vmem:[%s873 + $0x10] sm:$0xff]
        %v877 = vld [vmem:[%s873 + $0x18] sm:$0xff]
        %v878 = vld [vmem:[%s873 + $0x20] sm:$0xff]
        %v879 = vld [vmem:[%s873 + $0x28] sm:$0xff]
        %v880 = vld [vmem:[%s873 + $0x30] sm:$0xff]
        %v881 = vld [vmem:[%s873 + $0x38] sm:$0xff]
        %v882 = vld [vmem:[%s873 + $0x40] sm:$0xff]
        %v883 = vld [vmem:[%s873 + $0x48] sm:$0xff]
        %v884 = vld [vmem:[%s873 + $0x50] sm:$0xff]
        %v885 = vld [vmem:[%s873 + $0x58] sm:$0xff]
        %v886 = vld [vmem:[%s873 + $0x60] sm:$0xff]
        %v887 = vld [vmem:[%s873 + $0x68] sm:$0xff]
        %v888 = vld [vmem:[%s873 + $0x70] sm:$0xff]
        %v889 = vld [vmem:[%s873 + $0x78] sm:$0xff]
        %v890 = vld [vmem:[%s873 + $0x80] sm:$0xff]
        %v891 = vld [vmem:[%s873 + $0x88] sm:$0xff]
        %v892 = vld [vmem:[%s873 + $0x90] sm:$0xff]
        %v893 = vld [vmem:[%s873 + $0x98] sm:$0xff]
        %v894 = vld [vmem:[%s873 + $0xa0] sm:$0xff]
        %v895 = vld [vmem:[%s873 + $0xa8] sm:$0xff]
        %v896 = vld [vmem:[%s873 + $0xb0] sm:$0xff]
        %v897 = vld [vmem:[%s873 + $0xb8] sm:$0xff]
        %v898 = vld [vmem:[%s873 + $0xc0] sm:$0xff]
        %v899 = vld [vmem:[%s873 + $0xc8] sm:$0xff]
        %v900 = vld [vmem:[%s873 + $0xd0] sm:$0xff]
        %v901 = vld [vmem:[%s873 + $0xd8] sm:$0xff]
        %v902 = vld [vmem:[%s873 + $0xe0] sm:$0xff]
        %v903 = vld [vmem:[%s873 + $0xe8] sm:$0xff]
        %v904 = vld [vmem:[%s873 + $0xf0] sm:$0xff]
        %v905 = vld [vmem:[%s873 + $0xf8] sm:$0xff]
        %s906 = scalar_lea.vmem [#allocation7], 2
        %v907 = vld [vmem:[%s906] sm:$0x3]
        %v909 = vperm.slane %v907, 0
        %v910 = vperm.slane %v907, 1
        %v945 = vunpack.c.l.b16 %v874
        %v946 = vunpack.c.h.b16 %v874
        %v947 = vunpack.c.l.b16 %v875
        %v948 = vunpack.c.h.b16 %v875
        %v949 = vunpack.c.l.b16 %v876
        %v950 = vunpack.c.h.b16 %v876
        %v951 = vunpack.c.l.b16 %v877
        %v952 = vunpack.c.h.b16 %v877
        %v953 = vunpack.c.l.b16 %v878
        %v954 = vunpack.c.h.b16 %v878
        %v955 = vunpack.c.l.b16 %v879
        %v956 = vunpack.c.h.b16 %v879
        %v957 = vunpack.c.l.b16 %v880
        %v958 = vunpack.c.h.b16 %v880
        %v959 = vunpack.c.l.b16 %v881
        %v960 = vunpack.c.h.b16 %v881
        %v961 = vunpack.c.l.b16 %v882
        %v962 = vunpack.c.h.b16 %v882
        %v963 = vunpack.c.l.b16 %v883
        %v964 = vunpack.c.h.b16 %v883
        %v965 = vunpack.c.l.b16 %v884
        %v966 = vunpack.c.h.b16 %v884
        %v967 = vunpack.c.l.b16 %v885
        %v968 = vunpack.c.h.b16 %v885
        %v969 = vunpack.c.l.b16 %v886
        %v970 = vunpack.c.h.b16 %v886
        %v971 = vunpack.c.l.b16 %v887
        %v972 = vunpack.c.h.b16 %v887
        %v973 = vunpack.c.l.b16 %v888
        %v974 = vunpack.c.h.b16 %v888
        %v975 = vunpack.c.l.b16 %v889
        %v976 = vunpack.c.h.b16 %v889
        %v977 = vunpack.c.l.b16 %v890
        %v978 = vunpack.c.h.b16 %v890
        %v979 = vunpack.c.l.b16 %v891
        %v980 = vunpack.c.h.b16 %v891
        %v981 = vunpack.c.l.b16 %v892
        %v982 = vunpack.c.h.b16 %v892
        %v983 = vunpack.c.l.b16 %v893
        %v984 = vunpack.c.h.b16 %v893
        %v985 = vunpack.c.l.b16 %v894
        %v986 = vunpack.c.h.b16 %v894
        %v987 = vunpack.c.l.b16 %v895
        %v988 = vunpack.c.h.b16 %v895
        %v989 = vunpack.c.l.b16 %v896
        %v990 = vunpack.c.h.b16 %v896
        %v991 = vunpack.c.l.b16 %v897
        %v992 = vunpack.c.h.b16 %v897
        %v993 = vunpack.c.l.b16 %v898
        %v994 = vunpack.c.h.b16 %v898
        %v995 = vunpack.c.l.b16 %v899
        %v996 = vunpack.c.h.b16 %v899
        %v997 = vunpack.c.l.b16 %v900
        %v998 = vunpack.c.h.b16 %v900
        %v999 = vunpack.c.l.b16 %v901
        %v1000 = vunpack.c.h.b16 %v901
        %v1001 = vunpack.c.l.b16 %v902
        %v1002 = vunpack.c.h.b16 %v902
        %v1003 = vunpack.c.l.b16 %v903
        %v1004 = vunpack.c.h.b16 %v903
        %v1005 = vunpack.c.l.b16 %v904
        %v1006 = vunpack.c.h.b16 %v904
        %v1007 = vunpack.c.l.b16 %v905
        %v1008 = vunpack.c.h.b16 %v905
        %v1009 = vpack.c.b16 %v947, %v945
        %v1010 = vpack.c.b16 %v948, %v946
        %v1011 = vpack.c.b16 %v951, %v949
        %v1012 = vpack.c.b16 %v952, %v950
        %v1013 = vpack.c.b16 %v955, %v953
        %v1014 = vpack.c.b16 %v956, %v954
        %v1015 = vpack.c.b16 %v959, %v957
        %v1016 = vpack.c.b16 %v960, %v958
        %v1017 = vpack.c.b16 %v963, %v961
        %v1018 = vpack.c.b16 %v964, %v962
        %v1019 = vpack.c.b16 %v967, %v965
        %v1020 = vpack.c.b16 %v968, %v966
        %v1021 = vpack.c.b16 %v971, %v969
        %v1022 = vpack.c.b16 %v972, %v970
        %v1023 = vpack.c.b16 %v975, %v973
        %v1024 = vpack.c.b16 %v976, %v974
        %v1025 = vpack.c.b16 %v979, %v977
        %v1026 = vpack.c.b16 %v980, %v978
        %v1027 = vpack.c.b16 %v983, %v981
        %v1028 = vpack.c.b16 %v984, %v982
        %v1029 = vpack.c.b16 %v987, %v985
        %v1030 = vpack.c.b16 %v988, %v986
        %v1031 = vpack.c.b16 %v991, %v989
        %v1032 = vpack.c.b16 %v992, %v990
        %v1033 = vpack.c.b16 %v995, %v993
        %v1034 = vpack.c.b16 %v996, %v994
        %v1035 = vpack.c.b16 %v999, %v997
        %v1036 = vpack.c.b16 %v1000, %v998
        %v1037 = vpack.c.b16 %v1003, %v1001
        %v1038 = vpack.c.b16 %v1004, %v1002
        %v1039 = vpack.c.b16 %v1007, %v1005
        %v1040 = vpack.c.b16 %v1008, %v1006
        %1073 = vmatpush.bf16.msra.mxu0 %v1023
        %1074 = vmatpush.bf16.msra.mxu0 %v1021
        %1075 = vmatpush.bf16.msra.mxu0 %v1019
        %1076 = vmatpush.bf16.msra.mxu0 %v1017
        %1077 = vmatpush.bf16.msra.mxu0 %v1015
        %1078 = vmatpush.bf16.msra.mxu0 %v1013
        %1079 = vmatpush.bf16.msra.mxu0 %v1011
        %1080 = vmatpush.bf16.msra.mxu0 %v1009
        %1081 = vmatmul.bf16.gmra.mxu0 %v857
        %v1082 = vpop.f32.mrf.mxu0
        %v1083 = vadd.f32 %v909, %v1082
        %v1084 = vpop.f32.mrf.mxu0
        %v1085 = vadd.f32 %v909, %v1084
        %1086 = vmatmul.bf16.gmra.mxu0 %v859
        %v1087 = vpop.f32.mrf.mxu0
        %v1088 = vadd.f32 %v909, %v1087
        %v1089 = vpop.f32.mrf.mxu0
        %v1090 = vadd.f32 %v909, %v1089
        %1091 = vmatmul.bf16.gmra.mxu0 %v861
        %v1092 = vpop.f32.mrf.mxu0
        %v1093 = vadd.f32 %v909, %v1092
        %v1094 = vpop.f32.mrf.mxu0
        %v1095 = vadd.f32 %v909, %v1094
        %1096 = vmatmul.bf16.gmra.mxu0 %v863
        %v1097 = vpop.f32.mrf.mxu0
        %v1098 = vadd.f32 %v909, %v1097
        %v1099 = vpop.f32.mrf.mxu0
        %v1100 = vadd.f32 %v909, %v1099
        %1101 = vmatmul.bf16.gmra.mxu0 %v865
        %v1102 = vpop.f32.mrf.mxu0
        %v1103 = vadd.f32 %v909, %v1102
        %v1104 = vpop.f32.mrf.mxu0
        %v1105 = vadd.f32 %v909, %v1104
        %1106 = vmatmul.bf16.gmra.mxu0 %v867
        %v1107 = vpop.f32.mrf.mxu0
        %v1108 = vadd.f32 %v909, %v1107
        %v1109 = vpop.f32.mrf.mxu0
        %v1110 = vadd.f32 %v909, %v1109
        %1111 = vmatmul.bf16.gmra.mxu0 %v869
        %v1112 = vpop.f32.mrf.mxu0
        %v1113 = vadd.f32 %v909, %v1112
        %v1114 = vpop.f32.mrf.mxu0
        %v1115 = vadd.f32 %v909, %v1114
        %1116 = vmatmul.bf16.gmra.mxu0 %v871
        %v1117 = vpop.f32.mrf.mxu0
        %v1118 = vadd.f32 %v909, %v1117
        %v1119 = vpop.f32.mrf.mxu0
        %v1120 = vadd.f32 %v909, %v1119
        %1121 = vdwg.mxu0
        %1122 = vmatpush.bf16.msra.mxu0 %v1039
        %1123 = vmatpush.bf16.msra.mxu0 %v1037
        %1124 = vmatpush.bf16.msra.mxu0 %v1035
        %1125 = vmatpush.bf16.msra.mxu0 %v1033
        %1126 = vmatpush.bf16.msra.mxu0 %v1031
        %1127 = vmatpush.bf16.msra.mxu0 %v1029
        %1128 = vmatpush.bf16.msra.mxu0 %v1027
        %1129 = vmatpush.bf16.msra.mxu0 %v1025
        %1130 = vmatmul.bf16.gmra.mxu0 %v858
        %v1131 = vpop.f32.mrf.mxu0
        %v1132 = vadd.f32 %v1083, %v1131
        %v1133 = vpop.f32.mrf.mxu0
        %v1134 = vadd.f32 %v1085, %v1133
        %1135 = vmatmul.bf16.gmra.mxu0 %v860
        %v1136 = vpop.f32.mrf.mxu0
        %v1137 = vadd.f32 %v1088, %v1136
        %v1138 = vpop.f32.mrf.mxu0
        %v1139 = vadd.f32 %v1090, %v1138
        %1140 = vmatmul.bf16.gmra.mxu0 %v862
        %v1141 = vpop.f32.mrf.mxu0
        %v1142 = vadd.f32 %v1093, %v1141
        %v1143 = vpop.f32.mrf.mxu0
        %v1144 = vadd.f32 %v1095, %v1143
        %1145 = vmatmul.bf16.gmra.mxu0 %v864
        %v1146 = vpop.f32.mrf.mxu0
        %v1147 = vadd.f32 %v1098, %v1146
        %v1148 = vpop.f32.mrf.mxu0
        %v1149 = vadd.f32 %v1100, %v1148
        %1150 = vmatmul.bf16.gmra.mxu0 %v866
        %v1151 = vpop.f32.mrf.mxu0
        %v1152 = vadd.f32 %v1103, %v1151
        %v1153 = vpop.f32.mrf.mxu0
        %v1154 = vadd.f32 %v1105, %v1153
        %1155 = vmatmul.bf16.gmra.mxu0 %v868
        %v1156 = vpop.f32.mrf.mxu0
        %v1157 = vadd.f32 %v1108, %v1156
        %v1158 = vpop.f32.mrf.mxu0
        %v1159 = vadd.f32 %v1110, %v1158
        %1160 = vmatmul.bf16.gmra.mxu0 %v870
        %v1161 = vpop.f32.mrf.mxu0
        %v1162 = vadd.f32 %v1113, %v1161
        %v1163 = vpop.f32.mrf.mxu0
        %v1164 = vadd.f32 %v1115, %v1163
        %1165 = vmatmul.bf16.gmra.mxu0 %v872
        %v1166 = vpop.f32.mrf.mxu0
        %v1167 = vadd.f32 %v1118, %v1166
        %v1168 = vpop.f32.mrf.mxu0
        %v1169 = vadd.f32 %v1120, %v1168
        %1170 = vdwg.mxu0
        %1171 = vmatpush.bf16.msra.mxu0 %v1024
        %1172 = vmatpush.bf16.msra.mxu0 %v1022
        %1173 = vmatpush.bf16.msra.mxu0 %v1020
        %1174 = vmatpush.bf16.msra.mxu0 %v1018
        %1175 = vmatpush.bf16.msra.mxu0 %v1016
        %1176 = vmatpush.bf16.msra.mxu0 %v1014
        %1177 = vmatpush.bf16.msra.mxu0 %v1012
        %1178 = vmatpush.bf16.msra.mxu0 %v1010
        %1179 = vmatmul.bf16.gmra.mxu0 %v857
        %v1180 = vpop.f32.mrf.mxu0
        %v1181 = vadd.f32 %v910, %v1180
        %v1182 = vpop.f32.mrf.mxu0
        %v1183 = vadd.f32 %v910, %v1182
        %1184 = vmatmul.bf16.gmra.mxu0 %v859
        %v1185 = vpop.f32.mrf.mxu0
        %v1186 = vadd.f32 %v910, %v1185
        %v1187 = vpop.f32.mrf.mxu0
        %v1188 = vadd.f32 %v910, %v1187
        %1189 = vmatmul.bf16.gmra.mxu0 %v861
        %v1190 = vpop.f32.mrf.mxu0
        %v1191 = vadd.f32 %v910, %v1190
        %v1192 = vpop.f32.mrf.mxu0
        %v1193 = vadd.f32 %v910, %v1192
        %1194 = vmatmul.bf16.gmra.mxu0 %v863
        %v1195 = vpop.f32.mrf.mxu0
        %v1196 = vadd.f32 %v910, %v1195
        %v1197 = vpop.f32.mrf.mxu0
        %v1198 = vadd.f32 %v910, %v1197
        %1199 = vmatmul.bf16.gmra.mxu0 %v865
        %v1200 = vpop.f32.mrf.mxu0
        %v1201 = vadd.f32 %v910, %v1200
        %v1202 = vpop.f32.mrf.mxu0
        %v1203 = vadd.f32 %v910, %v1202
        %1204 = vmatmul.bf16.gmra.mxu0 %v867
        %v1205 = vpop.f32.mrf.mxu0
        %v1206 = vadd.f32 %v910, %v1205
        %v1207 = vpop.f32.mrf.mxu0
        %v1208 = vadd.f32 %v910, %v1207
        %1209 = vmatmul.bf16.gmra.mxu0 %v869
        %v1210 = vpop.f32.mrf.mxu0
        %v1211 = vadd.f32 %v910, %v1210
        %v1212 = vpop.f32.mrf.mxu0
        %v1213 = vadd.f32 %v910, %v1212
        %1214 = vmatmul.bf16.gmra.mxu0 %v871
        %v1215 = vpop.f32.mrf.mxu0
        %v1216 = vadd.f32 %v910, %v1215
        %v1217 = vpop.f32.mrf.mxu0
        %v1218 = vadd.f32 %v910, %v1217
        %1219 = vdwg.mxu0
        %1220 = vmatpush.bf16.msra.mxu0 %v1040
        %1221 = vmatpush.bf16.msra.mxu0 %v1038
        %1222 = vmatpush.bf16.msra.mxu0 %v1036
        %1223 = vmatpush.bf16.msra.mxu0 %v1034
        %1224 = vmatpush.bf16.msra.mxu0 %v1032
        %1225 = vmatpush.bf16.msra.mxu0 %v1030
        %1226 = vmatpush.bf16.msra.mxu0 %v1028
        %1227 = vmatpush.bf16.msra.mxu0 %v1026
        %1228 = vmatmul.bf16.gmra.mxu0 %v858
        %v1229 = vpop.f32.mrf.mxu0
        %v1230 = vadd.f32 %v1181, %v1229
        %v1231 = vpop.f32.mrf.mxu0
        %v1232 = vadd.f32 %v1183, %v1231
        %1233 = vmatmul.bf16.gmra.mxu0 %v860
        %v1234 = vpop.f32.mrf.mxu0
        %v1235 = vadd.f32 %v1186, %v1234
        %v1236 = vpop.f32.mrf.mxu0
        %v1237 = vadd.f32 %v1188, %v1236
        %1238 = vmatmul.bf16.gmra.mxu0 %v862
        %v1239 = vpop.f32.mrf.mxu0
        %v1240 = vadd.f32 %v1191, %v1239
        %v1241 = vpop.f32.mrf.mxu0
        %v1242 = vadd.f32 %v1193, %v1241
        %1243 = vmatmul.bf16.gmra.mxu0 %v864
        %v1244 = vpop.f32.mrf.mxu0
        %v1245 = vadd.f32 %v1196, %v1244
        %v1246 = vpop.f32.mrf.mxu0
        %v1247 = vadd.f32 %v1198, %v1246
        %1248 = vmatmul.bf16.gmra.mxu0 %v866
        %v1249 = vpop.f32.mrf.mxu0
        %v1250 = vadd.f32 %v1201, %v1249
        %v1251 = vpop.f32.mrf.mxu0
        %v1252 = vadd.f32 %v1203, %v1251
        %1253 = vmatmul.bf16.gmra.mxu0 %v868
        %v1254 = vpop.f32.mrf.mxu0
        %v1255 = vadd.f32 %v1206, %v1254
        %v1256 = vpop.f32.mrf.mxu0
        %v1257 = vadd.f32 %v1208, %v1256
        %1258 = vmatmul.bf16.gmra.mxu0 %v870
        %v1259 = vpop.f32.mrf.mxu0
        %v1260 = vadd.f32 %v1211, %v1259
        %v1261 = vpop.f32.mrf.mxu0
        %v1262 = vadd.f32 %v1213, %v1261
        %1263 = vmatmul.bf16.gmra.mxu0 %v872
        %v1264 = vpop.f32.mrf.mxu0
        %v1265 = vadd.f32 %v1216, %v1264
        %v1266 = vpop.f32.mrf.mxu0
        %v1267 = vadd.f32 %v1218, %v1266
        %1268 = vdwg.mxu0
        %v1269 = vmax.f32 %v1132, 0.0
        %v1270 = vmax.f32 %v1230, 0.0
        %v1271 = vmax.f32 %v1134, 0.0
        %v1272 = vmax.f32 %v1232, 0.0
        %v1273 = vmax.f32 %v1137, 0.0
        %v1274 = vmax.f32 %v1235, 0.0
        %v1275 = vmax.f32 %v1139, 0.0
        %v1276 = vmax.f32 %v1237, 0.0
        %v1277 = vmax.f32 %v1142, 0.0
        %v1278 = vmax.f32 %v1240, 0.0
        %v1279 = vmax.f32 %v1144, 0.0
        %v1280 = vmax.f32 %v1242, 0.0
        %v1281 = vmax.f32 %v1147, 0.0
        %v1282 = vmax.f32 %v1245, 0.0
        %v1283 = vmax.f32 %v1149, 0.0
        %v1284 = vmax.f32 %v1247, 0.0
        %v1285 = vmax.f32 %v1152, 0.0
        %v1286 = vmax.f32 %v1250, 0.0
        %v1287 = vmax.f32 %v1154, 0.0
        %v1288 = vmax.f32 %v1252, 0.0
        %v1289 = vmax.f32 %v1157, 0.0
        %v1290 = vmax.f32 %v1255, 0.0
        %v1291 = vmax.f32 %v1159, 0.0
        %v1292 = vmax.f32 %v1257, 0.0
        %v1293 = vmax.f32 %v1162, 0.0
        %v1294 = vmax.f32 %v1260, 0.0
        %v1295 = vmax.f32 %v1164, 0.0
        %v1296 = vmax.f32 %v1262, 0.0
        %v1297 = vmax.f32 %v1167, 0.0
        %v1298 = vmax.f32 %v1265, 0.0
        %v1299 = vmax.f32 %v1169, 0.0
        %v1300 = vmax.f32 %v1267, 0.0
        %v1301 = vpack.c.bf16 %v1271, %v1269
        %v1302 = vpack.c.bf16 %v1272, %v1270
        %v1303 = vpack.c.bf16 %v1275, %v1273
        %v1304 = vpack.c.bf16 %v1276, %v1274
        %v1305 = vpack.c.bf16 %v1279, %v1277
        %v1306 = vpack.c.bf16 %v1280, %v1278
        %v1307 = vpack.c.bf16 %v1283, %v1281
        %v1308 = vpack.c.bf16 %v1284, %v1282
        %v1309 = vpack.c.bf16 %v1287, %v1285
        %v1310 = vpack.c.bf16 %v1288, %v1286
        %v1311 = vpack.c.bf16 %v1291, %v1289
        %v1312 = vpack.c.bf16 %v1292, %v1290
        %v1313 = vpack.c.bf16 %v1295, %v1293
        %v1314 = vpack.c.bf16 %v1296, %v1294
        %v1315 = vpack.c.bf16 %v1299, %v1297
        %v1316 = vpack.c.bf16 %v1300, %v1298
        %s1317 = scalar_lea.vmem [#allocation5], 512
        %v1318 = vld [vmem:[%s1317] sm:$0xff]
        %v1319 = vld [vmem:[%s1317 + $0x8] sm:$0xff]
        %v1320 = vld [vmem:[%s1317 + $0x10] sm:$0xff]
        %v1321 = vld [vmem:[%s1317 + $0x18] sm:$0xff]
        %v1322 = vld [vmem:[%s1317 + $0x20] sm:$0xff]
        %v1323 = vld [vmem:[%s1317 + $0x28] sm:$0xff]
        %v1324 = vld [vmem:[%s1317 + $0x30] sm:$0xff]
        %v1325 = vld [vmem:[%s1317 + $0x38] sm:$0xff]
        %v1326 = vld [vmem:[%s1317 + $0x40] sm:$0xff]
        %v1327 = vld [vmem:[%s1317 + $0x48] sm:$0xff]
        %v1328 = vld [vmem:[%s1317 + $0x50] sm:$0xff]
        %v1329 = vld [vmem:[%s1317 + $0x58] sm:$0xff]
        %v1330 = vld [vmem:[%s1317 + $0x60] sm:$0xff]
        %v1331 = vld [vmem:[%s1317 + $0x68] sm:$0xff]
        %v1332 = vld [vmem:[%s1317 + $0x70] sm:$0xff]
        %v1333 = vld [vmem:[%s1317 + $0x78] sm:$0xff]
        %v1334 = vld [vmem:[%s1317 + $0x80] sm:$0xff]
        %v1335 = vld [vmem:[%s1317 + $0x88] sm:$0xff]
        %v1336 = vld [vmem:[%s1317 + $0x90] sm:$0xff]
        %v1337 = vld [vmem:[%s1317 + $0x98] sm:$0xff]
        %v1338 = vld [vmem:[%s1317 + $0xa0] sm:$0xff]
        %v1339 = vld [vmem:[%s1317 + $0xa8] sm:$0xff]
        %v1340 = vld [vmem:[%s1317 + $0xb0] sm:$0xff]
        %v1341 = vld [vmem:[%s1317 + $0xb8] sm:$0xff]
        %v1342 = vld [vmem:[%s1317 + $0xc0] sm:$0xff]
        %v1343 = vld [vmem:[%s1317 + $0xc8] sm:$0xff]
        %v1344 = vld [vmem:[%s1317 + $0xd0] sm:$0xff]
        %v1345 = vld [vmem:[%s1317 + $0xd8] sm:$0xff]
        %v1346 = vld [vmem:[%s1317 + $0xe0] sm:$0xff]
        %v1347 = vld [vmem:[%s1317 + $0xe8] sm:$0xff]
        %v1348 = vld [vmem:[%s1317 + $0xf0] sm:$0xff]
        %v1349 = vld [vmem:[%s1317 + $0xf8] sm:$0xff]
        %s1350 = scalar_lea.vmem [#allocation7], 4
        %v1351 = vld [vmem:[%s1350] sm:$0x3]
        %v1353 = vperm.slane %v1351, 0
        %v1354 = vperm.slane %v1351, 1
        %v1389 = vunpack.c.l.b16 %v1318
        %v1390 = vunpack.c.h.b16 %v1318
        %v1391 = vunpack.c.l.b16 %v1319
        %v1392 = vunpack.c.h.b16 %v1319
        %v1393 = vunpack.c.l.b16 %v1320
        %v1394 = vunpack.c.h.b16 %v1320
        %v1395 = vunpack.c.l.b16 %v1321
        %v1396 = vunpack.c.h.b16 %v1321
        %v1397 = vunpack.c.l.b16 %v1322
        %v1398 = vunpack.c.h.b16 %v1322
        %v1399 = vunpack.c.l.b16 %v1323
        %v1400 = vunpack.c.h.b16 %v1323
        %v1401 = vunpack.c.l.b16 %v1324
        %v1402 = vunpack.c.h.b16 %v1324
        %v1403 = vunpack.c.l.b16 %v1325
        %v1404 = vunpack.c.h.b16 %v1325
        %v1405 = vunpack.c.l.b16 %v1326
        %v1406 = vunpack.c.h.b16 %v1326
        %v1407 = vunpack.c.l.b16 %v1327
        %v1408 = vunpack.c.h.b16 %v1327
        %v1409 = vunpack.c.l.b16 %v1328
        %v1410 = vunpack.c.h.b16 %v1328
        %v1411 = vunpack.c.l.b16 %v1329
        %v1412 = vunpack.c.h.b16 %v1329
        %v1413 = vunpack.c.l.b16 %v1330
        %v1414 = vunpack.c.h.b16 %v1330
        %v1415 = vunpack.c.l.b16 %v1331
        %v1416 = vunpack.c.h.b16 %v1331
        %v1417 = vunpack.c.l.b16 %v1332
        %v1418 = vunpack.c.h.b16 %v1332
        %v1419 = vunpack.c.l.b16 %v1333
        %v1420 = vunpack.c.h.b16 %v1333
        %v1421 = vunpack.c.l.b16 %v1334
        %v1422 = vunpack.c.h.b16 %v1334
        %v1423 = vunpack.c.l.b16 %v1335
        %v1424 = vunpack.c.h.b16 %v1335
        %v1425 = vunpack.c.l.b16 %v1336
        %v1426 = vunpack.c.h.b16 %v1336
        %v1427 = vunpack.c.l.b16 %v1337
        %v1428 = vunpack.c.h.b16 %v1337
        %v1429 = vunpack.c.l.b16 %v1338
        %v1430 = vunpack.c.h.b16 %v1338
        %v1431 = vunpack.c.l.b16 %v1339
        %v1432 = vunpack.c.h.b16 %v1339
        %v1433 = vunpack.c.l.b16 %v1340
        %v1434 = vunpack.c.h.b16 %v1340
        %v1435 = vunpack.c.l.b16 %v1341
        %v1436 = vunpack.c.h.b16 %v1341
        %v1437 = vunpack.c.l.b16 %v1342
        %v1438 = vunpack.c.h.b16 %v1342
        %v1439 = vunpack.c.l.b16 %v1343
        %v1440 = vunpack.c.h.b16 %v1343
        %v1441 = vunpack.c.l.b16 %v1344
        %v1442 = vunpack.c.h.b16 %v1344
        %v1443 = vunpack.c.l.b16 %v1345
        %v1444 = vunpack.c.h.b16 %v1345
        %v1445 = vunpack.c.l.b16 %v1346
        %v1446 = vunpack.c.h.b16 %v1346
        %v1447 = vunpack.c.l.b16 %v1347
        %v1448 = vunpack.c.h.b16 %v1347
        %v1449 = vunpack.c.l.b16 %v1348
        %v1450 = vunpack.c.h.b16 %v1348
        %v1451 = vunpack.c.l.b16 %v1349
        %v1452 = vunpack.c.h.b16 %v1349
        %v1453 = vpack.c.b16 %v1391, %v1389
        %v1454 = vpack.c.b16 %v1392, %v1390
        %v1455 = vpack.c.b16 %v1395, %v1393
        %v1456 = vpack.c.b16 %v1396, %v1394
        %v1457 = vpack.c.b16 %v1399, %v1397
        %v1458 = vpack.c.b16 %v1400, %v1398
        %v1459 = vpack.c.b16 %v1403, %v1401
        %v1460 = vpack.c.b16 %v1404, %v1402
        %v1461 = vpack.c.b16 %v1407, %v1405
        %v1462 = vpack.c.b16 %v1408, %v1406
        %v1463 = vpack.c.b16 %v1411, %v1409
        %v1464 = vpack.c.b16 %v1412, %v1410
        %v1465 = vpack.c.b16 %v1415, %v1413
        %v1466 = vpack.c.b16 %v1416, %v1414
        %v1467 = vpack.c.b16 %v1419, %v1417
        %v1468 = vpack.c.b16 %v1420, %v1418
        %v1469 = vpack.c.b16 %v1423, %v1421
        %v1470 = vpack.c.b16 %v1424, %v1422
        %v1471 = vpack.c.b16 %v1427, %v1425
        %v1472 = vpack.c.b16 %v1428, %v1426
        %v1473 = vpack.c.b16 %v1431, %v1429
        %v1474 = vpack.c.b16 %v1432, %v1430
        %v1475 = vpack.c.b16 %v1435, %v1433
        %v1476 = vpack.c.b16 %v1436, %v1434
        %v1477 = vpack.c.b16 %v1439, %v1437
        %v1478 = vpack.c.b16 %v1440, %v1438
        %v1479 = vpack.c.b16 %v1443, %v1441
        %v1480 = vpack.c.b16 %v1444, %v1442
        %v1481 = vpack.c.b16 %v1447, %v1445
        %v1482 = vpack.c.b16 %v1448, %v1446
        %v1483 = vpack.c.b16 %v1451, %v1449
        %v1484 = vpack.c.b16 %v1452, %v1450
        %1517 = vmatpush.bf16.msra.mxu0 %v1467
        %1518 = vmatpush.bf16.msra.mxu0 %v1465
        %1519 = vmatpush.bf16.msra.mxu0 %v1463
        %1520 = vmatpush.bf16.msra.mxu0 %v1461
        %1521 = vmatpush.bf16.msra.mxu0 %v1459
        %1522 = vmatpush.bf16.msra.mxu0 %v1457
        %1523 = vmatpush.bf16.msra.mxu0 %v1455
        %1524 = vmatpush.bf16.msra.mxu0 %v1453
        %1525 = vmatmul.bf16.gmra.mxu0 %v1301
        %v1526 = vpop.f32.mrf.mxu0
        %v1527 = vadd.f32 %v1353, %v1526
        %v1528 = vpop.f32.mrf.mxu0
        %v1529 = vadd.f32 %v1353, %v1528
        %1530 = vmatmul.bf16.gmra.mxu0 %v1303
        %v1531 = vpop.f32.mrf.mxu0
        %v1532 = vadd.f32 %v1353, %v1531
        %v1533 = vpop.f32.mrf.mxu0
        %v1534 = vadd.f32 %v1353, %v1533
        %1535 = vmatmul.bf16.gmra.mxu0 %v1305
        %v1536 = vpop.f32.mrf.mxu0
        %v1537 = vadd.f32 %v1353, %v1536
        %v1538 = vpop.f32.mrf.mxu0
        %v1539 = vadd.f32 %v1353, %v1538
        %1540 = vmatmul.bf16.gmra.mxu0 %v1307
        %v1541 = vpop.f32.mrf.mxu0
        %v1542 = vadd.f32 %v1353, %v1541
        %v1543 = vpop.f32.mrf.mxu0
        %v1544 = vadd.f32 %v1353, %v1543
        %1545 = vmatmul.bf16.gmra.mxu0 %v1309
        %v1546 = vpop.f32.mrf.mxu0
        %v1547 = vadd.f32 %v1353, %v1546
        %v1548 = vpop.f32.mrf.mxu0
        %v1549 = vadd.f32 %v1353, %v1548
        %1550 = vmatmul.bf16.gmra.mxu0 %v1311
        %v1551 = vpop.f32.mrf.mxu0
        %v1552 = vadd.f32 %v1353, %v1551
        %v1553 = vpop.f32.mrf.mxu0
        %v1554 = vadd.f32 %v1353, %v1553
        %1555 = vmatmul.bf16.gmra.mxu0 %v1313
        %v1556 = vpop.f32.mrf.mxu0
        %v1557 = vadd.f32 %v1353, %v1556
        %v1558 = vpop.f32.mrf.mxu0
        %v1559 = vadd.f32 %v1353, %v1558
        %1560 = vmatmul.bf16.gmra.mxu0 %v1315
        %v1561 = vpop.f32.mrf.mxu0
        %v1562 = vadd.f32 %v1353, %v1561
        %v1563 = vpop.f32.mrf.mxu0
        %v1564 = vadd.f32 %v1353, %v1563
        %1565 = vdwg.mxu0
        %1566 = vmatpush.bf16.msra.mxu0 %v1483
        %1567 = vmatpush.bf16.msra.mxu0 %v1481
        %1568 = vmatpush.bf16.msra.mxu0 %v1479
        %1569 = vmatpush.bf16.msra.mxu0 %v1477
        %1570 = vmatpush.bf16.msra.mxu0 %v1475
        %1571 = vmatpush.bf16.msra.mxu0 %v1473
        %1572 = vmatpush.bf16.msra.mxu0 %v1471
        %1573 = vmatpush.bf16.msra.mxu0 %v1469
        %1574 = vmatmul.bf16.gmra.mxu0 %v1302
        %v1575 = vpop.f32.mrf.mxu0
        %v1576 = vadd.f32 %v1527, %v1575
        %v1577 = vpop.f32.mrf.mxu0
        %v1578 = vadd.f32 %v1529, %v1577
        %1579 = vmatmul.bf16.gmra.mxu0 %v1304
        %v1580 = vpop.f32.mrf.mxu0
        %v1581 = vadd.f32 %v1532, %v1580
        %v1582 = vpop.f32.mrf.mxu0
        %v1583 = vadd.f32 %v1534, %v1582
        %1584 = vmatmul.bf16.gmra.mxu0 %v1306
        %v1585 = vpop.f32.mrf.mxu0
        %v1586 = vadd.f32 %v1537, %v1585
        %v1587 = vpop.f32.mrf.mxu0
        %v1588 = vadd.f32 %v1539, %v1587
        %1589 = vmatmul.bf16.gmra.mxu0 %v1308
        %v1590 = vpop.f32.mrf.mxu0
        %v1591 = vadd.f32 %v1542, %v1590
        %v1592 = vpop.f32.mrf.mxu0
        %v1593 = vadd.f32 %v1544, %v1592
        %1594 = vmatmul.bf16.gmra.mxu0 %v1310
        %v1595 = vpop.f32.mrf.mxu0
        %v1596 = vadd.f32 %v1547, %v1595
        %v1597 = vpop.f32.mrf.mxu0
        %v1598 = vadd.f32 %v1549, %v1597
        %1599 = vmatmul.bf16.gmra.mxu0 %v1312
        %v1600 = vpop.f32.mrf.mxu0
        %v1601 = vadd.f32 %v1552, %v1600
        %v1602 = vpop.f32.mrf.mxu0
        %v1603 = vadd.f32 %v1554, %v1602
        %1604 = vmatmul.bf16.gmra.mxu0 %v1314
        %v1605 = vpop.f32.mrf.mxu0
        %v1606 = vadd.f32 %v1557, %v1605
        %v1607 = vpop.f32.mrf.mxu0
        %v1608 = vadd.f32 %v1559, %v1607
        %1609 = vmatmul.bf16.gmra.mxu0 %v1316
        %v1610 = vpop.f32.mrf.mxu0
        %v1611 = vadd.f32 %v1562, %v1610
        %v1612 = vpop.f32.mrf.mxu0
        %v1613 = vadd.f32 %v1564, %v1612
        %1614 = vdwg.mxu0
        %1615 = vmatpush.bf16.msra.mxu0 %v1468
        %1616 = vmatpush.bf16.msra.mxu0 %v1466
        %1617 = vmatpush.bf16.msra.mxu0 %v1464
        %1618 = vmatpush.bf16.msra.mxu0 %v1462
        %1619 = vmatpush.bf16.msra.mxu0 %v1460
        %1620 = vmatpush.bf16.msra.mxu0 %v1458
        %1621 = vmatpush.bf16.msra.mxu0 %v1456
        %1622 = vmatpush.bf16.msra.mxu0 %v1454
        %1623 = vmatmul.bf16.gmra.mxu0 %v1301
        %v1624 = vpop.f32.mrf.mxu0
        %v1625 = vadd.f32 %v1354, %v1624
        %v1626 = vpop.f32.mrf.mxu0
        %v1627 = vadd.f32 %v1354, %v1626
        %1628 = vmatmul.bf16.gmra.mxu0 %v1303
        %v1629 = vpop.f32.mrf.mxu0
        %v1630 = vadd.f32 %v1354, %v1629
        %v1631 = vpop.f32.mrf.mxu0
        %v1632 = vadd.f32 %v1354, %v1631
        %1633 = vmatmul.bf16.gmra.mxu0 %v1305
        %v1634 = vpop.f32.mrf.mxu0
        %v1635 = vadd.f32 %v1354, %v1634
        %v1636 = vpop.f32.mrf.mxu0
        %v1637 = vadd.f32 %v1354, %v1636
        %1638 = vmatmul.bf16.gmra.mxu0 %v1307
        %v1639 = vpop.f32.mrf.mxu0
        %v1640 = vadd.f32 %v1354, %v1639
        %v1641 = vpop.f32.mrf.mxu0
        %v1642 = vadd.f32 %v1354, %v1641
        %1643 = vmatmul.bf16.gmra.mxu0 %v1309
        %v1644 = vpop.f32.mrf.mxu0
        %v1645 = vadd.f32 %v1354, %v1644
        %v1646 = vpop.f32.mrf.mxu0
        %v1647 = vadd.f32 %v1354, %v1646
        %1648 = vmatmul.bf16.gmra.mxu0 %v1311
        %v1649 = vpop.f32.mrf.mxu0
        %v1650 = vadd.f32 %v1354, %v1649
        %v1651 = vpop.f32.mrf.mxu0
        %v1652 = vadd.f32 %v1354, %v1651
        %1653 = vmatmul.bf16.gmra.mxu0 %v1313
        %v1654 = vpop.f32.mrf.mxu0
        %v1655 = vadd.f32 %v1354, %v1654
        %v1656 = vpop.f32.mrf.mxu0
        %v1657 = vadd.f32 %v1354, %v1656
        %1658 = vmatmul.bf16.gmra.mxu0 %v1315
        %v1659 = vpop.f32.mrf.mxu0
        %v1660 = vadd.f32 %v1354, %v1659
        %v1661 = vpop.f32.mrf.mxu0
        %v1662 = vadd.f32 %v1354, %v1661
        %1663 = vdwg.mxu0
        %1664 = vmatpush.bf16.msra.mxu0 %v1484
        %1665 = vmatpush.bf16.msra.mxu0 %v1482
        %1666 = vmatpush.bf16.msra.mxu0 %v1480
        %1667 = vmatpush.bf16.msra.mxu0 %v1478
        %1668 = vmatpush.bf16.msra.mxu0 %v1476
        %1669 = vmatpush.bf16.msra.mxu0 %v1474
        %1670 = vmatpush.bf16.msra.mxu0 %v1472
        %1671 = vmatpush.bf16.msra.mxu0 %v1470
        %1672 = vmatmul.bf16.gmra.mxu0 %v1302
        %v1673 = vpop.f32.mrf.mxu0
        %v1674 = vadd.f32 %v1625, %v1673
        %v1675 = vpop.f32.mrf.mxu0
        %v1676 = vadd.f32 %v1627, %v1675
        %1677 = vmatmul.bf16.gmra.mxu0 %v1304
        %v1678 = vpop.f32.mrf.mxu0
        %v1679 = vadd.f32 %v1630, %v1678
        %v1680 = vpop.f32.mrf.mxu0
        %v1681 = vadd.f32 %v1632, %v1680
        %1682 = vmatmul.bf16.gmra.mxu0 %v1306
        %v1683 = vpop.f32.mrf.mxu0
        %v1684 = vadd.f32 %v1635, %v1683
        %v1685 = vpop.f32.mrf.mxu0
        %v1686 = vadd.f32 %v1637, %v1685
        %1687 = vmatmul.bf16.gmra.mxu0 %v1308
        %v1688 = vpop.f32.mrf.mxu0
        %v1689 = vadd.f32 %v1640, %v1688
        %v1690 = vpop.f32.mrf.mxu0
        %v1691 = vadd.f32 %v1642, %v1690
        %1692 = vmatmul.bf16.gmra.mxu0 %v1310
        %v1693 = vpop.f32.mrf.mxu0
        %v1694 = vadd.f32 %v1645, %v1693
        %v1695 = vpop.f32.mrf.mxu0
        %v1696 = vadd.f32 %v1647, %v1695
        %1697 = vmatmul.bf16.gmra.mxu0 %v1312
        %v1698 = vpop.f32.mrf.mxu0
        %v1699 = vadd.f32 %v1650, %v1698
        %v1700 = vpop.f32.mrf.mxu0
        %v1701 = vadd.f32 %v1652, %v1700
        %1702 = vmatmul.bf16.gmra.mxu0 %v1314
        %v1703 = vpop.f32.mrf.mxu0
        %v1704 = vadd.f32 %v1655, %v1703
        %v1705 = vpop.f32.mrf.mxu0
        %v1706 = vadd.f32 %v1657, %v1705
        %1707 = vmatmul.bf16.gmra.mxu0 %v1316
        %v1708 = vpop.f32.mrf.mxu0
        %v1709 = vadd.f32 %v1660, %v1708
        %v1710 = vpop.f32.mrf.mxu0
        %v1711 = vadd.f32 %v1662, %v1710
        %1712 = vdwg.mxu0
        %v1713 = vmax.f32 %v1576, 0.0
        %v1714 = vmax.f32 %v1674, 0.0
        %v1715 = vmax.f32 %v1578, 0.0
        %v1716 = vmax.f32 %v1676, 0.0
        %v1717 = vmax.f32 %v1581, 0.0
        %v1718 = vmax.f32 %v1679, 0.0
        %v1719 = vmax.f32 %v1583, 0.0
        %v1720 = vmax.f32 %v1681, 0.0
        %v1721 = vmax.f32 %v1586, 0.0
        %v1722 = vmax.f32 %v1684, 0.0
        %v1723 = vmax.f32 %v1588, 0.0
        %v1724 = vmax.f32 %v1686, 0.0
        %v1725 = vmax.f32 %v1591, 0.0
        %v1726 = vmax.f32 %v1689, 0.0
        %v1727 = vmax.f32 %v1593, 0.0
        %v1728 = vmax.f32 %v1691, 0.0
        %v1729 = vmax.f32 %v1596, 0.0
        %v1730 = vmax.f32 %v1694, 0.0
        %v1731 = vmax.f32 %v1598, 0.0
        %v1732 = vmax.f32 %v1696, 0.0
        %v1733 = vmax.f32 %v1601, 0.0
        %v1734 = vmax.f32 %v1699, 0.0
        %v1735 = vmax.f32 %v1603, 0.0
        %v1736 = vmax.f32 %v1701, 0.0
        %v1737 = vmax.f32 %v1606, 0.0
        %v1738 = vmax.f32 %v1704, 0.0
        %v1739 = vmax.f32 %v1608, 0.0
        %v1740 = vmax.f32 %v1706, 0.0
        %v1741 = vmax.f32 %v1611, 0.0
        %v1742 = vmax.f32 %v1709, 0.0
        %v1743 = vmax.f32 %v1613, 0.0
        %v1744 = vmax.f32 %v1711, 0.0
        %v1745 = vpack.c.bf16 %v1715, %v1713
        %v1746 = vpack.c.bf16 %v1716, %v1714
        %v1747 = vpack.c.bf16 %v1719, %v1717
        %v1748 = vpack.c.bf16 %v1720, %v1718
        %v1749 = vpack.c.bf16 %v1723, %v1721
        %v1750 = vpack.c.bf16 %v1724, %v1722
        %v1751 = vpack.c.bf16 %v1727, %v1725
        %v1752 = vpack.c.bf16 %v1728, %v1726
        %v1753 = vpack.c.bf16 %v1731, %v1729
        %v1754 = vpack.c.bf16 %v1732, %v1730
        %v1755 = vpack.c.bf16 %v1735, %v1733
        %v1756 = vpack.c.bf16 %v1736, %v1734
        %v1757 = vpack.c.bf16 %v1739, %v1737
        %v1758 = vpack.c.bf16 %v1740, %v1738
        %v1759 = vpack.c.bf16 %v1743, %v1741
        %v1760 = vpack.c.bf16 %v1744, %v1742
        %s1761 = scalar_lea.vmem [#allocation5], 768
        %v1762 = vld [vmem:[%s1761] sm:$0xff]
        %v1763 = vld [vmem:[%s1761 + $0x8] sm:$0xff]
        %v1764 = vld [vmem:[%s1761 + $0x10] sm:$0xff]
        %v1765 = vld [vmem:[%s1761 + $0x18] sm:$0xff]
        %v1766 = vld [vmem:[%s1761 + $0x20] sm:$0xff]
        %v1767 = vld [vmem:[%s1761 + $0x28] sm:$0xff]
        %v1768 = vld [vmem:[%s1761 + $0x30] sm:$0xff]
        %v1769 = vld [vmem:[%s1761 + $0x38] sm:$0xff]
        %v1770 = vld [vmem:[%s1761 + $0x40] sm:$0xff]
        %v1771 = vld [vmem:[%s1761 + $0x48] sm:$0xff]
        %v1772 = vld [vmem:[%s1761 + $0x50] sm:$0xff]
        %v1773 = vld [vmem:[%s1761 + $0x58] sm:$0xff]
        %v1774 = vld [vmem:[%s1761 + $0x60] sm:$0xff]
        %v1775 = vld [vmem:[%s1761 + $0x68] sm:$0xff]
        %v1776 = vld [vmem:[%s1761 + $0x70] sm:$0xff]
        %v1777 = vld [vmem:[%s1761 + $0x78] sm:$0xff]
        %v1778 = vld [vmem:[%s1761 + $0x80] sm:$0xff]
        %v1779 = vld [vmem:[%s1761 + $0x88] sm:$0xff]
        %v1780 = vld [vmem:[%s1761 + $0x90] sm:$0xff]
        %v1781 = vld [vmem:[%s1761 + $0x98] sm:$0xff]
        %v1782 = vld [vmem:[%s1761 + $0xa0] sm:$0xff]
        %v1783 = vld [vmem:[%s1761 + $0xa8] sm:$0xff]
        %v1784 = vld [vmem:[%s1761 + $0xb0] sm:$0xff]
        %v1785 = vld [vmem:[%s1761 + $0xb8] sm:$0xff]
        %v1786 = vld [vmem:[%s1761 + $0xc0] sm:$0xff]
        %v1787 = vld [vmem:[%s1761 + $0xc8] sm:$0xff]
        %v1788 = vld [vmem:[%s1761 + $0xd0] sm:$0xff]
        %v1789 = vld [vmem:[%s1761 + $0xd8] sm:$0xff]
        %v1790 = vld [vmem:[%s1761 + $0xe0] sm:$0xff]
        %v1791 = vld [vmem:[%s1761 + $0xe8] sm:$0xff]
        %v1792 = vld [vmem:[%s1761 + $0xf0] sm:$0xff]
        %v1793 = vld [vmem:[%s1761 + $0xf8] sm:$0xff]
        %s1794 = scalar_lea.vmem [#allocation7], 6
        %v1795 = vld [vmem:[%s1794] sm:$0x3]
        %v1797 = vperm.slane %v1795, 0
        %v1798 = vperm.slane %v1795, 1
        %v1833 = vunpack.c.l.b16 %v1762
        %v1834 = vunpack.c.h.b16 %v1762
        %v1835 = vunpack.c.l.b16 %v1763
        %v1836 = vunpack.c.h.b16 %v1763
        %v1837 = vunpack.c.l.b16 %v1764
        %v1838 = vunpack.c.h.b16 %v1764
        %v1839 = vunpack.c.l.b16 %v1765
        %v1840 = vunpack.c.h.b16 %v1765
        %v1841 = vunpack.c.l.b16 %v1766
        %v1842 = vunpack.c.h.b16 %v1766
        %v1843 = vunpack.c.l.b16 %v1767
        %v1844 = vunpack.c.h.b16 %v1767
        %v1845 = vunpack.c.l.b16 %v1768
        %v1846 = vunpack.c.h.b16 %v1768
        %v1847 = vunpack.c.l.b16 %v1769
        %v1848 = vunpack.c.h.b16 %v1769
        %v1849 = vunpack.c.l.b16 %v1770
        %v1850 = vunpack.c.h.b16 %v1770
        %v1851 = vunpack.c.l.b16 %v1771
        %v1852 = vunpack.c.h.b16 %v1771
        %v1853 = vunpack.c.l.b16 %v1772
        %v1854 = vunpack.c.h.b16 %v1772
        %v1855 = vunpack.c.l.b16 %v1773
        %v1856 = vunpack.c.h.b16 %v1773
        %v1857 = vunpack.c.l.b16 %v1774
        %v1858 = vunpack.c.h.b16 %v1774
        %v1859 = vunpack.c.l.b16 %v1775
        %v1860 = vunpack.c.h.b16 %v1775
        %v1861 = vunpack.c.l.b16 %v1776
        %v1862 = vunpack.c.h.b16 %v1776
        %v1863 = vunpack.c.l.b16 %v1777
        %v1864 = vunpack.c.h.b16 %v1777
        %v1865 = vunpack.c.l.b16 %v1778
        %v1866 = vunpack.c.h.b16 %v1778
        %v1867 = vunpack.c.l.b16 %v1779
        %v1868 = vunpack.c.h.b16 %v1779
        %v1869 = vunpack.c.l.b16 %v1780
        %v1870 = vunpack.c.h.b16 %v1780
        %v1871 = vunpack.c.l.b16 %v1781
        %v1872 = vunpack.c.h.b16 %v1781
        %v1873 = vunpack.c.l.b16 %v1782
        %v1874 = vunpack.c.h.b16 %v1782
        %v1875 = vunpack.c.l.b16 %v1783
        %v1876 = vunpack.c.h.b16 %v1783
        %v1877 = vunpack.c.l.b16 %v1784
        %v1878 = vunpack.c.h.b16 %v1784
        %v1879 = vunpack.c.l.b16 %v1785
        %v1880 = vunpack.c.h.b16 %v1785
        %v1881 = vunpack.c.l.b16 %v1786
        %v1882 = vunpack.c.h.b16 %v1786
        %v1883 = vunpack.c.l.b16 %v1787
        %v1884 = vunpack.c.h.b16 %v1787
        %v1885 = vunpack.c.l.b16 %v1788
        %v1886 = vunpack.c.h.b16 %v1788
        %v1887 = vunpack.c.l.b16 %v1789
        %v1888 = vunpack.c.h.b16 %v1789
        %v1889 = vunpack.c.l.b16 %v1790
        %v1890 = vunpack.c.h.b16 %v1790
        %v1891 = vunpack.c.l.b16 %v1791
        %v1892 = vunpack.c.h.b16 %v1791
        %v1893 = vunpack.c.l.b16 %v1792
        %v1894 = vunpack.c.h.b16 %v1792
        %v1895 = vunpack.c.l.b16 %v1793
        %v1896 = vunpack.c.h.b16 %v1793
        %v1897 = vpack.c.b16 %v1835, %v1833
        %v1898 = vpack.c.b16 %v1836, %v1834
        %v1899 = vpack.c.b16 %v1839, %v1837
        %v1900 = vpack.c.b16 %v1840, %v1838
        %v1901 = vpack.c.b16 %v1843, %v1841
        %v1902 = vpack.c.b16 %v1844, %v1842
        %v1903 = vpack.c.b16 %v1847, %v1845
        %v1904 = vpack.c.b16 %v1848, %v1846
        %v1905 = vpack.c.b16 %v1851, %v1849
        %v1906 = vpack.c.b16 %v1852, %v1850
        %v1907 = vpack.c.b16 %v1855, %v1853
        %v1908 = vpack.c.b16 %v1856, %v1854
        %v1909 = vpack.c.b16 %v1859, %v1857
        %v1910 = vpack.c.b16 %v1860, %v1858
        %v1911 = vpack.c.b16 %v1863, %v1861
        %v1912 = vpack.c.b16 %v1864, %v1862
        %v1913 = vpack.c.b16 %v1867, %v1865
        %v1914 = vpack.c.b16 %v1868, %v1866
        %v1915 = vpack.c.b16 %v1871, %v1869
        %v1916 = vpack.c.b16 %v1872, %v1870
        %v1917 = vpack.c.b16 %v1875, %v1873
        %v1918 = vpack.c.b16 %v1876, %v1874
        %v1919 = vpack.c.b16 %v1879, %v1877
        %v1920 = vpack.c.b16 %v1880, %v1878
        %v1921 = vpack.c.b16 %v1883, %v1881
        %v1922 = vpack.c.b16 %v1884, %v1882
        %v1923 = vpack.c.b16 %v1887, %v1885
        %v1924 = vpack.c.b16 %v1888, %v1886
        %v1925 = vpack.c.b16 %v1891, %v1889
        %v1926 = vpack.c.b16 %v1892, %v1890
        %v1927 = vpack.c.b16 %v1895, %v1893
        %v1928 = vpack.c.b16 %v1896, %v1894
        %1961 = vmatpush.bf16.msra.mxu0 %v1911
        %1962 = vmatpush.bf16.msra.mxu0 %v1909
        %1963 = vmatpush.bf16.msra.mxu0 %v1907
        %1964 = vmatpush.bf16.msra.mxu0 %v1905
        %1965 = vmatpush.bf16.msra.mxu0 %v1903
        %1966 = vmatpush.bf16.msra.mxu0 %v1901
        %1967 = vmatpush.bf16.msra.mxu0 %v1899
        %1968 = vmatpush.bf16.msra.mxu0 %v1897
        %1969 = vmatmul.bf16.gmra.mxu0 %v1745
        %v1970 = vpop.f32.mrf.mxu0
        %v1971 = vadd.f32 %v1797, %v1970
        %v1972 = vpop.f32.mrf.mxu0
        %v1973 = vadd.f32 %v1797, %v1972
        %1974 = vmatmul.bf16.gmra.mxu0 %v1747
        %v1975 = vpop.f32.mrf.mxu0
        %v1976 = vadd.f32 %v1797, %v1975
        %v1977 = vpop.f32.mrf.mxu0
        %v1978 = vadd.f32 %v1797, %v1977
        %1979 = vmatmul.bf16.gmra.mxu0 %v1749
        %v1980 = vpop.f32.mrf.mxu0
        %v1981 = vadd.f32 %v1797, %v1980
        %v1982 = vpop.f32.mrf.mxu0
        %v1983 = vadd.f32 %v1797, %v1982
        %1984 = vmatmul.bf16.gmra.mxu0 %v1751
        %v1985 = vpop.f32.mrf.mxu0
        %v1986 = vadd.f32 %v1797, %v1985
        %v1987 = vpop.f32.mrf.mxu0
        %v1988 = vadd.f32 %v1797, %v1987
        %1989 = vmatmul.bf16.gmra.mxu0 %v1753
        %v1990 = vpop.f32.mrf.mxu0
        %v1991 = vadd.f32 %v1797, %v1990
        %v1992 = vpop.f32.mrf.mxu0
        %v1993 = vadd.f32 %v1797, %v1992
        %1994 = vmatmul.bf16.gmra.mxu0 %v1755
        %v1995 = vpop.f32.mrf.mxu0
        %v1996 = vadd.f32 %v1797, %v1995
        %v1997 = vpop.f32.mrf.mxu0
        %v1998 = vadd.f32 %v1797, %v1997
        %1999 = vmatmul.bf16.gmra.mxu0 %v1757
        %v2000 = vpop.f32.mrf.mxu0
        %v2001 = vadd.f32 %v1797, %v2000
        %v2002 = vpop.f32.mrf.mxu0
        %v2003 = vadd.f32 %v1797, %v2002
        %2004 = vmatmul.bf16.gmra.mxu0 %v1759
        %v2005 = vpop.f32.mrf.mxu0
        %v2006 = vadd.f32 %v1797, %v2005
        %v2007 = vpop.f32.mrf.mxu0
        %v2008 = vadd.f32 %v1797, %v2007
        %2009 = vdwg.mxu0
        %2010 = vmatpush.bf16.msra.mxu0 %v1927
        %2011 = vmatpush.bf16.msra.mxu0 %v1925
        %2012 = vmatpush.bf16.msra.mxu0 %v1923
        %2013 = vmatpush.bf16.msra.mxu0 %v1921
        %2014 = vmatpush.bf16.msra.mxu0 %v1919
        %2015 = vmatpush.bf16.msra.mxu0 %v1917
        %2016 = vmatpush.bf16.msra.mxu0 %v1915
        %2017 = vmatpush.bf16.msra.mxu0 %v1913
        %2018 = vmatmul.bf16.gmra.mxu0 %v1746
        %v2019 = vpop.f32.mrf.mxu0
        %v2020 = vadd.f32 %v1971, %v2019
        %v2021 = vpop.f32.mrf.mxu0
        %v2022 = vadd.f32 %v1973, %v2021
        %2023 = vmatmul.bf16.gmra.mxu0 %v1748
        %v2024 = vpop.f32.mrf.mxu0
        %v2025 = vadd.f32 %v1976, %v2024
        %v2026 = vpop.f32.mrf.mxu0
        %v2027 = vadd.f32 %v1978, %v2026
        %2028 = vmatmul.bf16.gmra.mxu0 %v1750
        %v2029 = vpop.f32.mrf.mxu0
        %v2030 = vadd.f32 %v1981, %v2029
        %v2031 = vpop.f32.mrf.mxu0
        %v2032 = vadd.f32 %v1983, %v2031
        %2033 = vmatmul.bf16.gmra.mxu0 %v1752
        %v2034 = vpop.f32.mrf.mxu0
        %v2035 = vadd.f32 %v1986, %v2034
        %v2036 = vpop.f32.mrf.mxu0
        %v2037 = vadd.f32 %v1988, %v2036
        %2038 = vmatmul.bf16.gmra.mxu0 %v1754
        %v2039 = vpop.f32.mrf.mxu0
        %v2040 = vadd.f32 %v1991, %v2039
        %v2041 = vpop.f32.mrf.mxu0
        %v2042 = vadd.f32 %v1993, %v2041
        %2043 = vmatmul.bf16.gmra.mxu0 %v1756
        %v2044 = vpop.f32.mrf.mxu0
        %v2045 = vadd.f32 %v1996, %v2044
        %v2046 = vpop.f32.mrf.mxu0
        %v2047 = vadd.f32 %v1998, %v2046
        %2048 = vmatmul.bf16.gmra.mxu0 %v1758
        %v2049 = vpop.f32.mrf.mxu0
        %v2050 = vadd.f32 %v2001, %v2049
        %v2051 = vpop.f32.mrf.mxu0
        %v2052 = vadd.f32 %v2003, %v2051
        %2053 = vmatmul.bf16.gmra.mxu0 %v1760
        %v2054 = vpop.f32.mrf.mxu0
        %v2055 = vadd.f32 %v2006, %v2054
        %v2056 = vpop.f32.mrf.mxu0
        %v2057 = vadd.f32 %v2008, %v2056
        %2058 = vdwg.mxu0
        %2059 = vmatpush.bf16.msra.mxu0 %v1912
        %2060 = vmatpush.bf16.msra.mxu0 %v1910
        %2061 = vmatpush.bf16.msra.mxu0 %v1908
        %2062 = vmatpush.bf16.msra.mxu0 %v1906
        %2063 = vmatpush.bf16.msra.mxu0 %v1904
        %2064 = vmatpush.bf16.msra.mxu0 %v1902
        %2065 = vmatpush.bf16.msra.mxu0 %v1900
        %2066 = vmatpush.bf16.msra.mxu0 %v1898
        %2067 = vmatmul.bf16.gmra.mxu0 %v1745
        %v2068 = vpop.f32.mrf.mxu0
        %v2069 = vadd.f32 %v1798, %v2068
        %v2070 = vpop.f32.mrf.mxu0
        %v2071 = vadd.f32 %v1798, %v2070
        %2072 = vmatmul.bf16.gmra.mxu0 %v1747
        %v2073 = vpop.f32.mrf.mxu0
        %v2074 = vadd.f32 %v1798, %v2073
        %v2075 = vpop.f32.mrf.mxu0
        %v2076 = vadd.f32 %v1798, %v2075
        %2077 = vmatmul.bf16.gmra.mxu0 %v1749
        %v2078 = vpop.f32.mrf.mxu0
        %v2079 = vadd.f32 %v1798, %v2078
        %v2080 = vpop.f32.mrf.mxu0
        %v2081 = vadd.f32 %v1798, %v2080
        %2082 = vmatmul.bf16.gmra.mxu0 %v1751
        %v2083 = vpop.f32.mrf.mxu0
        %v2084 = vadd.f32 %v1798, %v2083
        %v2085 = vpop.f32.mrf.mxu0
        %v2086 = vadd.f32 %v1798, %v2085
        %2087 = vmatmul.bf16.gmra.mxu0 %v1753
        %v2088 = vpop.f32.mrf.mxu0
        %v2089 = vadd.f32 %v1798, %v2088
        %v2090 = vpop.f32.mrf.mxu0
        %v2091 = vadd.f32 %v1798, %v2090
        %2092 = vmatmul.bf16.gmra.mxu0 %v1755
        %v2093 = vpop.f32.mrf.mxu0
        %v2094 = vadd.f32 %v1798, %v2093
        %v2095 = vpop.f32.mrf.mxu0
        %v2096 = vadd.f32 %v1798, %v2095
        %2097 = vmatmul.bf16.gmra.mxu0 %v1757
        %v2098 = vpop.f32.mrf.mxu0
        %v2099 = vadd.f32 %v1798, %v2098
        %v2100 = vpop.f32.mrf.mxu0
        %v2101 = vadd.f32 %v1798, %v2100
        %2102 = vmatmul.bf16.gmra.mxu0 %v1759
        %v2103 = vpop.f32.mrf.mxu0
        %v2104 = vadd.f32 %v1798, %v2103
        %v2105 = vpop.f32.mrf.mxu0
        %v2106 = vadd.f32 %v1798, %v2105
        %2107 = vdwg.mxu0
        %2108 = vmatpush.bf16.msra.mxu0 %v1928
        %2109 = vmatpush.bf16.msra.mxu0 %v1926
        %2110 = vmatpush.bf16.msra.mxu0 %v1924
        %2111 = vmatpush.bf16.msra.mxu0 %v1922
        %2112 = vmatpush.bf16.msra.mxu0 %v1920
        %2113 = vmatpush.bf16.msra.mxu0 %v1918
        %2114 = vmatpush.bf16.msra.mxu0 %v1916
        %2115 = vmatpush.bf16.msra.mxu0 %v1914
        %2116 = vmatmul.bf16.gmra.mxu0 %v1746
        %v2117 = vpop.f32.mrf.mxu0
        %v2118 = vadd.f32 %v2069, %v2117
        %v2119 = vpop.f32.mrf.mxu0
        %v2120 = vadd.f32 %v2071, %v2119
        %2121 = vmatmul.bf16.gmra.mxu0 %v1748
        %v2122 = vpop.f32.mrf.mxu0
        %v2123 = vadd.f32 %v2074, %v2122
        %v2124 = vpop.f32.mrf.mxu0
        %v2125 = vadd.f32 %v2076, %v2124
        %2126 = vmatmul.bf16.gmra.mxu0 %v1750
        %v2127 = vpop.f32.mrf.mxu0
        %v2128 = vadd.f32 %v2079, %v2127
        %v2129 = vpop.f32.mrf.mxu0
        %v2130 = vadd.f32 %v2081, %v2129
        %2131 = vmatmul.bf16.gmra.mxu0 %v1752
        %v2132 = vpop.f32.mrf.mxu0
        %v2133 = vadd.f32 %v2084, %v2132
        %v2134 = vpop.f32.mrf.mxu0
        %v2135 = vadd.f32 %v2086, %v2134
        %2136 = vmatmul.bf16.gmra.mxu0 %v1754
        %v2137 = vpop.f32.mrf.mxu0
        %v2138 = vadd.f32 %v2089, %v2137
        %v2139 = vpop.f32.mrf.mxu0
        %v2140 = vadd.f32 %v2091, %v2139
        %2141 = vmatmul.bf16.gmra.mxu0 %v1756
        %v2142 = vpop.f32.mrf.mxu0
        %v2143 = vadd.f32 %v2094, %v2142
        %v2144 = vpop.f32.mrf.mxu0
        %v2145 = vadd.f32 %v2096, %v2144
        %2146 = vmatmul.bf16.gmra.mxu0 %v1758
        %v2147 = vpop.f32.mrf.mxu0
        %v2148 = vadd.f32 %v2099, %v2147
        %v2149 = vpop.f32.mrf.mxu0
        %v2150 = vadd.f32 %v2101, %v2149
        %2151 = vmatmul.bf16.gmra.mxu0 %v1760
        %v2152 = vpop.f32.mrf.mxu0
        %v2153 = vadd.f32 %v2104, %v2152
        %v2154 = vpop.f32.mrf.mxu0
        %v2155 = vadd.f32 %v2106, %v2154
        %2156 = vdwg.mxu0
        %v2157 = vmax.f32 %v2020, 0.0
        %v2158 = vmax.f32 %v2118, 0.0
        %v2159 = vmax.f32 %v2022, 0.0
        %v2160 = vmax.f32 %v2120, 0.0
        %v2161 = vmax.f32 %v2025, 0.0
        %v2162 = vmax.f32 %v2123, 0.0
        %v2163 = vmax.f32 %v2027, 0.0
        %v2164 = vmax.f32 %v2125, 0.0
        %v2165 = vmax.f32 %v2030, 0.0
        %v2166 = vmax.f32 %v2128, 0.0
        %v2167 = vmax.f32 %v2032, 0.0
        %v2168 = vmax.f32 %v2130, 0.0
        %v2169 = vmax.f32 %v2035, 0.0
        %v2170 = vmax.f32 %v2133, 0.0
        %v2171 = vmax.f32 %v2037, 0.0
        %v2172 = vmax.f32 %v2135, 0.0
        %v2173 = vmax.f32 %v2040, 0.0
        %v2174 = vmax.f32 %v2138, 0.0
        %v2175 = vmax.f32 %v2042, 0.0
        %v2176 = vmax.f32 %v2140, 0.0
        %v2177 = vmax.f32 %v2045, 0.0
        %v2178 = vmax.f32 %v2143, 0.0
        %v2179 = vmax.f32 %v2047, 0.0
        %v2180 = vmax.f32 %v2145, 0.0
        %v2181 = vmax.f32 %v2050, 0.0
        %v2182 = vmax.f32 %v2148, 0.0
        %v2183 = vmax.f32 %v2052, 0.0
        %v2184 = vmax.f32 %v2150, 0.0
        %v2185 = vmax.f32 %v2055, 0.0
        %v2186 = vmax.f32 %v2153, 0.0
        %v2187 = vmax.f32 %v2057, 0.0
        %v2188 = vmax.f32 %v2155, 0.0
        %v2189 = vpack.c.bf16 %v2159, %v2157
        %v2190 = vpack.c.bf16 %v2160, %v2158
        %v2191 = vpack.c.bf16 %v2163, %v2161
        %v2192 = vpack.c.bf16 %v2164, %v2162
        %v2193 = vpack.c.bf16 %v2167, %v2165
        %v2194 = vpack.c.bf16 %v2168, %v2166
        %v2195 = vpack.c.bf16 %v2171, %v2169
        %v2196 = vpack.c.bf16 %v2172, %v2170
        %v2197 = vpack.c.bf16 %v2175, %v2173
        %v2198 = vpack.c.bf16 %v2176, %v2174
        %v2199 = vpack.c.bf16 %v2179, %v2177
        %v2200 = vpack.c.bf16 %v2180, %v2178
        %v2201 = vpack.c.bf16 %v2183, %v2181
        %v2202 = vpack.c.bf16 %v2184, %v2182
        %v2203 = vpack.c.bf16 %v2187, %v2185
        %v2204 = vpack.c.bf16 %v2188, %v2186
        %s2205 = scalar_lea.vmem [#allocation5], 1024
        %v2206 = vld [vmem:[%s2205] sm:$0xff]
        %v2207 = vld [vmem:[%s2205 + $0x8] sm:$0xff]
        %v2208 = vld [vmem:[%s2205 + $0x10] sm:$0xff]
        %v2209 = vld [vmem:[%s2205 + $0x18] sm:$0xff]
        %v2210 = vld [vmem:[%s2205 + $0x20] sm:$0xff]
        %v2211 = vld [vmem:[%s2205 + $0x28] sm:$0xff]
        %v2212 = vld [vmem:[%s2205 + $0x30] sm:$0xff]
        %v2213 = vld [vmem:[%s2205 + $0x38] sm:$0xff]
        %v2214 = vld [vmem:[%s2205 + $0x40] sm:$0xff]
        %v2215 = vld [vmem:[%s2205 + $0x48] sm:$0xff]
        %v2216 = vld [vmem:[%s2205 + $0x50] sm:$0xff]
        %v2217 = vld [vmem:[%s2205 + $0x58] sm:$0xff]
        %v2218 = vld [vmem:[%s2205 + $0x60] sm:$0xff]
        %v2219 = vld [vmem:[%s2205 + $0x68] sm:$0xff]
        %v2220 = vld [vmem:[%s2205 + $0x70] sm:$0xff]
        %v2221 = vld [vmem:[%s2205 + $0x78] sm:$0xff]
        %v2222 = vld [vmem:[%s2205 + $0x80] sm:$0xff]
        %v2223 = vld [vmem:[%s2205 + $0x88] sm:$0xff]
        %v2224 = vld [vmem:[%s2205 + $0x90] sm:$0xff]
        %v2225 = vld [vmem:[%s2205 + $0x98] sm:$0xff]
        %v2226 = vld [vmem:[%s2205 + $0xa0] sm:$0xff]
        %v2227 = vld [vmem:[%s2205 + $0xa8] sm:$0xff]
        %v2228 = vld [vmem:[%s2205 + $0xb0] sm:$0xff]
        %v2229 = vld [vmem:[%s2205 + $0xb8] sm:$0xff]
        %v2230 = vld [vmem:[%s2205 + $0xc0] sm:$0xff]
        %v2231 = vld [vmem:[%s2205 + $0xc8] sm:$0xff]
        %v2232 = vld [vmem:[%s2205 + $0xd0] sm:$0xff]
        %v2233 = vld [vmem:[%s2205 + $0xd8] sm:$0xff]
        %v2234 = vld [vmem:[%s2205 + $0xe0] sm:$0xff]
        %v2235 = vld [vmem:[%s2205 + $0xe8] sm:$0xff]
        %v2236 = vld [vmem:[%s2205 + $0xf0] sm:$0xff]
        %v2237 = vld [vmem:[%s2205 + $0xf8] sm:$0xff]
        %s2238 = scalar_lea.vmem [#allocation7], 8
        %v2239 = vld [vmem:[%s2238] sm:$0x3]
        %v2241 = vperm.slane %v2239, 0
        %v2242 = vperm.slane %v2239, 1
        %v2277 = vunpack.c.l.b16 %v2206
        %v2278 = vunpack.c.h.b16 %v2206
        %v2279 = vunpack.c.l.b16 %v2207
        %v2280 = vunpack.c.h.b16 %v2207
        %v2281 = vunpack.c.l.b16 %v2208
        %v2282 = vunpack.c.h.b16 %v2208
        %v2283 = vunpack.c.l.b16 %v2209
        %v2284 = vunpack.c.h.b16 %v2209
        %v2285 = vunpack.c.l.b16 %v2210
        %v2286 = vunpack.c.h.b16 %v2210
        %v2287 = vunpack.c.l.b16 %v2211
        %v2288 = vunpack.c.h.b16 %v2211
        %v2289 = vunpack.c.l.b16 %v2212
        %v2290 = vunpack.c.h.b16 %v2212
        %v2291 = vunpack.c.l.b16 %v2213
        %v2292 = vunpack.c.h.b16 %v2213
        %v2293 = vunpack.c.l.b16 %v2214
        %v2294 = vunpack.c.h.b16 %v2214
        %v2295 = vunpack.c.l.b16 %v2215
        %v2296 = vunpack.c.h.b16 %v2215
        %v2297 = vunpack.c.l.b16 %v2216
        %v2298 = vunpack.c.h.b16 %v2216
        %v2299 = vunpack.c.l.b16 %v2217
        %v2300 = vunpack.c.h.b16 %v2217
        %v2301 = vunpack.c.l.b16 %v2218
        %v2302 = vunpack.c.h.b16 %v2218
        %v2303 = vunpack.c.l.b16 %v2219
        %v2304 = vunpack.c.h.b16 %v2219
        %v2305 = vunpack.c.l.b16 %v2220
        %v2306 = vunpack.c.h.b16 %v2220
        %v2307 = vunpack.c.l.b16 %v2221
        %v2308 = vunpack.c.h.b16 %v2221
        %v2309 = vunpack.c.l.b16 %v2222
        %v2310 = vunpack.c.h.b16 %v2222
        %v2311 = vunpack.c.l.b16 %v2223
        %v2312 = vunpack.c.h.b16 %v2223
        %v2313 = vunpack.c.l.b16 %v2224
        %v2314 = vunpack.c.h.b16 %v2224
        %v2315 = vunpack.c.l.b16 %v2225
        %v2316 = vunpack.c.h.b16 %v2225
        %v2317 = vunpack.c.l.b16 %v2226
        %v2318 = vunpack.c.h.b16 %v2226
        %v2319 = vunpack.c.l.b16 %v2227
        %v2320 = vunpack.c.h.b16 %v2227
        %v2321 = vunpack.c.l.b16 %v2228
        %v2322 = vunpack.c.h.b16 %v2228
        %v2323 = vunpack.c.l.b16 %v2229
        %v2324 = vunpack.c.h.b16 %v2229
        %v2325 = vunpack.c.l.b16 %v2230
        %v2326 = vunpack.c.h.b16 %v2230
        %v2327 = vunpack.c.l.b16 %v2231
        %v2328 = vunpack.c.h.b16 %v2231
        %v2329 = vunpack.c.l.b16 %v2232
        %v2330 = vunpack.c.h.b16 %v2232
        %v2331 = vunpack.c.l.b16 %v2233
        %v2332 = vunpack.c.h.b16 %v2233
        %v2333 = vunpack.c.l.b16 %v2234
        %v2334 = vunpack.c.h.b16 %v2234
        %v2335 = vunpack.c.l.b16 %v2235
        %v2336 = vunpack.c.h.b16 %v2235
        %v2337 = vunpack.c.l.b16 %v2236
        %v2338 = vunpack.c.h.b16 %v2236
        %v2339 = vunpack.c.l.b16 %v2237
        %v2340 = vunpack.c.h.b16 %v2237
        %v2341 = vpack.c.b16 %v2279, %v2277
        %v2342 = vpack.c.b16 %v2280, %v2278
        %v2343 = vpack.c.b16 %v2283, %v2281
        %v2344 = vpack.c.b16 %v2284, %v2282
        %v2345 = vpack.c.b16 %v2287, %v2285
        %v2346 = vpack.c.b16 %v2288, %v2286
        %v2347 = vpack.c.b16 %v2291, %v2289
        %v2348 = vpack.c.b16 %v2292, %v2290
        %v2349 = vpack.c.b16 %v2295, %v2293
        %v2350 = vpack.c.b16 %v2296, %v2294
        %v2351 = vpack.c.b16 %v2299, %v2297
        %v2352 = vpack.c.b16 %v2300, %v2298
        %v2353 = vpack.c.b16 %v2303, %v2301
        %v2354 = vpack.c.b16 %v2304, %v2302
        %v2355 = vpack.c.b16 %v2307, %v2305
        %v2356 = vpack.c.b16 %v2308, %v2306
        %v2357 = vpack.c.b16 %v2311, %v2309
        %v2358 = vpack.c.b16 %v2312, %v2310
        %v2359 = vpack.c.b16 %v2315, %v2313
        %v2360 = vpack.c.b16 %v2316, %v2314
        %v2361 = vpack.c.b16 %v2319, %v2317
        %v2362 = vpack.c.b16 %v2320, %v2318
        %v2363 = vpack.c.b16 %v2323, %v2321
        %v2364 = vpack.c.b16 %v2324, %v2322
        %v2365 = vpack.c.b16 %v2327, %v2325
        %v2366 = vpack.c.b16 %v2328, %v2326
        %v2367 = vpack.c.b16 %v2331, %v2329
        %v2368 = vpack.c.b16 %v2332, %v2330
        %v2369 = vpack.c.b16 %v2335, %v2333
        %v2370 = vpack.c.b16 %v2336, %v2334
        %v2371 = vpack.c.b16 %v2339, %v2337
        %v2372 = vpack.c.b16 %v2340, %v2338
        %2405 = vmatpush.bf16.msra.mxu0 %v2355
        %2406 = vmatpush.bf16.msra.mxu0 %v2353
        %2407 = vmatpush.bf16.msra.mxu0 %v2351
        %2408 = vmatpush.bf16.msra.mxu0 %v2349
        %2409 = vmatpush.bf16.msra.mxu0 %v2347
        %2410 = vmatpush.bf16.msra.mxu0 %v2345
        %2411 = vmatpush.bf16.msra.mxu0 %v2343
        %2412 = vmatpush.bf16.msra.mxu0 %v2341
        %2413 = vmatmul.bf16.gmra.mxu0 %v2189
        %v2414 = vpop.f32.mrf.mxu0
        %v2415 = vadd.f32 %v2241, %v2414
        %v2416 = vpop.f32.mrf.mxu0
        %v2417 = vadd.f32 %v2241, %v2416
        %2418 = vmatmul.bf16.gmra.mxu0 %v2191
        %v2419 = vpop.f32.mrf.mxu0
        %v2420 = vadd.f32 %v2241, %v2419
        %v2421 = vpop.f32.mrf.mxu0
        %v2422 = vadd.f32 %v2241, %v2421
        %2423 = vmatmul.bf16.gmra.mxu0 %v2193
        %v2424 = vpop.f32.mrf.mxu0
        %v2425 = vadd.f32 %v2241, %v2424
        %v2426 = vpop.f32.mrf.mxu0
        %v2427 = vadd.f32 %v2241, %v2426
        %2428 = vmatmul.bf16.gmra.mxu0 %v2195
        %v2429 = vpop.f32.mrf.mxu0
        %v2430 = vadd.f32 %v2241, %v2429
        %v2431 = vpop.f32.mrf.mxu0
        %v2432 = vadd.f32 %v2241, %v2431
        %2433 = vmatmul.bf16.gmra.mxu0 %v2197
        %v2434 = vpop.f32.mrf.mxu0
        %v2435 = vadd.f32 %v2241, %v2434
        %v2436 = vpop.f32.mrf.mxu0
        %v2437 = vadd.f32 %v2241, %v2436
        %2438 = vmatmul.bf16.gmra.mxu0 %v2199
        %v2439 = vpop.f32.mrf.mxu0
        %v2440 = vadd.f32 %v2241, %v2439
        %v2441 = vpop.f32.mrf.mxu0
        %v2442 = vadd.f32 %v2241, %v2441
        %2443 = vmatmul.bf16.gmra.mxu0 %v2201
        %v2444 = vpop.f32.mrf.mxu0
        %v2445 = vadd.f32 %v2241, %v2444
        %v2446 = vpop.f32.mrf.mxu0
        %v2447 = vadd.f32 %v2241, %v2446
        %2448 = vmatmul.bf16.gmra.mxu0 %v2203
        %v2449 = vpop.f32.mrf.mxu0
        %v2450 = vadd.f32 %v2241, %v2449
        %v2451 = vpop.f32.mrf.mxu0
        %v2452 = vadd.f32 %v2241, %v2451
        %2453 = vdwg.mxu0
        %2454 = vmatpush.bf16.msra.mxu0 %v2371
        %2455 = vmatpush.bf16.msra.mxu0 %v2369
        %2456 = vmatpush.bf16.msra.mxu0 %v2367
        %2457 = vmatpush.bf16.msra.mxu0 %v2365
        %2458 = vmatpush.bf16.msra.mxu0 %v2363
        %2459 = vmatpush.bf16.msra.mxu0 %v2361
        %2460 = vmatpush.bf16.msra.mxu0 %v2359
        %2461 = vmatpush.bf16.msra.mxu0 %v2357
        %2462 = vmatmul.bf16.gmra.mxu0 %v2190
        %v2463 = vpop.f32.mrf.mxu0
        %v2464 = vadd.f32 %v2415, %v2463
        %v2465 = vpop.f32.mrf.mxu0
        %v2466 = vadd.f32 %v2417, %v2465
        %2467 = vmatmul.bf16.gmra.mxu0 %v2192
        %v2468 = vpop.f32.mrf.mxu0
        %v2469 = vadd.f32 %v2420, %v2468
        %v2470 = vpop.f32.mrf.mxu0
        %v2471 = vadd.f32 %v2422, %v2470
        %2472 = vmatmul.bf16.gmra.mxu0 %v2194
        %v2473 = vpop.f32.mrf.mxu0
        %v2474 = vadd.f32 %v2425, %v2473
        %v2475 = vpop.f32.mrf.mxu0
        %v2476 = vadd.f32 %v2427, %v2475
        %2477 = vmatmul.bf16.gmra.mxu0 %v2196
        %v2478 = vpop.f32.mrf.mxu0
        %v2479 = vadd.f32 %v2430, %v2478
        %v2480 = vpop.f32.mrf.mxu0
        %v2481 = vadd.f32 %v2432, %v2480
        %2482 = vmatmul.bf16.gmra.mxu0 %v2198
        %v2483 = vpop.f32.mrf.mxu0
        %v2484 = vadd.f32 %v2435, %v2483
        %v2485 = vpop.f32.mrf.mxu0
        %v2486 = vadd.f32 %v2437, %v2485
        %2487 = vmatmul.bf16.gmra.mxu0 %v2200
        %v2488 = vpop.f32.mrf.mxu0
        %v2489 = vadd.f32 %v2440, %v2488
        %v2490 = vpop.f32.mrf.mxu0
        %v2491 = vadd.f32 %v2442, %v2490
        %2492 = vmatmul.bf16.gmra.mxu0 %v2202
        %v2493 = vpop.f32.mrf.mxu0
        %v2494 = vadd.f32 %v2445, %v2493
        %v2495 = vpop.f32.mrf.mxu0
        %v2496 = vadd.f32 %v2447, %v2495
        %2497 = vmatmul.bf16.gmra.mxu0 %v2204
        %v2498 = vpop.f32.mrf.mxu0
        %v2499 = vadd.f32 %v2450, %v2498
        %v2500 = vpop.f32.mrf.mxu0
        %v2501 = vadd.f32 %v2452, %v2500
        %2502 = vdwg.mxu0
        %2503 = vmatpush.bf16.msra.mxu0 %v2356
        %2504 = vmatpush.bf16.msra.mxu0 %v2354
        %2505 = vmatpush.bf16.msra.mxu0 %v2352
        %2506 = vmatpush.bf16.msra.mxu0 %v2350
        %2507 = vmatpush.bf16.msra.mxu0 %v2348
        %2508 = vmatpush.bf16.msra.mxu0 %v2346
        %2509 = vmatpush.bf16.msra.mxu0 %v2344
        %2510 = vmatpush.bf16.msra.mxu0 %v2342
        %2511 = vmatmul.bf16.gmra.mxu0 %v2189
        %v2512 = vpop.f32.mrf.mxu0
        %v2513 = vadd.f32 %v2242, %v2512
        %v2514 = vpop.f32.mrf.mxu0
        %v2515 = vadd.f32 %v2242, %v2514
        %2516 = vmatmul.bf16.gmra.mxu0 %v2191
        %v2517 = vpop.f32.mrf.mxu0
        %v2518 = vadd.f32 %v2242, %v2517
        %v2519 = vpop.f32.mrf.mxu0
        %v2520 = vadd.f32 %v2242, %v2519
        %2521 = vmatmul.bf16.gmra.mxu0 %v2193
        %v2522 = vpop.f32.mrf.mxu0
        %v2523 = vadd.f32 %v2242, %v2522
        %v2524 = vpop.f32.mrf.mxu0
        %v2525 = vadd.f32 %v2242, %v2524
        %2526 = vmatmul.bf16.gmra.mxu0 %v2195
        %v2527 = vpop.f32.mrf.mxu0
        %v2528 = vadd.f32 %v2242, %v2527
        %v2529 = vpop.f32.mrf.mxu0
        %v2530 = vadd.f32 %v2242, %v2529
        %2531 = vmatmul.bf16.gmra.mxu0 %v2197
        %v2532 = vpop.f32.mrf.mxu0
        %v2533 = vadd.f32 %v2242, %v2532
        %v2534 = vpop.f32.mrf.mxu0
        %v2535 = vadd.f32 %v2242, %v2534
        %2536 = vmatmul.bf16.gmra.mxu0 %v2199
        %v2537 = vpop.f32.mrf.mxu0
        %v2538 = vadd.f32 %v2242, %v2537
        %v2539 = vpop.f32.mrf.mxu0
        %v2540 = vadd.f32 %v2242, %v2539
        %2541 = vmatmul.bf16.gmra.mxu0 %v2201
        %v2542 = vpop.f32.mrf.mxu0
        %v2543 = vadd.f32 %v2242, %v2542
        %v2544 = vpop.f32.mrf.mxu0
        %v2545 = vadd.f32 %v2242, %v2544
        %2546 = vmatmul.bf16.gmra.mxu0 %v2203
        %v2547 = vpop.f32.mrf.mxu0
        %v2548 = vadd.f32 %v2242, %v2547
        %v2549 = vpop.f32.mrf.mxu0
        %v2550 = vadd.f32 %v2242, %v2549
        %2551 = vdwg.mxu0
        %2552 = vmatpush.bf16.msra.mxu0 %v2372
        %2553 = vmatpush.bf16.msra.mxu0 %v2370
        %2554 = vmatpush.bf16.msra.mxu0 %v2368
        %2555 = vmatpush.bf16.msra.mxu0 %v2366
        %2556 = vmatpush.bf16.msra.mxu0 %v2364
        %2557 = vmatpush.bf16.msra.mxu0 %v2362
        %2558 = vmatpush.bf16.msra.mxu0 %v2360
        %2559 = vmatpush.bf16.msra.mxu0 %v2358
        %2560 = vmatmul.bf16.gmra.mxu0 %v2190
        %v2561 = vpop.f32.mrf.mxu0
        %v2562 = vadd.f32 %v2513, %v2561
        %v2563 = vpop.f32.mrf.mxu0
        %v2564 = vadd.f32 %v2515, %v2563
        %2565 = vmatmul.bf16.gmra.mxu0 %v2192
        %v2566 = vpop.f32.mrf.mxu0
        %v2567 = vadd.f32 %v2518, %v2566
        %v2568 = vpop.f32.mrf.mxu0
        %v2569 = vadd.f32 %v2520, %v2568
        %2570 = vmatmul.bf16.gmra.mxu0 %v2194
        %v2571 = vpop.f32.mrf.mxu0
        %v2572 = vadd.f32 %v2523, %v2571
        %v2573 = vpop.f32.mrf.mxu0
        %v2574 = vadd.f32 %v2525, %v2573
        %2575 = vmatmul.bf16.gmra.mxu0 %v2196
        %v2576 = vpop.f32.mrf.mxu0
        %v2577 = vadd.f32 %v2528, %v2576
        %v2578 = vpop.f32.mrf.mxu0
        %v2579 = vadd.f32 %v2530, %v2578
        %2580 = vmatmul.bf16.gmra.mxu0 %v2198
        %v2581 = vpop.f32.mrf.mxu0
        %v2582 = vadd.f32 %v2533, %v2581
        %v2583 = vpop.f32.mrf.mxu0
        %v2584 = vadd.f32 %v2535, %v2583
        %2585 = vmatmul.bf16.gmra.mxu0 %v2200
        %v2586 = vpop.f32.mrf.mxu0
        %v2587 = vadd.f32 %v2538, %v2586
        %v2588 = vpop.f32.mrf.mxu0
        %v2589 = vadd.f32 %v2540, %v2588
        %2590 = vmatmul.bf16.gmra.mxu0 %v2202
        %v2591 = vpop.f32.mrf.mxu0
        %v2592 = vadd.f32 %v2543, %v2591
        %v2593 = vpop.f32.mrf.mxu0
        %v2594 = vadd.f32 %v2545, %v2593
        %2595 = vmatmul.bf16.gmra.mxu0 %v2204
        %v2596 = vpop.f32.mrf.mxu0
        %v2597 = vadd.f32 %v2548, %v2596
        %v2598 = vpop.f32.mrf.mxu0
        %v2599 = vadd.f32 %v2550, %v2598
        %2600 = vdwg.mxu0
        %v2601 = vmax.f32 %v2464, 0.0
        %v2602 = vmax.f32 %v2562, 0.0
        %v2603 = vmax.f32 %v2466, 0.0
        %v2604 = vmax.f32 %v2564, 0.0
        %v2605 = vmax.f32 %v2469, 0.0
        %v2606 = vmax.f32 %v2567, 0.0
        %v2607 = vmax.f32 %v2471, 0.0
        %v2608 = vmax.f32 %v2569, 0.0
        %v2609 = vmax.f32 %v2474, 0.0
        %v2610 = vmax.f32 %v2572, 0.0
        %v2611 = vmax.f32 %v2476, 0.0
        %v2612 = vmax.f32 %v2574, 0.0
        %v2613 = vmax.f32 %v2479, 0.0
        %v2614 = vmax.f32 %v2577, 0.0
        %v2615 = vmax.f32 %v2481, 0.0
        %v2616 = vmax.f32 %v2579, 0.0
        %v2617 = vmax.f32 %v2484, 0.0
        %v2618 = vmax.f32 %v2582, 0.0
        %v2619 = vmax.f32 %v2486, 0.0
        %v2620 = vmax.f32 %v2584, 0.0
        %v2621 = vmax.f32 %v2489, 0.0
        %v2622 = vmax.f32 %v2587, 0.0
        %v2623 = vmax.f32 %v2491, 0.0
        %v2624 = vmax.f32 %v2589, 0.0
        %v2625 = vmax.f32 %v2494, 0.0
        %v2626 = vmax.f32 %v2592, 0.0
        %v2627 = vmax.f32 %v2496, 0.0
        %v2628 = vmax.f32 %v2594, 0.0
        %v2629 = vmax.f32 %v2499, 0.0
        %v2630 = vmax.f32 %v2597, 0.0
        %v2631 = vmax.f32 %v2501, 0.0
        %v2632 = vmax.f32 %v2599, 0.0
        %v2633 = vpack.c.bf16 %v2603, %v2601
        %v2634 = vpack.c.bf16 %v2604, %v2602
        %v2635 = vpack.c.bf16 %v2607, %v2605
        %v2636 = vpack.c.bf16 %v2608, %v2606
        %v2637 = vpack.c.bf16 %v2611, %v2609
        %v2638 = vpack.c.bf16 %v2612, %v2610
        %v2639 = vpack.c.bf16 %v2615, %v2613
        %v2640 = vpack.c.bf16 %v2616, %v2614
        %v2641 = vpack.c.bf16 %v2619, %v2617
        %v2642 = vpack.c.bf16 %v2620, %v2618
        %v2643 = vpack.c.bf16 %v2623, %v2621
        %v2644 = vpack.c.bf16 %v2624, %v2622
        %v2645 = vpack.c.bf16 %v2627, %v2625
        %v2646 = vpack.c.bf16 %v2628, %v2626
        %v2647 = vpack.c.bf16 %v2631, %v2629
        %v2648 = vpack.c.bf16 %v2632, %v2630
        %v2649 = vld [vmem:[#allocation8] sm:$0xf]
        %v2650 = vld [vmem:[#allocation8 + $0x4] sm:$0xf]
        %v2651 = vld [vmem:[#allocation8 + $0x8] sm:$0xf]
        %v2652 = vld [vmem:[#allocation8 + $0xc] sm:$0xf]
        %v2653 = vld [vmem:[#allocation8 + $0x10] sm:$0xf]
        %v2654 = vld [vmem:[#allocation8 + $0x14] sm:$0xf]
        %v2655 = vld [vmem:[#allocation8 + $0x18] sm:$0xf]
        %v2656 = vld [vmem:[#allocation8 + $0x1c] sm:$0xf]
        %v2657 = vld [vmem:[#allocation8 + $0x20] sm:$0xf]
        %v2658 = vld [vmem:[#allocation8 + $0x24] sm:$0xf]
        %v2659 = vld [vmem:[#allocation8 + $0x28] sm:$0xf]
        %v2660 = vld [vmem:[#allocation8 + $0x2c] sm:$0xf]
        %v2661 = vld [vmem:[#allocation8 + $0x30] sm:$0xf]
        %v2662 = vld [vmem:[#allocation8 + $0x34] sm:$0xf]
        %v2663 = vld [vmem:[#allocation8 + $0x38] sm:$0xf]
        %v2664 = vld [vmem:[#allocation8 + $0x3c] sm:$0xf]
        %v2665 = vld [vmem:[#allocation8 + $0x40] sm:$0xf]
        %v2666 = vld [vmem:[#allocation8 + $0x44] sm:$0xf]
        %v2667 = vld [vmem:[#allocation8 + $0x48] sm:$0xf]
        %v2668 = vld [vmem:[#allocation8 + $0x4c] sm:$0xf]
        %v2669 = vld [vmem:[#allocation8 + $0x50] sm:$0xf]
        %v2670 = vld [vmem:[#allocation8 + $0x54] sm:$0xf]
        %v2671 = vld [vmem:[#allocation8 + $0x58] sm:$0xf]
        %v2672 = vld [vmem:[#allocation8 + $0x5c] sm:$0xf]
        %v2673 = vld [vmem:[#allocation8 + $0x60] sm:$0xf]
        %v2674 = vld [vmem:[#allocation8 + $0x64] sm:$0xf]
        %v2675 = vld [vmem:[#allocation8 + $0x68] sm:$0xf]
        %v2676 = vld [vmem:[#allocation8 + $0x6c] sm:$0xf]
        %v2677 = vld [vmem:[#allocation8 + $0x70] sm:$0xf]
        %v2678 = vld [vmem:[#allocation8 + $0x74] sm:$0xf]
        %v2679 = vld [vmem:[#allocation8 + $0x78] sm:$0xf]
        %v2680 = vld [vmem:[#allocation8 + $0x7c] sm:$0xf]
        %v2681 = vld [vmem:[#allocation10] sm:$0x1]
        %v2683 = vperm.slane %v2681, 0
        %v2717 = vunpack.c.l.b16 %v2649
        %v2718 = vunpack.c.l.b16 %v2650
        %v2719 = vunpack.c.l.b16 %v2651
        %v2720 = vunpack.c.l.b16 %v2652
        %v2721 = vunpack.c.l.b16 %v2653
        %v2722 = vunpack.c.l.b16 %v2654
        %v2723 = vunpack.c.l.b16 %v2655
        %v2724 = vunpack.c.l.b16 %v2656
        %v2725 = vunpack.c.l.b16 %v2657
        %v2726 = vunpack.c.l.b16 %v2658
        %v2727 = vunpack.c.l.b16 %v2659
        %v2728 = vunpack.c.l.b16 %v2660
        %v2729 = vunpack.c.l.b16 %v2661
        %v2730 = vunpack.c.l.b16 %v2662
        %v2731 = vunpack.c.l.b16 %v2663
        %v2732 = vunpack.c.l.b16 %v2664
        %v2733 = vunpack.c.l.b16 %v2665
        %v2734 = vunpack.c.l.b16 %v2666
        %v2735 = vunpack.c.l.b16 %v2667
        %v2736 = vunpack.c.l.b16 %v2668
        %v2737 = vunpack.c.l.b16 %v2669
        %v2738 = vunpack.c.l.b16 %v2670
        %v2739 = vunpack.c.l.b16 %v2671
        %v2740 = vunpack.c.l.b16 %v2672
        %v2741 = vunpack.c.l.b16 %v2673
        %v2742 = vunpack.c.l.b16 %v2674
        %v2743 = vunpack.c.l.b16 %v2675
        %v2744 = vunpack.c.l.b16 %v2676
        %v2745 = vunpack.c.l.b16 %v2677
        %v2746 = vunpack.c.l.b16 %v2678
        %v2747 = vunpack.c.l.b16 %v2679
        %v2748 = vunpack.c.l.b16 %v2680
        %v2749 = vpack.c.b16 %v2718, %v2717
        %v2750 = vpack.c.b16 %v2720, %v2719
        %v2751 = vpack.c.b16 %v2722, %v2721
        %v2752 = vpack.c.b16 %v2724, %v2723
        %v2753 = vpack.c.b16 %v2726, %v2725
        %v2754 = vpack.c.b16 %v2728, %v2727
        %v2755 = vpack.c.b16 %v2730, %v2729
        %v2756 = vpack.c.b16 %v2732, %v2731
        %v2757 = vpack.c.b16 %v2734, %v2733
        %v2758 = vpack.c.b16 %v2736, %v2735
        %v2759 = vpack.c.b16 %v2738, %v2737
        %v2760 = vpack.c.b16 %v2740, %v2739
        %v2761 = vpack.c.b16 %v2742, %v2741
        %v2762 = vpack.c.b16 %v2744, %v2743
        %v2763 = vpack.c.b16 %v2746, %v2745
        %v2764 = vpack.c.b16 %v2748, %v2747
        %2781 = vmatpush.bf16.msra.mxu0 %v2756
        %2782 = vmatpush.bf16.msra.mxu0 %v2755
        %2783 = vmatpush.bf16.msra.mxu0 %v2754
        %2784 = vmatpush.bf16.msra.mxu0 %v2753
        %2785 = vmatpush.bf16.msra.mxu0 %v2752
        %2786 = vmatpush.bf16.msra.mxu0 %v2751
        %2787 = vmatpush.bf16.msra.mxu0 %v2750
        %2788 = vmatpush.bf16.msra.mxu0 %v2749
        %2789 = vmatmul.bf16.gmra.mxu0 %v2633
        %v2790 = vpop.f32.mrf.mxu0
        %v2791 = vadd.f32 %v2683, %v2790
        %v2792 = vpop.f32.mrf.mxu0
        %v2793 = vadd.f32 %v2683, %v2792
        %2794 = vmatmul.bf16.gmra.mxu0 %v2635
        %v2795 = vpop.f32.mrf.mxu0
        %v2796 = vadd.f32 %v2683, %v2795
        %v2797 = vpop.f32.mrf.mxu0
        %v2798 = vadd.f32 %v2683, %v2797
        %2799 = vmatmul.bf16.gmra.mxu0 %v2637
        %v2800 = vpop.f32.mrf.mxu0
        %v2801 = vadd.f32 %v2683, %v2800
        %v2802 = vpop.f32.mrf.mxu0
        %v2803 = vadd.f32 %v2683, %v2802
        %2804 = vmatmul.bf16.gmra.mxu0 %v2639
        %v2805 = vpop.f32.mrf.mxu0
        %v2806 = vadd.f32 %v2683, %v2805
        %v2807 = vpop.f32.mrf.mxu0
        %v2808 = vadd.f32 %v2683, %v2807
        %2809 = vmatmul.bf16.gmra.mxu0 %v2641
        %v2810 = vpop.f32.mrf.mxu0
        %v2811 = vadd.f32 %v2683, %v2810
        %v2812 = vpop.f32.mrf.mxu0
        %v2813 = vadd.f32 %v2683, %v2812
        %2814 = vmatmul.bf16.gmra.mxu0 %v2643
        %v2815 = vpop.f32.mrf.mxu0
        %v2816 = vadd.f32 %v2683, %v2815
        %v2817 = vpop.f32.mrf.mxu0
        %v2818 = vadd.f32 %v2683, %v2817
        %2819 = vmatmul.bf16.gmra.mxu0 %v2645
        %v2820 = vpop.f32.mrf.mxu0
        %v2821 = vadd.f32 %v2683, %v2820
        %v2822 = vpop.f32.mrf.mxu0
        %v2823 = vadd.f32 %v2683, %v2822
        %2824 = vmatmul.bf16.gmra.mxu0 %v2647
        %v2825 = vpop.f32.mrf.mxu0
        %v2826 = vadd.f32 %v2683, %v2825
        %v2827 = vpop.f32.mrf.mxu0
        %v2828 = vadd.f32 %v2683, %v2827
        %2829 = vdwg.mxu0
        %2830 = vmatpush.bf16.msra.mxu0 %v2764
        %2831 = vmatpush.bf16.msra.mxu0 %v2763
        %2832 = vmatpush.bf16.msra.mxu0 %v2762
        %2833 = vmatpush.bf16.msra.mxu0 %v2761
        %2834 = vmatpush.bf16.msra.mxu0 %v2760
        %2835 = vmatpush.bf16.msra.mxu0 %v2759
        %2836 = vmatpush.bf16.msra.mxu0 %v2758
        %2837 = vmatpush.bf16.msra.mxu0 %v2757
        %2838 = vmatmul.bf16.gmra.mxu0 %v2634
        %v2839 = vpop.f32.mrf.mxu0
        %v2840 = vadd.f32 %v2791, %v2839
        %v2841 = vpop.f32.mrf.mxu0
        %v2842 = vadd.f32 %v2793, %v2841
        %2843 = vmatmul.bf16.gmra.mxu0 %v2636
        %v2844 = vpop.f32.mrf.mxu0
        %v2845 = vadd.f32 %v2796, %v2844
        %v2846 = vpop.f32.mrf.mxu0
        %v2847 = vadd.f32 %v2798, %v2846
        %2848 = vmatmul.bf16.gmra.mxu0 %v2638
        %v2849 = vpop.f32.mrf.mxu0
        %v2850 = vadd.f32 %v2801, %v2849
        %v2851 = vpop.f32.mrf.mxu0
        %v2852 = vadd.f32 %v2803, %v2851
        %2853 = vmatmul.bf16.gmra.mxu0 %v2640
        %v2854 = vpop.f32.mrf.mxu0
        %v2855 = vadd.f32 %v2806, %v2854
        %v2856 = vpop.f32.mrf.mxu0
        %v2857 = vadd.f32 %v2808, %v2856
        %2858 = vmatmul.bf16.gmra.mxu0 %v2642
        %v2859 = vpop.f32.mrf.mxu0
        %v2860 = vadd.f32 %v2811, %v2859
        %v2861 = vpop.f32.mrf.mxu0
        %v2862 = vadd.f32 %v2813, %v2861
        %2863 = vmatmul.bf16.gmra.mxu0 %v2644
        %v2864 = vpop.f32.mrf.mxu0
        %v2865 = vadd.f32 %v2816, %v2864
        %v2866 = vpop.f32.mrf.mxu0
        %v2867 = vadd.f32 %v2818, %v2866
        %2868 = vmatmul.bf16.gmra.mxu0 %v2646
        %v2869 = vpop.f32.mrf.mxu0
        %v2870 = vadd.f32 %v2821, %v2869
        %v2871 = vpop.f32.mrf.mxu0
        %v2872 = vadd.f32 %v2823, %v2871
        %2873 = vmatmul.bf16.gmra.mxu0 %v2648
        %v2874 = vpop.f32.mrf.mxu0
        %v2875 = vadd.f32 %v2826, %v2874
        %v2876 = vpop.f32.mrf.mxu0
        %v2877 = vadd.f32 %v2828, %v2876
        %2878 = vdwg.mxu0
        %v2879 = vpack.c.bf16 %v2842, %v2840
        %v2880 = vpack.c.bf16 %v2847, %v2845
        %v2881 = vpack.c.bf16 %v2852, %v2850
        %v2882 = vpack.c.bf16 %v2857, %v2855
        %v2883 = vpack.c.bf16 %v2862, %v2860
        %v2884 = vpack.c.bf16 %v2867, %v2865
        %v2885 = vpack.c.bf16 %v2872, %v2870
        %v2886 = vpack.c.bf16 %v2877, %v2875
        %v2887 = vld [vmem:[#allocation11] sm:$0xf]
        %v2888 = vld [vmem:[#allocation11 + $0x4] sm:$0xf]
        %v2889 = vld [vmem:[#allocation11 + $0x8] sm:$0xf]
        %v2890 = vld [vmem:[#allocation11 + $0xc] sm:$0xf]
        %v2891 = vld [vmem:[#allocation11 + $0x10] sm:$0xf]
        %v2892 = vld [vmem:[#allocation11 + $0x14] sm:$0xf]
        %v2893 = vld [vmem:[#allocation11 + $0x18] sm:$0xf]
        %v2894 = vld [vmem:[#allocation11 + $0x1c] sm:$0xf]
        %v2895 = vld [vmem:[#allocation11 + $0x20] sm:$0xf]
        %v2896 = vld [vmem:[#allocation11 + $0x24] sm:$0xf]
        %v2897 = vld [vmem:[#allocation11 + $0x28] sm:$0xf]
        %v2898 = vld [vmem:[#allocation11 + $0x2c] sm:$0xf]
        %v2899 = vld [vmem:[#allocation11 + $0x30] sm:$0xf]
        %v2900 = vld [vmem:[#allocation11 + $0x34] sm:$0xf]
        %v2901 = vld [vmem:[#allocation11 + $0x38] sm:$0xf]
        %v2902 = vld [vmem:[#allocation11 + $0x3c] sm:$0xf]
        %v2903 = vld [vmem:[%s6] sm:$0x1]
        %v2905 = vperm.slane %v2903, 0
        %v2923 = vunpack.c.l.b16 %v2887
        %v2924 = vunpack.c.l.b16 %v2888
        %v2925 = vunpack.c.l.b16 %v2889
        %v2926 = vunpack.c.l.b16 %v2890
        %v2927 = vunpack.c.l.b16 %v2891
        %v2928 = vunpack.c.l.b16 %v2892
        %v2929 = vunpack.c.l.b16 %v2893
        %v2930 = vunpack.c.l.b16 %v2894
        %v2931 = vunpack.c.l.b16 %v2895
        %v2932 = vunpack.c.l.b16 %v2896
        %v2933 = vunpack.c.l.b16 %v2897
        %v2934 = vunpack.c.l.b16 %v2898
        %v2935 = vunpack.c.l.b16 %v2899
        %v2936 = vunpack.c.l.b16 %v2900
        %v2937 = vunpack.c.l.b16 %v2901
        %v2938 = vunpack.c.l.b16 %v2902
        %v2939 = vpack.c.b16 %v2924, %v2923
        %v2940 = vpack.c.b16 %v2926, %v2925
        %v2941 = vpack.c.b16 %v2928, %v2927
        %v2942 = vpack.c.b16 %v2930, %v2929
        %v2943 = vpack.c.b16 %v2932, %v2931
        %v2944 = vpack.c.b16 %v2934, %v2933
        %v2945 = vpack.c.b16 %v2936, %v2935
        %v2946 = vpack.c.b16 %v2938, %v2937
        %2955 = vmatpush.bf16.msra.mxu0 %v2946
        %2956 = vmatpush.bf16.msra.mxu0 %v2945
        %2957 = vmatpush.bf16.msra.mxu0 %v2944
        %2958 = vmatpush.bf16.msra.mxu0 %v2943
        %2959 = vmatpush.bf16.msra.mxu0 %v2942
        %2960 = vmatpush.bf16.msra.mxu0 %v2941
        %2961 = vmatpush.bf16.msra.mxu0 %v2940
        %2962 = vmatpush.bf16.msra.mxu0 %v2939
        %2963 = vmatmul.bf16.gmra.mxu0 %v2879
        %v2964 = vpop.f32.mrf.mxu0
        %v2965 = vadd.f32 %v2905, %v2964
        %v2966 = vpop.f32.mrf.mxu0
        %v2967 = vadd.f32 %v2905, %v2966
        %2968 = vmatmul.bf16.gmra.mxu0 %v2880
        %v2969 = vpop.f32.mrf.mxu0
        %v2970 = vadd.f32 %v2905, %v2969
        %v2971 = vpop.f32.mrf.mxu0
        %v2972 = vadd.f32 %v2905, %v2971
        %2973 = vmatmul.bf16.gmra.mxu0 %v2881
        %v2974 = vpop.f32.mrf.mxu0
        %v2975 = vadd.f32 %v2905, %v2974
        %v2976 = vpop.f32.mrf.mxu0
        %v2977 = vadd.f32 %v2905, %v2976
        %2978 = vmatmul.bf16.gmra.mxu0 %v2882
        %v2979 = vpop.f32.mrf.mxu0
        %v2980 = vadd.f32 %v2905, %v2979
        %v2981 = vpop.f32.mrf.mxu0
        %v2982 = vadd.f32 %v2905, %v2981
        %2983 = vmatmul.bf16.gmra.mxu0 %v2883
        %v2984 = vpop.f32.mrf.mxu0
        %v2985 = vadd.f32 %v2905, %v2984
        %v2986 = vpop.f32.mrf.mxu0
        %v2987 = vadd.f32 %v2905, %v2986
        %2988 = vmatmul.bf16.gmra.mxu0 %v2884
        %v2989 = vpop.f32.mrf.mxu0
        %v2990 = vadd.f32 %v2905, %v2989
        %v2991 = vpop.f32.mrf.mxu0
        %v2992 = vadd.f32 %v2905, %v2991
        %2993 = vmatmul.bf16.gmra.mxu0 %v2885
        %v2994 = vpop.f32.mrf.mxu0
        %v2995 = vadd.f32 %v2905, %v2994
        %v2996 = vpop.f32.mrf.mxu0
        %v2997 = vadd.f32 %v2905, %v2996
        %2998 = vmatmul.bf16.gmra.mxu0 %v2886
        %v2999 = vpop.f32.mrf.mxu0
        %v3000 = vadd.f32 %v2905, %v2999
        %v3001 = vpop.f32.mrf.mxu0
        %v3002 = vadd.f32 %v2905, %v3001
        %3003 = vdwg.mxu0
        %v3004 = vmax.f32 %v2965, 0.0
        %v3005 = vmax.f32 %v2967, 0.0
        %v3006 = vmax.f32 %v2970, 0.0
        %v3007 = vmax.f32 %v2972, 0.0
        %v3008 = vmax.f32 %v2975, 0.0
        %v3009 = vmax.f32 %v2977, 0.0
        %v3010 = vmax.f32 %v2980, 0.0
        %v3011 = vmax.f32 %v2982, 0.0
        %v3012 = vmax.f32 %v2985, 0.0
        %v3013 = vmax.f32 %v2987, 0.0
        %v3014 = vmax.f32 %v2990, 0.0
        %v3015 = vmax.f32 %v2992, 0.0
        %v3016 = vmax.f32 %v2995, 0.0
        %v3017 = vmax.f32 %v2997, 0.0
        %v3018 = vmax.f32 %v3000, 0.0
        %v3019 = vmax.f32 %v3002, 0.0
        %v3020 = vpack.c.bf16 %v3005, %v3004
        %v3021 = vpack.c.bf16 %v3007, %v3006
        %v3022 = vpack.c.bf16 %v3009, %v3008
        %v3023 = vpack.c.bf16 %v3011, %v3010
        %v3024 = vpack.c.bf16 %v3013, %v3012
        %v3025 = vpack.c.bf16 %v3015, %v3014
        %v3026 = vpack.c.bf16 %v3017, %v3016
        %v3027 = vpack.c.bf16 %v3019, %v3018
        %s3028 = scalar_lea.vmem [#allocation11], 64
        %v3029 = vld [vmem:[%s3028] sm:$0xf]
        %v3030 = vld [vmem:[%s3028 + $0x4] sm:$0xf]
        %v3031 = vld [vmem:[%s3028 + $0x8] sm:$0xf]
        %v3032 = vld [vmem:[%s3028 + $0xc] sm:$0xf]
        %v3033 = vld [vmem:[%s3028 + $0x10] sm:$0xf]
        %v3034 = vld [vmem:[%s3028 + $0x14] sm:$0xf]
        %v3035 = vld [vmem:[%s3028 + $0x18] sm:$0xf]
        %v3036 = vld [vmem:[%s3028 + $0x1c] sm:$0xf]
        %v3037 = vld [vmem:[%s3028 + $0x20] sm:$0xf]
        %v3038 = vld [vmem:[%s3028 + $0x24] sm:$0xf]
        %v3039 = vld [vmem:[%s3028 + $0x28] sm:$0xf]
        %v3040 = vld [vmem:[%s3028 + $0x2c] sm:$0xf]
        %v3041 = vld [vmem:[%s3028 + $0x30] sm:$0xf]
        %v3042 = vld [vmem:[%s3028 + $0x34] sm:$0xf]
        %v3043 = vld [vmem:[%s3028 + $0x38] sm:$0xf]
        %v3044 = vld [vmem:[%s3028 + $0x3c] sm:$0xf]
        %s3045 = scalar_lea.vmem %s6, 1
        %v3046 = vld [vmem:[%s3045] sm:$0x1]
        %v3048 = vperm.slane %v3046, 0
        %v3066 = vunpack.c.l.b16 %v3029
        %v3067 = vunpack.c.l.b16 %v3030
        %v3068 = vunpack.c.l.b16 %v3031
        %v3069 = vunpack.c.l.b16 %v3032
        %v3070 = vunpack.c.l.b16 %v3033
        %v3071 = vunpack.c.l.b16 %v3034
        %v3072 = vunpack.c.l.b16 %v3035
        %v3073 = vunpack.c.l.b16 %v3036
        %v3074 = vunpack.c.l.b16 %v3037
        %v3075 = vunpack.c.l.b16 %v3038
        %v3076 = vunpack.c.l.b16 %v3039
        %v3077 = vunpack.c.l.b16 %v3040
        %v3078 = vunpack.c.l.b16 %v3041
        %v3079 = vunpack.c.l.b16 %v3042
        %v3080 = vunpack.c.l.b16 %v3043
        %v3081 = vunpack.c.l.b16 %v3044
        %v3082 = vpack.c.b16 %v3067, %v3066
        %v3083 = vpack.c.b16 %v3069, %v3068
        %v3084 = vpack.c.b16 %v3071, %v3070
        %v3085 = vpack.c.b16 %v3073, %v3072
        %v3086 = vpack.c.b16 %v3075, %v3074
        %v3087 = vpack.c.b16 %v3077, %v3076
        %v3088 = vpack.c.b16 %v3079, %v3078
        %v3089 = vpack.c.b16 %v3081, %v3080
        %3098 = vmatpush.bf16.msra.mxu0 %v3089
        %3099 = vmatpush.bf16.msra.mxu0 %v3088
        %3100 = vmatpush.bf16.msra.mxu0 %v3087
        %3101 = vmatpush.bf16.msra.mxu0 %v3086
        %3102 = vmatpush.bf16.msra.mxu0 %v3085
        %3103 = vmatpush.bf16.msra.mxu0 %v3084
        %3104 = vmatpush.bf16.msra.mxu0 %v3083
        %3105 = vmatpush.bf16.msra.mxu0 %v3082
        %3106 = vmatmul.bf16.gmra.mxu0 %v3020
        %v3107 = vpop.f32.mrf.mxu0
        %v3108 = vadd.f32 %v3048, %v3107
        %v3109 = vpop.f32.mrf.mxu0
        %v3110 = vadd.f32 %v3048, %v3109
        %3111 = vmatmul.bf16.gmra.mxu0 %v3021
        %v3112 = vpop.f32.mrf.mxu0
        %v3113 = vadd.f32 %v3048, %v3112
        %v3114 = vpop.f32.mrf.mxu0
        %v3115 = vadd.f32 %v3048, %v3114
        %3116 = vmatmul.bf16.gmra.mxu0 %v3022
        %v3117 = vpop.f32.mrf.mxu0
        %v3118 = vadd.f32 %v3048, %v3117
        %v3119 = vpop.f32.mrf.mxu0
        %v3120 = vadd.f32 %v3048, %v3119
        %3121 = vmatmul.bf16.gmra.mxu0 %v3023
        %v3122 = vpop.f32.mrf.mxu0
        %v3123 = vadd.f32 %v3048, %v3122
        %v3124 = vpop.f32.mrf.mxu0
        %v3125 = vadd.f32 %v3048, %v3124
        %3126 = vmatmul.bf16.gmra.mxu0 %v3024
        %v3127 = vpop.f32.mrf.mxu0
        %v3128 = vadd.f32 %v3048, %v3127
        %v3129 = vpop.f32.mrf.mxu0
        %v3130 = vadd.f32 %v3048, %v3129
        %3131 = vmatmul.bf16.gmra.mxu0 %v3025
        %v3132 = vpop.f32.mrf.mxu0
        %v3133 = vadd.f32 %v3048, %v3132
        %v3134 = vpop.f32.mrf.mxu0
        %v3135 = vadd.f32 %v3048, %v3134
        %3136 = vmatmul.bf16.gmra.mxu0 %v3026
        %v3137 = vpop.f32.mrf.mxu0
        %v3138 = vadd.f32 %v3048, %v3137
        %v3139 = vpop.f32.mrf.mxu0
        %v3140 = vadd.f32 %v3048, %v3139
        %3141 = vmatmul.bf16.gmra.mxu0 %v3027
        %v3142 = vpop.f32.mrf.mxu0
        %v3143 = vadd.f32 %v3048, %v3142
        %v3144 = vpop.f32.mrf.mxu0
        %v3145 = vadd.f32 %v3048, %v3144
        %3146 = vdwg.mxu0
        %v3147 = vmax.f32 %v3108, 0.0
        %v3148 = vmax.f32 %v3110, 0.0
        %v3149 = vmax.f32 %v3113, 0.0
        %v3150 = vmax.f32 %v3115, 0.0
        %v3151 = vmax.f32 %v3118, 0.0
        %v3152 = vmax.f32 %v3120, 0.0
        %v3153 = vmax.f32 %v3123, 0.0
        %v3154 = vmax.f32 %v3125, 0.0
        %v3155 = vmax.f32 %v3128, 0.0
        %v3156 = vmax.f32 %v3130, 0.0
        %v3157 = vmax.f32 %v3133, 0.0
        %v3158 = vmax.f32 %v3135, 0.0
        %v3159 = vmax.f32 %v3138, 0.0
        %v3160 = vmax.f32 %v3140, 0.0
        %v3161 = vmax.f32 %v3143, 0.0
        %v3162 = vmax.f32 %v3145, 0.0
        %v3163 = vpack.c.bf16 %v3148, %v3147
        %v3164 = vpack.c.bf16 %v3150, %v3149
        %v3165 = vpack.c.bf16 %v3152, %v3151
        %v3166 = vpack.c.bf16 %v3154, %v3153
        %v3167 = vpack.c.bf16 %v3156, %v3155
        %v3168 = vpack.c.bf16 %v3158, %v3157
        %v3169 = vpack.c.bf16 %v3160, %v3159
        %v3170 = vpack.c.bf16 %v3162, %v3161
        %s3171 = scalar_lea.vmem [#allocation11], 128
        %v3172 = vld [vmem:[%s3171] sm:$0xf]
        %v3173 = vld [vmem:[%s3171 + $0x4] sm:$0xf]
        %v3174 = vld [vmem:[%s3171 + $0x8] sm:$0xf]
        %v3175 = vld [vmem:[%s3171 + $0xc] sm:$0xf]
        %v3176 = vld [vmem:[%s3171 + $0x10] sm:$0xf]
        %v3177 = vld [vmem:[%s3171 + $0x14] sm:$0xf]
        %v3178 = vld [vmem:[%s3171 + $0x18] sm:$0xf]
        %v3179 = vld [vmem:[%s3171 + $0x1c] sm:$0xf]
        %v3180 = vld [vmem:[%s3171 + $0x20] sm:$0xf]
        %v3181 = vld [vmem:[%s3171 + $0x24] sm:$0xf]
        %v3182 = vld [vmem:[%s3171 + $0x28] sm:$0xf]
        %v3183 = vld [vmem:[%s3171 + $0x2c] sm:$0xf]
        %v3184 = vld [vmem:[%s3171 + $0x30] sm:$0xf]
        %v3185 = vld [vmem:[%s3171 + $0x34] sm:$0xf]
        %v3186 = vld [vmem:[%s3171 + $0x38] sm:$0xf]
        %v3187 = vld [vmem:[%s3171 + $0x3c] sm:$0xf]
        %s3188 = scalar_lea.vmem %s6, 2
        %v3189 = vld [vmem:[%s3188] sm:$0x1]
        %v3191 = vperm.slane %v3189, 0
        %v3209 = vunpack.c.l.b16 %v3172
        %v3210 = vunpack.c.l.b16 %v3173
        %v3211 = vunpack.c.l.b16 %v3174
        %v3212 = vunpack.c.l.b16 %v3175
        %v3213 = vunpack.c.l.b16 %v3176
        %v3214 = vunpack.c.l.b16 %v3177
        %v3215 = vunpack.c.l.b16 %v3178
        %v3216 = vunpack.c.l.b16 %v3179
        %v3217 = vunpack.c.l.b16 %v3180
        %v3218 = vunpack.c.l.b16 %v3181
        %v3219 = vunpack.c.l.b16 %v3182
        %v3220 = vunpack.c.l.b16 %v3183
        %v3221 = vunpack.c.l.b16 %v3184
        %v3222 = vunpack.c.l.b16 %v3185
        %v3223 = vunpack.c.l.b16 %v3186
        %v3224 = vunpack.c.l.b16 %v3187
        %v3225 = vpack.c.b16 %v3210, %v3209
        %v3226 = vpack.c.b16 %v3212, %v3211
        %v3227 = vpack.c.b16 %v3214, %v3213
        %v3228 = vpack.c.b16 %v3216, %v3215
        %v3229 = vpack.c.b16 %v3218, %v3217
        %v3230 = vpack.c.b16 %v3220, %v3219
        %v3231 = vpack.c.b16 %v3222, %v3221
        %v3232 = vpack.c.b16 %v3224, %v3223
        %3241 = vmatpush.bf16.msra.mxu0 %v3232
        %3242 = vmatpush.bf16.msra.mxu0 %v3231
        %3243 = vmatpush.bf16.msra.mxu0 %v3230
        %3244 = vmatpush.bf16.msra.mxu0 %v3229
        %3245 = vmatpush.bf16.msra.mxu0 %v3228
        %3246 = vmatpush.bf16.msra.mxu0 %v3227
        %3247 = vmatpush.bf16.msra.mxu0 %v3226
        %3248 = vmatpush.bf16.msra.mxu0 %v3225
        %3249 = vmatmul.bf16.gmra.mxu0 %v3163
        %v3250 = vpop.f32.mrf.mxu0
        %v3251 = vadd.f32 %v3191, %v3250
        %v3252 = vpop.f32.mrf.mxu0
        %v3253 = vadd.f32 %v3191, %v3252
        %3254 = vmatmul.bf16.gmra.mxu0 %v3164
        %v3255 = vpop.f32.mrf.mxu0
        %v3256 = vadd.f32 %v3191, %v3255
        %v3257 = vpop.f32.mrf.mxu0
        %v3258 = vadd.f32 %v3191, %v3257
        %3259 = vmatmul.bf16.gmra.mxu0 %v3165
        %v3260 = vpop.f32.mrf.mxu0
        %v3261 = vadd.f32 %v3191, %v3260
        %v3262 = vpop.f32.mrf.mxu0
        %v3263 = vadd.f32 %v3191, %v3262
        %3264 = vmatmul.bf16.gmra.mxu0 %v3166
        %v3265 = vpop.f32.mrf.mxu0
        %v3266 = vadd.f32 %v3191, %v3265
        %v3267 = vpop.f32.mrf.mxu0
        %v3268 = vadd.f32 %v3191, %v3267
        %3269 = vmatmul.bf16.gmra.mxu0 %v3167
        %v3270 = vpop.f32.mrf.mxu0
        %v3271 = vadd.f32 %v3191, %v3270
        %v3272 = vpop.f32.mrf.mxu0
        %v3273 = vadd.f32 %v3191, %v3272
        %3274 = vmatmul.bf16.gmra.mxu0 %v3168
        %v3275 = vpop.f32.mrf.mxu0
        %v3276 = vadd.f32 %v3191, %v3275
        %v3277 = vpop.f32.mrf.mxu0
        %v3278 = vadd.f32 %v3191, %v3277
        %3279 = vmatmul.bf16.gmra.mxu0 %v3169
        %v3280 = vpop.f32.mrf.mxu0
        %v3281 = vadd.f32 %v3191, %v3280
        %v3282 = vpop.f32.mrf.mxu0
        %v3283 = vadd.f32 %v3191, %v3282
        %3284 = vmatmul.bf16.gmra.mxu0 %v3170
        %v3285 = vpop.f32.mrf.mxu0
        %v3286 = vadd.f32 %v3191, %v3285
        %v3287 = vpop.f32.mrf.mxu0
        %v3288 = vadd.f32 %v3191, %v3287
        %3289 = vdwg.mxu0
        %v3290 = vmax.f32 %v3251, 0.0
        %v3291 = vmax.f32 %v3253, 0.0
        %v3292 = vmax.f32 %v3256, 0.0
        %v3293 = vmax.f32 %v3258, 0.0
        %v3294 = vmax.f32 %v3261, 0.0
        %v3295 = vmax.f32 %v3263, 0.0
        %v3296 = vmax.f32 %v3266, 0.0
        %v3297 = vmax.f32 %v3268, 0.0
        %v3298 = vmax.f32 %v3271, 0.0
        %v3299 = vmax.f32 %v3273, 0.0
        %v3300 = vmax.f32 %v3276, 0.0
        %v3301 = vmax.f32 %v3278, 0.0
        %v3302 = vmax.f32 %v3281, 0.0
        %v3303 = vmax.f32 %v3283, 0.0
        %v3304 = vmax.f32 %v3286, 0.0
        %v3305 = vmax.f32 %v3288, 0.0
        %v3306 = vpack.c.bf16 %v3291, %v3290
        %v3307 = vpack.c.bf16 %v3293, %v3292
        %v3308 = vpack.c.bf16 %v3295, %v3294
        %v3309 = vpack.c.bf16 %v3297, %v3296
        %v3310 = vpack.c.bf16 %v3299, %v3298
        %v3311 = vpack.c.bf16 %v3301, %v3300
        %v3312 = vpack.c.bf16 %v3303, %v3302
        %v3313 = vpack.c.bf16 %v3305, %v3304
        %s3314 = scalar_lea.vmem [#allocation11], 192
        %v3315 = vld [vmem:[%s3314] sm:$0xf]
        %v3316 = vld [vmem:[%s3314 + $0x4] sm:$0xf]
        %v3317 = vld [vmem:[%s3314 + $0x8] sm:$0xf]
        %v3318 = vld [vmem:[%s3314 + $0xc] sm:$0xf]
        %v3319 = vld [vmem:[%s3314 + $0x10] sm:$0xf]
        %v3320 = vld [vmem:[%s3314 + $0x14] sm:$0xf]
        %v3321 = vld [vmem:[%s3314 + $0x18] sm:$0xf]
        %v3322 = vld [vmem:[%s3314 + $0x1c] sm:$0xf]
        %v3323 = vld [vmem:[%s3314 + $0x20] sm:$0xf]
        %v3324 = vld [vmem:[%s3314 + $0x24] sm:$0xf]
        %v3325 = vld [vmem:[%s3314 + $0x28] sm:$0xf]
        %v3326 = vld [vmem:[%s3314 + $0x2c] sm:$0xf]
        %v3327 = vld [vmem:[%s3314 + $0x30] sm:$0xf]
        %v3328 = vld [vmem:[%s3314 + $0x34] sm:$0xf]
        %v3329 = vld [vmem:[%s3314 + $0x38] sm:$0xf]
        %v3330 = vld [vmem:[%s3314 + $0x3c] sm:$0xf]
        %s3331 = scalar_lea.vmem %s6, 3
        %v3332 = vld [vmem:[%s3331] sm:$0x1]
        %v3334 = vperm.slane %v3332, 0
        %v3352 = vunpack.c.l.b16 %v3315
        %v3353 = vunpack.c.l.b16 %v3316
        %v3354 = vunpack.c.l.b16 %v3317
        %v3355 = vunpack.c.l.b16 %v3318
        %v3356 = vunpack.c.l.b16 %v3319
        %v3357 = vunpack.c.l.b16 %v3320
        %v3358 = vunpack.c.l.b16 %v3321
        %v3359 = vunpack.c.l.b16 %v3322
        %v3360 = vunpack.c.l.b16 %v3323
        %v3361 = vunpack.c.l.b16 %v3324
        %v3362 = vunpack.c.l.b16 %v3325
        %v3363 = vunpack.c.l.b16 %v3326
        %v3364 = vunpack.c.l.b16 %v3327
        %v3365 = vunpack.c.l.b16 %v3328
        %v3366 = vunpack.c.l.b16 %v3329
        %v3367 = vunpack.c.l.b16 %v3330
        %v3368 = vpack.c.b16 %v3353, %v3352
        %v3369 = vpack.c.b16 %v3355, %v3354
        %v3370 = vpack.c.b16 %v3357, %v3356
        %v3371 = vpack.c.b16 %v3359, %v3358
        %v3372 = vpack.c.b16 %v3361, %v3360
        %v3373 = vpack.c.b16 %v3363, %v3362
        %v3374 = vpack.c.b16 %v3365, %v3364
        %v3375 = vpack.c.b16 %v3367, %v3366
        %3384 = vmatpush.bf16.msra.mxu0 %v3375
        %3385 = vmatpush.bf16.msra.mxu0 %v3374
        %3386 = vmatpush.bf16.msra.mxu0 %v3373
        %3387 = vmatpush.bf16.msra.mxu0 %v3372
        %3388 = vmatpush.bf16.msra.mxu0 %v3371
        %3389 = vmatpush.bf16.msra.mxu0 %v3370
        %3390 = vmatpush.bf16.msra.mxu0 %v3369
        %3391 = vmatpush.bf16.msra.mxu0 %v3368
        %3392 = vmatmul.bf16.gmra.mxu0 %v3306
        %v3393 = vpop.f32.mrf.mxu0
        %v3394 = vadd.f32 %v3334, %v3393
        %v3395 = vpop.f32.mrf.mxu0
        %v3396 = vadd.f32 %v3334, %v3395
        %3397 = vmatmul.bf16.gmra.mxu0 %v3307
        %v3398 = vpop.f32.mrf.mxu0
        %v3399 = vadd.f32 %v3334, %v3398
        %v3400 = vpop.f32.mrf.mxu0
        %v3401 = vadd.f32 %v3334, %v3400
        %3402 = vmatmul.bf16.gmra.mxu0 %v3308
        %v3403 = vpop.f32.mrf.mxu0
        %v3404 = vadd.f32 %v3334, %v3403
        %v3405 = vpop.f32.mrf.mxu0
        %v3406 = vadd.f32 %v3334, %v3405
        %3407 = vmatmul.bf16.gmra.mxu0 %v3309
        %v3408 = vpop.f32.mrf.mxu0
        %v3409 = vadd.f32 %v3334, %v3408
        %v3410 = vpop.f32.mrf.mxu0
        %v3411 = vadd.f32 %v3334, %v3410
        %3412 = vmatmul.bf16.gmra.mxu0 %v3310
        %v3413 = vpop.f32.mrf.mxu0
        %v3414 = vadd.f32 %v3334, %v3413
        %v3415 = vpop.f32.mrf.mxu0
        %v3416 = vadd.f32 %v3334, %v3415
        %3417 = vmatmul.bf16.gmra.mxu0 %v3311
        %v3418 = vpop.f32.mrf.mxu0
        %v3419 = vadd.f32 %v3334, %v3418
        %v3420 = vpop.f32.mrf.mxu0
        %v3421 = vadd.f32 %v3334, %v3420
        %3422 = vmatmul.bf16.gmra.mxu0 %v3312
        %v3423 = vpop.f32.mrf.mxu0
        %v3424 = vadd.f32 %v3334, %v3423
        %v3425 = vpop.f32.mrf.mxu0
        %v3426 = vadd.f32 %v3334, %v3425
        %3427 = vmatmul.bf16.gmra.mxu0 %v3313
        %v3428 = vpop.f32.mrf.mxu0
        %v3429 = vadd.f32 %v3334, %v3428
        %v3430 = vpop.f32.mrf.mxu0
        %v3431 = vadd.f32 %v3334, %v3430
        %3432 = vdwg.mxu0
        %v3433 = vmax.f32 %v3394, 0.0
        %v3434 = vmax.f32 %v3396, 0.0
        %v3435 = vmax.f32 %v3399, 0.0
        %v3436 = vmax.f32 %v3401, 0.0
        %v3437 = vmax.f32 %v3404, 0.0
        %v3438 = vmax.f32 %v3406, 0.0
        %v3439 = vmax.f32 %v3409, 0.0
        %v3440 = vmax.f32 %v3411, 0.0
        %v3441 = vmax.f32 %v3414, 0.0
        %v3442 = vmax.f32 %v3416, 0.0
        %v3443 = vmax.f32 %v3419, 0.0
        %v3444 = vmax.f32 %v3421, 0.0
        %v3445 = vmax.f32 %v3424, 0.0
        %v3446 = vmax.f32 %v3426, 0.0
        %v3447 = vmax.f32 %v3429, 0.0
        %v3448 = vmax.f32 %v3431, 0.0
        %v3449 = vpack.c.bf16 %v3434, %v3433
        %v3450 = vpack.c.bf16 %v3436, %v3435
        %v3451 = vpack.c.bf16 %v3438, %v3437
        %v3452 = vpack.c.bf16 %v3440, %v3439
        %v3453 = vpack.c.bf16 %v3442, %v3441
        %v3454 = vpack.c.bf16 %v3444, %v3443
        %v3455 = vpack.c.bf16 %v3446, %v3445
        %v3456 = vpack.c.bf16 %v3448, %v3447
        %s3457 = scalar_lea.vmem [#allocation11], 256
        %v3458 = vld [vmem:[%s3457] sm:$0xf]
        %v3459 = vld [vmem:[%s3457 + $0x4] sm:$0xf]
        %v3460 = vld [vmem:[%s3457 + $0x8] sm:$0xf]
        %v3461 = vld [vmem:[%s3457 + $0xc] sm:$0xf]
        %v3462 = vld [vmem:[%s3457 + $0x10] sm:$0xf]
        %v3463 = vld [vmem:[%s3457 + $0x14] sm:$0xf]
        %v3464 = vld [vmem:[%s3457 + $0x18] sm:$0xf]
        %v3465 = vld [vmem:[%s3457 + $0x1c] sm:$0xf]
        %v3466 = vld [vmem:[%s3457 + $0x20] sm:$0xf]
        %v3467 = vld [vmem:[%s3457 + $0x24] sm:$0xf]
        %v3468 = vld [vmem:[%s3457 + $0x28] sm:$0xf]
        %v3469 = vld [vmem:[%s3457 + $0x2c] sm:$0xf]
        %v3470 = vld [vmem:[%s3457 + $0x30] sm:$0xf]
        %v3471 = vld [vmem:[%s3457 + $0x34] sm:$0xf]
        %v3472 = vld [vmem:[%s3457 + $0x38] sm:$0xf]
        %v3473 = vld [vmem:[%s3457 + $0x3c] sm:$0xf]
        %s3474 = scalar_lea.vmem %s6, 4
        %v3475 = vld [vmem:[%s3474] sm:$0x1]
        %v3477 = vperm.slane %v3475, 0
        %v3495 = vunpack.c.l.b16 %v3458
        %v3496 = vunpack.c.l.b16 %v3459
        %v3497 = vunpack.c.l.b16 %v3460
        %v3498 = vunpack.c.l.b16 %v3461
        %v3499 = vunpack.c.l.b16 %v3462
        %v3500 = vunpack.c.l.b16 %v3463
        %v3501 = vunpack.c.l.b16 %v3464
        %v3502 = vunpack.c.l.b16 %v3465
        %v3503 = vunpack.c.l.b16 %v3466
        %v3504 = vunpack.c.l.b16 %v3467
        %v3505 = vunpack.c.l.b16 %v3468
        %v3506 = vunpack.c.l.b16 %v3469
        %v3507 = vunpack.c.l.b16 %v3470
        %v3508 = vunpack.c.l.b16 %v3471
        %v3509 = vunpack.c.l.b16 %v3472
        %v3510 = vunpack.c.l.b16 %v3473
        %v3511 = vpack.c.b16 %v3496, %v3495
        %v3512 = vpack.c.b16 %v3498, %v3497
        %v3513 = vpack.c.b16 %v3500, %v3499
        %v3514 = vpack.c.b16 %v3502, %v3501
        %v3515 = vpack.c.b16 %v3504, %v3503
        %v3516 = vpack.c.b16 %v3506, %v3505
        %v3517 = vpack.c.b16 %v3508, %v3507
        %v3518 = vpack.c.b16 %v3510, %v3509
        %3527 = vmatpush.bf16.msra.mxu0 %v3518
        %3528 = vmatpush.bf16.msra.mxu0 %v3517
        %3529 = vmatpush.bf16.msra.mxu0 %v3516
        %3530 = vmatpush.bf16.msra.mxu0 %v3515
        %3531 = vmatpush.bf16.msra.mxu0 %v3514
        %3532 = vmatpush.bf16.msra.mxu0 %v3513
        %3533 = vmatpush.bf16.msra.mxu0 %v3512
        %3534 = vmatpush.bf16.msra.mxu0 %v3511
        %3535 = vmatmul.bf16.gmra.mxu0 %v3449
        %v3536 = vpop.f32.mrf.mxu0
        %v3537 = vadd.f32 %v3477, %v3536
        %v3538 = vpop.f32.mrf.mxu0
        %v3539 = vadd.f32 %v3477, %v3538
        %3540 = vmatmul.bf16.gmra.mxu0 %v3450
        %v3541 = vpop.f32.mrf.mxu0
        %v3542 = vadd.f32 %v3477, %v3541
        %v3543 = vpop.f32.mrf.mxu0
        %v3544 = vadd.f32 %v3477, %v3543
        %3545 = vmatmul.bf16.gmra.mxu0 %v3451
        %v3546 = vpop.f32.mrf.mxu0
        %v3547 = vadd.f32 %v3477, %v3546
        %v3548 = vpop.f32.mrf.mxu0
        %v3549 = vadd.f32 %v3477, %v3548
        %3550 = vmatmul.bf16.gmra.mxu0 %v3452
        %v3551 = vpop.f32.mrf.mxu0
        %v3552 = vadd.f32 %v3477, %v3551
        %v3553 = vpop.f32.mrf.mxu0
        %v3554 = vadd.f32 %v3477, %v3553
        %3555 = vmatmul.bf16.gmra.mxu0 %v3453
        %v3556 = vpop.f32.mrf.mxu0
        %v3557 = vadd.f32 %v3477, %v3556
        %v3558 = vpop.f32.mrf.mxu0
        %v3559 = vadd.f32 %v3477, %v3558
        %3560 = vmatmul.bf16.gmra.mxu0 %v3454
        %v3561 = vpop.f32.mrf.mxu0
        %v3562 = vadd.f32 %v3477, %v3561
        %v3563 = vpop.f32.mrf.mxu0
        %v3564 = vadd.f32 %v3477, %v3563
        %3565 = vmatmul.bf16.gmra.mxu0 %v3455
        %v3566 = vpop.f32.mrf.mxu0
        %v3567 = vadd.f32 %v3477, %v3566
        %v3568 = vpop.f32.mrf.mxu0
        %v3569 = vadd.f32 %v3477, %v3568
        %3570 = vmatmul.bf16.gmra.mxu0 %v3456
        %v3571 = vpop.f32.mrf.mxu0
        %v3572 = vadd.f32 %v3477, %v3571
        %v3573 = vpop.f32.mrf.mxu0
        %v3574 = vadd.f32 %v3477, %v3573
        %3575 = vdwg.mxu0
        %v3576 = vmax.f32 %v3537, 0.0
        %v3577 = vmax.f32 %v3539, 0.0
        %v3578 = vmax.f32 %v3542, 0.0
        %v3579 = vmax.f32 %v3544, 0.0
        %v3580 = vmax.f32 %v3547, 0.0
        %v3581 = vmax.f32 %v3549, 0.0
        %v3582 = vmax.f32 %v3552, 0.0
        %v3583 = vmax.f32 %v3554, 0.0
        %v3584 = vmax.f32 %v3557, 0.0
        %v3585 = vmax.f32 %v3559, 0.0
        %v3586 = vmax.f32 %v3562, 0.0
        %v3587 = vmax.f32 %v3564, 0.0
        %v3588 = vmax.f32 %v3567, 0.0
        %v3589 = vmax.f32 %v3569, 0.0
        %v3590 = vmax.f32 %v3572, 0.0
        %v3591 = vmax.f32 %v3574, 0.0
        %3592 = vst [vmem:[%s380] sm:$0xff] %v3576
        %3593 = vst [vmem:[%s380 + $0x8] sm:$0xff] %v3577
        %3594 = vst [vmem:[%s380 + $0x10] sm:$0xff] %v3578
        %3595 = vst [vmem:[%s380 + $0x18] sm:$0xff] %v3579
        %3596 = vst [vmem:[%s380 + $0x20] sm:$0xff] %v3580
        %3597 = vst [vmem:[%s380 + $0x28] sm:$0xff] %v3581
        %3598 = vst [vmem:[%s380 + $0x30] sm:$0xff] %v3582
        %3599 = vst [vmem:[%s380 + $0x38] sm:$0xff] %v3583
        %3600 = vst [vmem:[%s380 + $0x40] sm:$0xff] %v3584
        %3601 = vst [vmem:[%s380 + $0x48] sm:$0xff] %v3585
        %3602 = vst [vmem:[%s380 + $0x50] sm:$0xff] %v3586
        %3603 = vst [vmem:[%s380 + $0x58] sm:$0xff] %v3587
        %3604 = vst [vmem:[%s380 + $0x60] sm:$0xff] %v3588
        %3605 = vst [vmem:[%s380 + $0x68] sm:$0xff] %v3589
        %3606 = vst [vmem:[%s380 + $0x70] sm:$0xff] %v3590
        %3607 = vst [vmem:[%s380 + $0x78] sm:$0xff] %v3591
        %s3608 = sand.u32 %s187, 1
        %s3609 = scalar_lea.sflag [#allocation4], %s3608
        %s3610 = sand.u32 %s187, 1
        %s3611 = smul.addr %s3610, 128
        %s3612 = scalar_lea.vmem [#allocation13], %s3611
        // Predicated region
        $region73: #{tpu_custom_call.1} parent=47 // pred_check
          %p3613 = pneg %p197
        $region74: #{tpu_custom_call.1} parent=47 // pred_check_branch
          %3615 = sbr.rel (%p3613) target = $region76
        $region75: #{tpu_custom_call.1} parent=47 // pred_region
          %s3616 = smul.u32 16, %s27
          %3618 = vsyncadd %s3609, 0
          %s3619 = smul.addr %s3616, 8
          %s3620 = scalar_lea.hbm %s7, %s3619
          %s3621 = sshll.u32 %s3612, 4
          %s3622 = int_to_ptr.vmem [resolvable:$true] %s3621
          %s3623 = sshll.u32 %s3620, 4
          %s3624 = int_to_ptr.hbm [resolvable:$true] %s3623
          %3629 = dma.vmem_to_hbm [thread:$0]  %s3622, 2048, %s3624, %s3609, 128, 128, 8
        $region76: #{tpu_custom_call.1} parent=47 // pred_fallthru
          _
      $region48: #{tpu_custom_call.1} parent=5 // pred_fallthru
        _
      %p3630 = scmp.le.s32.totalorder 2, %s22
      // Predicated region
      $region77: #{tpu_custom_call.1} parent=5 // pred_check
        %p3631 = pneg %p3630
      $region78: #{tpu_custom_call.1} parent=5 // pred_check_branch
        %3633 = sbr.rel (%p3631) target = $region80
      $region79: #{tpu_custom_call.1} parent=5 // pred_region
        %s3634 = ssub.s32 %s22, 2
        // Predicated region
        $region81: #{tpu_custom_call.1} parent=79 // pred_check
          %p3635 = pneg %p203
        $region82: #{tpu_custom_call.1} parent=79 // pred_check_branch
          %3637 = sbr.rel (%p3635) target = $region84
        $region83: #{tpu_custom_call.1} parent=79 // pred_region
          %s3638 = sand.u32 %s188, 1
          %s3639 = scalar_lea.sflag [#allocation4], %s3638
          %s3640 = sand.u32 %s188, 1
          %s3641 = smul.addr %s3640, 128
          %s3642 = scalar_lea.vmem [#allocation13], %s3641
          %3644 = dma.done %s3639, 2048
        $region84: #{tpu_custom_call.1} parent=79 // pred_fallthru
          _
      $region80: #{tpu_custom_call.1} parent=5 // pred_fallthru
        _
    $region6: #{tpu_custom_call.1} parent=1 // loop_footer
      %s26 = sadd.s32 1, %s22
    $region7: #{tpu_custom_call.1} parent=1 // loop_footer_branch
      %21 = sbr.rel target = $region3
    $region8: #{tpu_custom_call.1} parent=1 // loop_exit
      _
    %3645 = vsyncpa [#allocation3], 1
    %s3646 = scalar_lea.sflag [#allocation3], 1
    %3647 = vsyncpa %s3646, 1
    %3648 = vsyncpa [#allocation6], 1
    %3649 = vsyncpa [#allocation9], 1
    %3650 = vsyncpa [#allocation12], 1
    %3651 = vsyncpa [#allocation4], 1
    %s3652 = scalar_lea.sflag [#allocation4], 1
    %3653 = vsyncpa %s3652, 1

</llo_original>
